<compile_context>
chip_gen: v7x
topology: tpu7x:2x2x1
jax: 0.10.0
libtpu: 0.0.40
codegen_flags: <defaults>
</compile_context>

<pallas_src>
import functools

import jax
import jax.numpy as jnp
from jax.experimental import pallas as pl
from jax.experimental.pallas import tpu as pltpu


K_TAPS = 7
PAD = (K_TAPS - 1) // 2


# --------------------------------------------------------------------------
# Fused Pallas kernel: the entire InceptionB block for one batch element
# --------------------------------------------------------------------------
def _inception_b_kernel(
    x_ref,
    w131_ref, b131_ref,   # branch13x13_1 : 1x1      Cin -> c7
    w132_ref, b132_ref,   # branch13x13_2 : (1,7) W  c7  -> c7
    w133_ref, b133_ref,   # branch13x13_3 : (7,1) H  c7  -> c7
    w134_ref, b134_ref,   # branch13x13_4 : (1,7) W  c7  -> c7
    w135_ref, b135_ref,   # branch13x13_5 : (7,1) H  c7  -> 96
    w71_ref, b71_ref,     # branch7x7_1   : 1x1      Cin -> c7
    w72_ref, b72_ref,     # branch7x7_2   : (7,1) H  c7  -> 96
    wpl_ref, bpl_ref,     # branch_pool_2 : 1x1      Cin -> 96
    w11_ref, b11_ref,     # branch1x1     : 1x1      Cin -> 96
    o_ref,
    wpad_ref, hpad_ref, ppad_ref,
):
    n, h, w, cin = x_ref.shape          # n == 1 (one batch element per grid step)
    rows = n * h * w

    # Zero the conv-padding scratch once per step; interiors are fully
    # overwritten on every use, so the borders always stay zero.
    wpad_ref[...] = jnp.zeros(wpad_ref.shape, jnp.float32)
    hpad_ref[...] = jnp.zeros(hpad_ref.shape, jnp.float32)

    x = x_ref[...].astype(jnp.float32)
    x2d = x.reshape(rows, cin)

    def dense(y2d, w_ref, b_ref):
        """Single MXU matmul + folded-BN bias + ReLU.  y2d: (rows, Cin_l)."""
        y = jnp.dot(y2d, w_ref[...], preferred_element_type=jnp.float32)
        return jnp.maximum(y + b_ref[...], 0.0)

    def to4(y2d):
        return y2d.reshape(n, h, w, y2d.shape[-1])

    def tap_conv(y4, w_ref, b_ref, axis):
        """'same' 7-tap conv along `axis` (1 = H, 2 = W) + bias + ReLU.

        Writes y4 into the zero-padded VMEM scratch, builds the im2col operand
        (rows, 7*Cin_l) by concatenating 7 shifted slices, and runs ONE matmul.
        """
        c = y4.shape[-1]
        if axis == 2:
            wpad_ref[:, :, PAD:PAD + w, :] = y4
            parts = [wpad_ref[:, :, k:k + w, :].reshape(rows, c)
                     for k in range(K_TAPS)]
        else:
            hpad_ref[:, PAD:PAD + h, :, :] = y4
            parts = [hpad_ref[:, k:k + h, :, :].reshape(rows, c)
                     for k in range(K_TAPS)]
        cols = jnp.concatenate(parts, axis=-1)      # (rows, 7*Cin_l) im2col
        return dense(cols, w_ref, b_ref)

    # ---- branch13x13: 1x1 -> (1,7) -> (7,1) -> (1,7) -> (7,1) ---------------
    t = to4(dense(x2d, w131_ref, b131_ref))
    t = to4(tap_conv(t, w132_ref, b132_ref, axis=2))
    t = to4(tap_conv(t, w133_ref, b133_ref, axis=1))
    t = to4(tap_conv(t, w134_ref, b134_ref, axis=2))
    b13 = tap_conv(t, w135_ref, b135_ref, axis=1)            # (rows, 96)

    # ---- branch7x7: 1x1 -> (7,1)  (matches the PyTorch reassignment) --------
    t = to4(dense(x2d, w71_ref, b71_ref))
    b7 = tap_conv(t, w72_ref, b72_ref, axis=1)               # (rows, 96)

    # ---- branch_pool: 3x3/s1 max-pool (pad 1, -inf) -> 1x1 -------------------
    ppad_ref[...] = jnp.full(ppad_ref.shape, -jnp.inf, jnp.float32)
    ppad_ref[:, 1:1 + h, 1:1 + w, :] = x
    m = ppad_ref[:, 0:h, 0:w, :]
    for dh in range(3):
        for dw in range(3):
            if dh == 0 and dw == 0:
                continue
            m = jnp.maximum(m, ppad_ref[:, dh:dh + h, dw:dw + w, :])
    bpool = dense(m.reshape(rows, cin), wpl_ref, bpl_ref)    # (rows, 96)

    # ---- branch1x1 -----------------------------------------------------------
    b1 = dense(x2d, w11_ref, b11_ref)                        # (rows, 96)

    # Lane-dense assembly: [b13, b7, pool, b1] -> (rows, 384) -> one unmasked
    # full-lane store (384 = 3 * 128).
    out = jnp.concatenate([b13, b7, bpool, b1], axis=-1)
    o_ref[...] = out.reshape(n, h, w, out.shape[-1]).astype(o_ref.dtype)


# --------------------------------------------------------------------------
# Parameter construction (deterministic, PyTorch-equivalent shapes, BN folded)
# --------------------------------------------------------------------------
def init_basic_conv(key, cin, cout, ksize, eps=1e-5):
    kh, kw = ksize
    k1, k2, k3, k4, k5 = jax.random.split(key, 5)
    # PyTorch conv weight layout: (Cout, Cin, kh, kw), no conv bias.
    w = jax.random.normal(k1, (cout, cin, kh, kw), jnp.float32) * 0.1
    gamma = 1.0 + 0.1 * jax.random.normal(k2, (cout,), jnp.float32)
    beta = 0.1 * jax.random.normal(k3, (cout,), jnp.float32)
    running_mean = 0.1 * jax.random.normal(k4, (cout,), jnp.float32)
    running_var = 0.5 + 0.5 * jnp.abs(jax.random.normal(k5, (cout,), jnp.float32))

    scale = gamma / jnp.sqrt(running_var + eps)
    bias = beta - running_mean * scale
    wf = w * scale[:, None, None, None]            # fold BN scale into weights

    if kh == 1:   # (1, kw): taps along W (also covers 1x1)
        taps = jnp.transpose(wf[:, :, 0, :], (2, 1, 0))   # (kw, Cin, Cout)
        axis = 2
    else:         # (kh, 1): taps along H
        taps = jnp.transpose(wf[:, :, :, 0], (2, 1, 0))   # (kh, Cin, Cout)
        axis = 1
    w2d = taps.reshape(taps.shape[0] * cin, cout)         # im2col weight
    return {"w2d": w2d, "bias": bias.reshape(1, cout), "w4d": wf, "axis": axis}


def init_inception_b_params(key, in_channels, channels_7x7):
    c7 = channels_7x7
    ks = jax.random.split(key, 9)
    return {
        "branch1x1":     init_basic_conv(ks[0], in_channels, 96, (1, 1)),
        "branch7x7_1":   init_basic_conv(ks[1], in_channels, c7, (1, 1)),
        # NOTE: in the PyTorch __init__, branch7x7_2 is reassigned; the final
        # value is the (7,1) conv c7 -> 96 with padding (3, 0).
        "branch7x7_2":   init_basic_conv(ks[2], c7, 96, (7, 1)),
        "branch13x13_1": init_basic_conv(ks[3], in_channels, c7, (1, 1)),
        "branch13x13_2": init_basic_conv(ks[4], c7, c7, (1, 7)),
        "branch13x13_3": init_basic_conv(ks[5], c7, c7, (7, 1)),
        "branch13x13_4": init_basic_conv(ks[6], c7, c7, (1, 7)),
        "branch13x13_5": init_basic_conv(ks[7], c7, 96, (7, 1)),
        "branch_pool_2": init_basic_conv(ks[8], in_channels, 96, (1, 1)),
    }


# --------------------------------------------------------------------------
# InceptionB forward: one fused pallas_call
# --------------------------------------------------------------------------
_LAYER_ORDER = (
    "branch13x13_1", "branch13x13_2", "branch13x13_3", "branch13x13_4",
    "branch13x13_5", "branch7x7_1", "branch7x7_2", "branch_pool_2", "branch1x1",
)


def inception_b_forward(x_nchw, params):
    x = jnp.transpose(x_nchw, (0, 2, 3, 1)).astype(jnp.float32)   # NCHW -> NHWC
    n, h, w, cin = x.shape
    c7 = params["branch13x13_1"]["w2d"].shape[-1]
    cout_total = 4 * 96

    flat_args = []
    for name in _LAYER_ORDER:
        flat_args.append(params[name]["w2d"])
        flat_args.append(params[name]["bias"])

    # Weights/biases: full-array blocks with a constant block index -> fetched
    # into VMEM once, not per grid step.
    in_specs = [pl.BlockSpec((1, h, w, cin), lambda i: (i, 0, 0, 0))]
    in_specs += [pl.BlockSpec(a.shape, lambda i: (0, 0)) for a in flat_args]

    out_nhwc = pl.pallas_call(
        _inception_b_kernel,
        out_shape=jax.ShapeDtypeStruct((n, h, w, cout_total), jnp.float32),
        grid=(n,),
        in_specs=in_specs,
        out_specs=pl.BlockSpec((1, h, w, cout_total), lambda i: (i, 0, 0, 0)),
        scratch_shapes=[
            pltpu.VMEM((1, h, w + 2 * PAD, c7), jnp.float32),   # W-conv zero pad
            pltpu.VMEM((1, h + 2 * PAD, w, c7), jnp.float32),   # H-conv zero pad
            pltpu.VMEM((1, h + 2, w + 2, cin), jnp.float32),    # max-pool -inf pad
        ],
        compiler_params=pltpu.CompilerParams(
            dimension_semantics=("parallel",),      # batch elements across TCs (v7x)
            vmem_limit_bytes=32 * 1024 * 1024,
        ),
    )(x, *flat_args)

    return jnp.transpose(out_nhwc, (0, 3, 1, 2))                  # NHWC -> NCHW


# --------------------------------------------------------------------------
# Pure-JAX reference (validation only)
# --------------------------------------------------------------------------
def _ref_basic_conv(x_nhwc, p):
    w4d = p["w4d"]                                   # (Cout, Cin, kh, kw), BN folded
    kh, kw = int(w4d.shape[2]), int(w4d.shape[3])
    y = jax.lax.conv_general_dilated(
        x_nhwc, jnp.transpose(w4d, (2, 3, 1, 0)),    # -> HWIO
        window_strides=(1, 1),
        padding=[((kh - 1) // 2, (kh - 1) // 2), ((kw - 1) // 2, (kw - 1) // 2)],
        dimension_numbers=("NHWC", "HWIO", "NHWC"))
    return jnp.maximum(y + p["bias"].reshape(1, 1, 1, -1), 0.0)


def _ref_maxpool3x3(x_nhwc):
    return jax.lax.reduce_window(
        x_nhwc, -jnp.inf, jax.lax.max,
        window_dimensions=(1, 3, 3, 1), window_strides=(1, 1, 1, 1),
        padding=((0, 0), (1, 1), (1, 1), (0, 0)))


def inception_b_reference(x_nchw, params):
    x = jnp.transpose(x_nchw, (0, 2, 3, 1))
    b13 = x
    for name in ("branch13x13_1", "branch13x13_2", "branch13x13_3",
                 "branch13x13_4", "branch13x13_5"):
        b13 = _ref_basic_conv(b13, params[name])
    b7 = _ref_basic_conv(_ref_basic_conv(x, params["branch7x7_1"]),
                         params["branch7x7_2"])
    bp = _ref_basic_conv(_ref_maxpool3x3(x), params["branch_pool_2"])
    b1 = _ref_basic_conv(x, params["branch1x1"])
    out = jnp.concatenate([b13, b7, bp, b1], axis=-1)
    return jnp.transpose(out, (0, 3, 1, 2))


if __name__ == "__main__":
    key = jax.random.PRNGKey(0)
    kp, kx = jax.random.split(key)

    N, in_channels, H, W = 2, 16, 8, 8
    channels_7x7 = 8

    params = init_inception_b_params(kp, in_channels, channels_7x7)
    x = jax.random.normal(kx, (N, in_channels, H, W), jnp.float32)

    fwd = jax.jit(functools.partial(inception_b_forward, params=params))
    out = fwd(x)
    jax.block_until_ready(out)

    assert out.shape == (N, 4 * 96, H, W), out.shape
    assert bool(jnp.all(out >= 0.0))                 # ReLU ends every branch

    # Loose tolerance: MXU f32 matmul passes vs XLA conv may differ slightly.
    ref = inception_b_reference(x, params)
    max_err = float(jnp.max(jnp.abs(out - ref)))
    ref_scale = float(jnp.max(jnp.abs(ref))) + 1e-6
    assert max_err <= 5e-2 * ref_scale, (max_err, ref_scale)

    print("KERNEL_OK")
</pallas_src>

<mosaic_0001>
module attributes {stable_mosaic.version = 11 : i64} {
  func.func @_inception_b_kernel(%arg0: i32, %arg1: memref<1x8x8x16xf32, #tpu.memory_space<vmem>>, %arg2: memref<16x8xf32, #tpu.memory_space<vmem>>, %arg3: memref<1x8xf32, #tpu.memory_space<vmem>>, %arg4: memref<56x8xf32, #tpu.memory_space<vmem>>, %arg5: memref<1x8xf32, #tpu.memory_space<vmem>>, %arg6: memref<56x8xf32, #tpu.memory_space<vmem>>, %arg7: memref<1x8xf32, #tpu.memory_space<vmem>>, %arg8: memref<56x8xf32, #tpu.memory_space<vmem>>, %arg9: memref<1x8xf32, #tpu.memory_space<vmem>>, %arg10: memref<56x96xf32, #tpu.memory_space<vmem>>, %arg11: memref<1x96xf32, #tpu.memory_space<vmem>>, %arg12: memref<16x8xf32, #tpu.memory_space<vmem>>, %arg13: memref<1x8xf32, #tpu.memory_space<vmem>>, %arg14: memref<56x96xf32, #tpu.memory_space<vmem>>, %arg15: memref<1x96xf32, #tpu.memory_space<vmem>>, %arg16: memref<16x96xf32, #tpu.memory_space<vmem>>, %arg17: memref<1x96xf32, #tpu.memory_space<vmem>>, %arg18: memref<16x96xf32, #tpu.memory_space<vmem>>, %arg19: memref<1x96xf32, #tpu.memory_space<vmem>>, %arg20: memref<1x8x8x384xf32, #tpu.memory_space<vmem>>, %arg21: memref<1x8x14x8xf32, #tpu.memory_space<vmem>>, %arg22: memref<1x14x8x8xf32, #tpu.memory_space<vmem>>, %arg23: memref<1x10x10x16xf32, #tpu.memory_space<vmem>>) attributes {dimension_semantics = [#tpu.dimension_semantics<parallel>], iteration_bounds = array<i64: 2>, scalar_prefetch = 0 : i64, scratch_operands = 3 : i64, tpu.core_type = #tpu.core_type<tc>, window_params = [{transform_indices = @transform_0, window_bounds = array<i64: 1, 8, 8, 16>}, {pipeline_mode = #tpu.pipeline_mode<synchronous>, transform_indices = @transform_1, window_bounds = array<i64: 16, 8>}, {pipeline_mode = #tpu.pipeline_mode<synchronous>, transform_indices = @transform_2, window_bounds = array<i64: 1, 8>}, {pipeline_mode = #tpu.pipeline_mode<synchronous>, transform_indices = @transform_3, window_bounds = array<i64: 56, 8>}, {pipeline_mode = #tpu.pipeline_mode<synchronous>, transform_indices = @transform_4, window_bounds = array<i64: 1, 8>}, {pipeline_mode = #tpu.pipeline_mode<synchronous>, transform_indices = @transform_5, window_bounds = array<i64: 56, 8>}, {pipeline_mode = #tpu.pipeline_mode<synchronous>, transform_indices = @transform_6, window_bounds = array<i64: 1, 8>}, {pipeline_mode = #tpu.pipeline_mode<synchronous>, transform_indices = @transform_7, window_bounds = array<i64: 56, 8>}, {pipeline_mode = #tpu.pipeline_mode<synchronous>, transform_indices = @transform_8, window_bounds = array<i64: 1, 8>}, {pipeline_mode = #tpu.pipeline_mode<synchronous>, transform_indices = @transform_9, window_bounds = array<i64: 56, 96>}, {pipeline_mode = #tpu.pipeline_mode<synchronous>, transform_indices = @transform_10, window_bounds = array<i64: 1, 96>}, {pipeline_mode = #tpu.pipeline_mode<synchronous>, transform_indices = @transform_11, window_bounds = array<i64: 16, 8>}, {pipeline_mode = #tpu.pipeline_mode<synchronous>, transform_indices = @transform_12, window_bounds = array<i64: 1, 8>}, {pipeline_mode = #tpu.pipeline_mode<synchronous>, transform_indices = @transform_13, window_bounds = array<i64: 56, 96>}, {pipeline_mode = #tpu.pipeline_mode<synchronous>, transform_indices = @transform_14, window_bounds = array<i64: 1, 96>}, {pipeline_mode = #tpu.pipeline_mode<synchronous>, transform_indices = @transform_15, window_bounds = array<i64: 16, 96>}, {pipeline_mode = #tpu.pipeline_mode<synchronous>, transform_indices = @transform_16, window_bounds = array<i64: 1, 96>}, {pipeline_mode = #tpu.pipeline_mode<synchronous>, transform_indices = @transform_17, window_bounds = array<i64: 16, 96>}, {pipeline_mode = #tpu.pipeline_mode<synchronous>, transform_indices = @transform_18, window_bounds = array<i64: 1, 96>}, {transform_indices = @transform_19, window_bounds = array<i64: 1, 8, 8, 384>}]} {
    %cst = arith.constant 0.000000e+00 : f32
    %0 = vector.broadcast %cst : f32 to vector<1x8x14x8xf32>
    %c0 = arith.constant 0 : index
    %c0_0 = arith.constant 0 : index
    %c0_1 = arith.constant 0 : index
    %c0_2 = arith.constant 0 : index
    %1 = vector.load %arg21[%c0, %c0_0, %c0_1, %c0_2] : memref<1x8x14x8xf32, #tpu.memory_space<vmem>>, vector<1x8x14x8xf32>
    tpu.vector_store %arg21[%c0, %c0_0, %c0_1, %c0_2], %0 {strides = array<i32>} : memref<1x8x14x8xf32, #tpu.memory_space<vmem>>, vector<1x8x14x8xf32>,
    %cst_3 = arith.constant 0.000000e+00 : f32
    %2 = vector.broadcast %cst_3 : f32 to vector<1x14x8x8xf32>
    %c0_4 = arith.constant 0 : index
    %c0_5 = arith.constant 0 : index
    %c0_6 = arith.constant 0 : index
    %c0_7 = arith.constant 0 : index
    %3 = vector.load %arg22[%c0_4, %c0_5, %c0_6, %c0_7] : memref<1x14x8x8xf32, #tpu.memory_space<vmem>>, vector<1x14x8x8xf32>
    tpu.vector_store %arg22[%c0_4, %c0_5, %c0_6, %c0_7], %2 {strides = array<i32>} : memref<1x14x8x8xf32, #tpu.memory_space<vmem>>, vector<1x14x8x8xf32>,
    %c0_8 = arith.constant 0 : index
    %c0_9 = arith.constant 0 : index
    %c0_10 = arith.constant 0 : index
    %c0_11 = arith.constant 0 : index
    %4 = vector.load %arg1[%c0_8, %c0_9, %c0_10, %c0_11] : memref<1x8x8x16xf32, #tpu.memory_space<vmem>>, vector<1x8x8x16xf32>
    %5 = vector.shape_cast %4 : vector<1x8x8x16xf32> to vector<64x16xf32>
    %c0_12 = arith.constant 0 : index
    %c0_13 = arith.constant 0 : index
    %6 = vector.load %arg2[%c0_12, %c0_13] : memref<16x8xf32, #tpu.memory_space<vmem>>, vector<16x8xf32>
    %cst_14 = arith.constant dense<0.000000e+00> : vector<64x8xf32>
    %7 = tpu.matmul %5, %6, %cst_14 {dimension_numbers = #tpu.dot_dimension_numbers<[1], [0], [0], [1], [0, 0, 1, 1], [], []>} : vector<64x16xf32>, vector<16x8xf32>, vector<64x8xf32> -> vector<64x8xf32>
    %c0_15 = arith.constant 0 : index
    %c0_16 = arith.constant 0 : index
    %8 = vector.load %arg3[%c0_15, %c0_16] : memref<1x8xf32, #tpu.memory_space<vmem>>, vector<1x8xf32>
    %9 = vector.broadcast %8 : vector<1x8xf32> to vector<64x8xf32>
    %10 = arith.addf %7, %9 : vector<64x8xf32>
    %cst_17 = arith.constant 0.000000e+00 : f32
    %11 = vector.broadcast %cst_17 : f32 to vector<64x8xf32>
    %12 = arith.maximumf %10, %11 : vector<64x8xf32>
    %13 = vector.shape_cast %12 : vector<64x8xf32> to vector<1x8x8x8xf32>
    %c0_18 = arith.constant 0 : index
    %c0_19 = arith.constant 0 : index
    %c3 = arith.constant 3 : index
    %c0_20 = arith.constant 0 : index
    %14 = vector.load %arg21[%c0_18, %c0_19, %c3, %c0_20] : memref<1x8x14x8xf32, #tpu.memory_space<vmem>>, vector<1x8x8x8xf32>
    tpu.vector_store %arg21[%c0_18, %c0_19, %c3, %c0_20], %13 {strides = array<i32>} : memref<1x8x14x8xf32, #tpu.memory_space<vmem>>, vector<1x8x8x8xf32>,
    %c0_21 = arith.constant 0 : index
    %c0_22 = arith.constant 0 : index
    %c0_23 = arith.constant 0 : index
    %c0_24 = arith.constant 0 : index
    %15 = vector.load %arg21[%c0_21, %c0_22, %c0_23, %c0_24] : memref<1x8x14x8xf32, #tpu.memory_space<vmem>>, vector<1x8x8x8xf32>
    %16 = vector.shape_cast %15 : vector<1x8x8x8xf32> to vector<64x8xf32>
    %c0_25 = arith.constant 0 : index
    %c0_26 = arith.constant 0 : index
    %c1 = arith.constant 1 : index
    %c0_27 = arith.constant 0 : index
    %17 = vector.load %arg21[%c0_25, %c0_26, %c1, %c0_27] : memref<1x8x14x8xf32, #tpu.memory_space<vmem>>, vector<1x8x8x8xf32>
    %18 = vector.shape_cast %17 : vector<1x8x8x8xf32> to vector<64x8xf32>
    %c0_28 = arith.constant 0 : index
    %c0_29 = arith.constant 0 : index
    %c2 = arith.constant 2 : index
    %c0_30 = arith.constant 0 : index
    %19 = vector.load %arg21[%c0_28, %c0_29, %c2, %c0_30] : memref<1x8x14x8xf32, #tpu.memory_space<vmem>>, vector<1x8x8x8xf32>
    %20 = vector.shape_cast %19 : vector<1x8x8x8xf32> to vector<64x8xf32>
    %c0_31 = arith.constant 0 : index
    %c0_32 = arith.constant 0 : index
    %c3_33 = arith.constant 3 : index
    %c0_34 = arith.constant 0 : index
    %21 = vector.load %arg21[%c0_31, %c0_32, %c3_33, %c0_34] : memref<1x8x14x8xf32, #tpu.memory_space<vmem>>, vector<1x8x8x8xf32>
    %22 = vector.shape_cast %21 : vector<1x8x8x8xf32> to vector<64x8xf32>
    %c0_35 = arith.constant 0 : index
    %c0_36 = arith.constant 0 : index
    %c4 = arith.constant 4 : index
    %c0_37 = arith.constant 0 : index
    %23 = vector.load %arg21[%c0_35, %c0_36, %c4, %c0_37] : memref<1x8x14x8xf32, #tpu.memory_space<vmem>>, vector<1x8x8x8xf32>
    %24 = vector.shape_cast %23 : vector<1x8x8x8xf32> to vector<64x8xf32>
    %c0_38 = arith.constant 0 : index
    %c0_39 = arith.constant 0 : index
    %c5 = arith.constant 5 : index
    %c0_40 = arith.constant 0 : index
    %25 = vector.load %arg21[%c0_38, %c0_39, %c5, %c0_40] : memref<1x8x14x8xf32, #tpu.memory_space<vmem>>, vector<1x8x8x8xf32>
    %26 = vector.shape_cast %25 : vector<1x8x8x8xf32> to vector<64x8xf32>
    %c0_41 = arith.constant 0 : index
    %c0_42 = arith.constant 0 : index
    %c6 = arith.constant 6 : index
    %c0_43 = arith.constant 0 : index
    %27 = vector.load %arg21[%c0_41, %c0_42, %c6, %c0_43] : memref<1x8x14x8xf32, #tpu.memory_space<vmem>>, vector<1x8x8x8xf32>
    %28 = vector.shape_cast %27 : vector<1x8x8x8xf32> to vector<64x8xf32>
    %29 = tpu.concatenate %16, %18, %20, %22, %24, %26, %28 in 1 : vector<64x8xf32>, vector<64x8xf32>, vector<64x8xf32>, vector<64x8xf32>, vector<64x8xf32>, vector<64x8xf32>, vector<64x8xf32> -> vector<64x56xf32>
    %c0_44 = arith.constant 0 : index
    %c0_45 = arith.constant 0 : index
    %30 = vector.load %arg4[%c0_44, %c0_45] : memref<56x8xf32, #tpu.memory_space<vmem>>, vector<56x8xf32>
    %cst_46 = arith.constant dense<0.000000e+00> : vector<64x8xf32>
    %31 = tpu.matmul %29, %30, %cst_46 {dimension_numbers = #tpu.dot_dimension_numbers<[1], [0], [0], [1], [0, 0, 1, 1], [], []>} : vector<64x56xf32>, vector<56x8xf32>, vector<64x8xf32> -> vector<64x8xf32>
    %c0_47 = arith.constant 0 : index
    %c0_48 = arith.constant 0 : index
    %32 = vector.load %arg5[%c0_47, %c0_48] : memref<1x8xf32, #tpu.memory_space<vmem>>, vector<1x8xf32>
    %33 = vector.broadcast %32 : vector<1x8xf32> to vector<64x8xf32>
    %34 = arith.addf %31, %33 : vector<64x8xf32>
    %cst_49 = arith.constant 0.000000e+00 : f32
    %35 = vector.broadcast %cst_49 : f32 to vector<64x8xf32>
    %36 = arith.maximumf %34, %35 : vector<64x8xf32>
    %37 = vector.shape_cast %36 : vector<64x8xf32> to vector<1x8x8x8xf32>
    %c0_50 = arith.constant 0 : index
    %c3_51 = arith.constant 3 : index
    %c0_52 = arith.constant 0 : index
    %c0_53 = arith.constant 0 : index
    %38 = vector.load %arg22[%c0_50, %c3_51, %c0_52, %c0_53] : memref<1x14x8x8xf32, #tpu.memory_space<vmem>>, vector<1x8x8x8xf32>
    tpu.vector_store %arg22[%c0_50, %c3_51, %c0_52, %c0_53], %37 {strides = array<i32>} : memref<1x14x8x8xf32, #tpu.memory_space<vmem>>, vector<1x8x8x8xf32>,
    %c0_54 = arith.constant 0 : index
    %c0_55 = arith.constant 0 : index
    %c0_56 = arith.constant 0 : index
    %c0_57 = arith.constant 0 : index
    %39 = vector.load %arg22[%c0_54, %c0_55, %c0_56, %c0_57] : memref<1x14x8x8xf32, #tpu.memory_space<vmem>>, vector<1x8x8x8xf32>
    %40 = vector.shape_cast %39 : vector<1x8x8x8xf32> to vector<64x8xf32>
    %c0_58 = arith.constant 0 : index
    %c1_59 = arith.constant 1 : index
    %c0_60 = arith.constant 0 : index
    %c0_61 = arith.constant 0 : index
    %41 = vector.load %arg22[%c0_58, %c1_59, %c0_60, %c0_61] : memref<1x14x8x8xf32, #tpu.memory_space<vmem>>, vector<1x8x8x8xf32>
    %42 = vector.shape_cast %41 : vector<1x8x8x8xf32> to vector<64x8xf32>
    %c0_62 = arith.constant 0 : index
    %c2_63 = arith.constant 2 : index
    %c0_64 = arith.constant 0 : index
    %c0_65 = arith.constant 0 : index
    %43 = vector.load %arg22[%c0_62, %c2_63, %c0_64, %c0_65] : memref<1x14x8x8xf32, #tpu.memory_space<vmem>>, vector<1x8x8x8xf32>
    %44 = vector.shape_cast %43 : vector<1x8x8x8xf32> to vector<64x8xf32>
    %c0_66 = arith.constant 0 : index
    %c3_67 = arith.constant 3 : index
    %c0_68 = arith.constant 0 : index
    %c0_69 = arith.constant 0 : index
    %45 = vector.load %arg22[%c0_66, %c3_67, %c0_68, %c0_69] : memref<1x14x8x8xf32, #tpu.memory_space<vmem>>, vector<1x8x8x8xf32>
    %46 = vector.shape_cast %45 : vector<1x8x8x8xf32> to vector<64x8xf32>
    %c0_70 = arith.constant 0 : index
    %c4_71 = arith.constant 4 : index
    %c0_72 = arith.constant 0 : index
    %c0_73 = arith.constant 0 : index
    %47 = vector.load %arg22[%c0_70, %c4_71, %c0_72, %c0_73] : memref<1x14x8x8xf32, #tpu.memory_space<vmem>>, vector<1x8x8x8xf32>
    %48 = vector.shape_cast %47 : vector<1x8x8x8xf32> to vector<64x8xf32>
    %c0_74 = arith.constant 0 : index
    %c5_75 = arith.constant 5 : index
    %c0_76 = arith.constant 0 : index
    %c0_77 = arith.constant 0 : index
    %49 = vector.load %arg22[%c0_74, %c5_75, %c0_76, %c0_77] : memref<1x14x8x8xf32, #tpu.memory_space<vmem>>, vector<1x8x8x8xf32>
    %50 = vector.shape_cast %49 : vector<1x8x8x8xf32> to vector<64x8xf32>
    %c0_78 = arith.constant 0 : index
    %c6_79 = arith.constant 6 : index
    %c0_80 = arith.constant 0 : index
    %c0_81 = arith.constant 0 : index
    %51 = vector.load %arg22[%c0_78, %c6_79, %c0_80, %c0_81] : memref<1x14x8x8xf32, #tpu.memory_space<vmem>>, vector<1x8x8x8xf32>
    %52 = vector.shape_cast %51 : vector<1x8x8x8xf32> to vector<64x8xf32>
    %53 = tpu.concatenate %40, %42, %44, %46, %48, %50, %52 in 1 : vector<64x8xf32>, vector<64x8xf32>, vector<64x8xf32>, vector<64x8xf32>, vector<64x8xf32>, vector<64x8xf32>, vector<64x8xf32> -> vector<64x56xf32>
    %c0_82 = arith.constant 0 : index
    %c0_83 = arith.constant 0 : index
    %54 = vector.load %arg6[%c0_82, %c0_83] : memref<56x8xf32, #tpu.memory_space<vmem>>, vector<56x8xf32>
    %cst_84 = arith.constant dense<0.000000e+00> : vector<64x8xf32>
    %55 = tpu.matmul %53, %54, %cst_84 {dimension_numbers = #tpu.dot_dimension_numbers<[1], [0], [0], [1], [0, 0, 1, 1], [], []>} : vector<64x56xf32>, vector<56x8xf32>, vector<64x8xf32> -> vector<64x8xf32>
    %c0_85 = arith.constant 0 : index
    %c0_86 = arith.constant 0 : index
    %56 = vector.load %arg7[%c0_85, %c0_86] : memref<1x8xf32, #tpu.memory_space<vmem>>, vector<1x8xf32>
    %57 = vector.broadcast %56 : vector<1x8xf32> to vector<64x8xf32>
    %58 = arith.addf %55, %57 : vector<64x8xf32>
    %cst_87 = arith.constant 0.000000e+00 : f32
    %59 = vector.broadcast %cst_87 : f32 to vector<64x8xf32>
    %60 = arith.maximumf %58, %59 : vector<64x8xf32>
    %61 = vector.shape_cast %60 : vector<64x8xf32> to vector<1x8x8x8xf32>
    %c0_88 = arith.constant 0 : index
    %c0_89 = arith.constant 0 : index
    %c3_90 = arith.constant 3 : index
    %c0_91 = arith.constant 0 : index
    %62 = vector.load %arg21[%c0_88, %c0_89, %c3_90, %c0_91] : memref<1x8x14x8xf32, #tpu.memory_space<vmem>>, vector<1x8x8x8xf32>
    tpu.vector_store %arg21[%c0_88, %c0_89, %c3_90, %c0_91], %61 {strides = array<i32>} : memref<1x8x14x8xf32, #tpu.memory_space<vmem>>, vector<1x8x8x8xf32>,
    %c0_92 = arith.constant 0 : index
    %c0_93 = arith.constant 0 : index
    %c0_94 = arith.constant 0 : index
    %c0_95 = arith.constant 0 : index
    %63 = vector.load %arg21[%c0_92, %c0_93, %c0_94, %c0_95] : memref<1x8x14x8xf32, #tpu.memory_space<vmem>>, vector<1x8x8x8xf32>
    %64 = vector.shape_cast %63 : vector<1x8x8x8xf32> to vector<64x8xf32>
    %c0_96 = arith.constant 0 : index
    %c0_97 = arith.constant 0 : index
    %c1_98 = arith.constant 1 : index
    %c0_99 = arith.constant 0 : index
    %65 = vector.load %arg21[%c0_96, %c0_97, %c1_98, %c0_99] : memref<1x8x14x8xf32, #tpu.memory_space<vmem>>, vector<1x8x8x8xf32>
    %66 = vector.shape_cast %65 : vector<1x8x8x8xf32> to vector<64x8xf32>
    %c0_100 = arith.constant 0 : index
    %c0_101 = arith.constant 0 : index
    %c2_102 = arith.constant 2 : index
    %c0_103 = arith.constant 0 : index
    %67 = vector.load %arg21[%c0_100, %c0_101, %c2_102, %c0_103] : memref<1x8x14x8xf32, #tpu.memory_space<vmem>>, vector<1x8x8x8xf32>
    %68 = vector.shape_cast %67 : vector<1x8x8x8xf32> to vector<64x8xf32>
    %c0_104 = arith.constant 0 : index
    %c0_105 = arith.constant 0 : index
    %c3_106 = arith.constant 3 : index
    %c0_107 = arith.constant 0 : index
    %69 = vector.load %arg21[%c0_104, %c0_105, %c3_106, %c0_107] : memref<1x8x14x8xf32, #tpu.memory_space<vmem>>, vector<1x8x8x8xf32>
    %70 = vector.shape_cast %69 : vector<1x8x8x8xf32> to vector<64x8xf32>
    %c0_108 = arith.constant 0 : index
    %c0_109 = arith.constant 0 : index
    %c4_110 = arith.constant 4 : index
    %c0_111 = arith.constant 0 : index
    %71 = vector.load %arg21[%c0_108, %c0_109, %c4_110, %c0_111] : memref<1x8x14x8xf32, #tpu.memory_space<vmem>>, vector<1x8x8x8xf32>
    %72 = vector.shape_cast %71 : vector<1x8x8x8xf32> to vector<64x8xf32>
    %c0_112 = arith.constant 0 : index
    %c0_113 = arith.constant 0 : index
    %c5_114 = arith.constant 5 : index
    %c0_115 = arith.constant 0 : index
    %73 = vector.load %arg21[%c0_112, %c0_113, %c5_114, %c0_115] : memref<1x8x14x8xf32, #tpu.memory_space<vmem>>, vector<1x8x8x8xf32>
    %74 = vector.shape_cast %73 : vector<1x8x8x8xf32> to vector<64x8xf32>
    %c0_116 = arith.constant 0 : index
    %c0_117 = arith.constant 0 : index
    %c6_118 = arith.constant 6 : index
    %c0_119 = arith.constant 0 : index
    %75 = vector.load %arg21[%c0_116, %c0_117, %c6_118, %c0_119] : memref<1x8x14x8xf32, #tpu.memory_space<vmem>>, vector<1x8x8x8xf32>
    %76 = vector.shape_cast %75 : vector<1x8x8x8xf32> to vector<64x8xf32>
    %77 = tpu.concatenate %64, %66, %68, %70, %72, %74, %76 in 1 : vector<64x8xf32>, vector<64x8xf32>, vector<64x8xf32>, vector<64x8xf32>, vector<64x8xf32>, vector<64x8xf32>, vector<64x8xf32> -> vector<64x56xf32>
    %c0_120 = arith.constant 0 : index
    %c0_121 = arith.constant 0 : index
    %78 = vector.load %arg8[%c0_120, %c0_121] : memref<56x8xf32, #tpu.memory_space<vmem>>, vector<56x8xf32>
    %cst_122 = arith.constant dense<0.000000e+00> : vector<64x8xf32>
    %79 = tpu.matmul %77, %78, %cst_122 {dimension_numbers = #tpu.dot_dimension_numbers<[1], [0], [0], [1], [0, 0, 1, 1], [], []>} : vector<64x56xf32>, vector<56x8xf32>, vector<64x8xf32> -> vector<64x8xf32>
    %c0_123 = arith.constant 0 : index
    %c0_124 = arith.constant 0 : index
    %80 = vector.load %arg9[%c0_123, %c0_124] : memref<1x8xf32, #tpu.memory_space<vmem>>, vector<1x8xf32>
    %81 = vector.broadcast %80 : vector<1x8xf32> to vector<64x8xf32>
    %82 = arith.addf %79, %81 : vector<64x8xf32>
    %cst_125 = arith.constant 0.000000e+00 : f32
    %83 = vector.broadcast %cst_125 : f32 to vector<64x8xf32>
    %84 = arith.maximumf %82, %83 : vector<64x8xf32>
    %85 = vector.shape_cast %84 : vector<64x8xf32> to vector<1x8x8x8xf32>
    %c0_126 = arith.constant 0 : index
    %c3_127 = arith.constant 3 : index
    %c0_128 = arith.constant 0 : index
    %c0_129 = arith.constant 0 : index
    %86 = vector.load %arg22[%c0_126, %c3_127, %c0_128, %c0_129] : memref<1x14x8x8xf32, #tpu.memory_space<vmem>>, vector<1x8x8x8xf32>
    tpu.vector_store %arg22[%c0_126, %c3_127, %c0_128, %c0_129], %85 {strides = array<i32>} : memref<1x14x8x8xf32, #tpu.memory_space<vmem>>, vector<1x8x8x8xf32>,
    %c0_130 = arith.constant 0 : index
    %c0_131 = arith.constant 0 : index
    %c0_132 = arith.constant 0 : index
    %c0_133 = arith.constant 0 : index
    %87 = vector.load %arg22[%c0_130, %c0_131, %c0_132, %c0_133] : memref<1x14x8x8xf32, #tpu.memory_space<vmem>>, vector<1x8x8x8xf32>
    %88 = vector.shape_cast %87 : vector<1x8x8x8xf32> to vector<64x8xf32>
    %c0_134 = arith.constant 0 : index
    %c1_135 = arith.constant 1 : index
    %c0_136 = arith.constant 0 : index
    %c0_137 = arith.constant 0 : index
    %89 = vector.load %arg22[%c0_134, %c1_135, %c0_136, %c0_137] : memref<1x14x8x8xf32, #tpu.memory_space<vmem>>, vector<1x8x8x8xf32>
    %90 = vector.shape_cast %89 : vector<1x8x8x8xf32> to vector<64x8xf32>
    %c0_138 = arith.constant 0 : index
    %c2_139 = arith.constant 2 : index
    %c0_140 = arith.constant 0 : index
    %c0_141 = arith.constant 0 : index
    %91 = vector.load %arg22[%c0_138, %c2_139, %c0_140, %c0_141] : memref<1x14x8x8xf32, #tpu.memory_space<vmem>>, vector<1x8x8x8xf32>
    %92 = vector.shape_cast %91 : vector<1x8x8x8xf32> to vector<64x8xf32>
    %c0_142 = arith.constant 0 : index
    %c3_143 = arith.constant 3 : index
    %c0_144 = arith.constant 0 : index
    %c0_145 = arith.constant 0 : index
    %93 = vector.load %arg22[%c0_142, %c3_143, %c0_144, %c0_145] : memref<1x14x8x8xf32, #tpu.memory_space<vmem>>, vector<1x8x8x8xf32>
    %94 = vector.shape_cast %93 : vector<1x8x8x8xf32> to vector<64x8xf32>
    %c0_146 = arith.constant 0 : index
    %c4_147 = arith.constant 4 : index
    %c0_148 = arith.constant 0 : index
    %c0_149 = arith.constant 0 : index
    %95 = vector.load %arg22[%c0_146, %c4_147, %c0_148, %c0_149] : memref<1x14x8x8xf32, #tpu.memory_space<vmem>>, vector<1x8x8x8xf32>
    %96 = vector.shape_cast %95 : vector<1x8x8x8xf32> to vector<64x8xf32>
    %c0_150 = arith.constant 0 : index
    %c5_151 = arith.constant 5 : index
    %c0_152 = arith.constant 0 : index
    %c0_153 = arith.constant 0 : index
    %97 = vector.load %arg22[%c0_150, %c5_151, %c0_152, %c0_153] : memref<1x14x8x8xf32, #tpu.memory_space<vmem>>, vector<1x8x8x8xf32>
    %98 = vector.shape_cast %97 : vector<1x8x8x8xf32> to vector<64x8xf32>
    %c0_154 = arith.constant 0 : index
    %c6_155 = arith.constant 6 : index
    %c0_156 = arith.constant 0 : index
    %c0_157 = arith.constant 0 : index
    %99 = vector.load %arg22[%c0_154, %c6_155, %c0_156, %c0_157] : memref<1x14x8x8xf32, #tpu.memory_space<vmem>>, vector<1x8x8x8xf32>
    %100 = vector.shape_cast %99 : vector<1x8x8x8xf32> to vector<64x8xf32>
    %101 = tpu.concatenate %88, %90, %92, %94, %96, %98, %100 in 1 : vector<64x8xf32>, vector<64x8xf32>, vector<64x8xf32>, vector<64x8xf32>, vector<64x8xf32>, vector<64x8xf32>, vector<64x8xf32> -> vector<64x56xf32>
    %c0_158 = arith.constant 0 : index
    %c0_159 = arith.constant 0 : index
    %102 = vector.load %arg10[%c0_158, %c0_159] : memref<56x96xf32, #tpu.memory_space<vmem>>, vector<56x96xf32>
    %cst_160 = arith.constant dense<0.000000e+00> : vector<64x96xf32>
    %103 = tpu.matmul %101, %102, %cst_160 {dimension_numbers = #tpu.dot_dimension_numbers<[1], [0], [0], [1], [0, 0, 1, 1], [], []>} : vector<64x56xf32>, vector<56x96xf32>, vector<64x96xf32> -> vector<64x96xf32>
    %c0_161 = arith.constant 0 : index
    %c0_162 = arith.constant 0 : index
    %104 = vector.load %arg11[%c0_161, %c0_162] : memref<1x96xf32, #tpu.memory_space<vmem>>, vector<1x96xf32>
    %105 = vector.broadcast %104 : vector<1x96xf32> to vector<64x96xf32>
    %106 = arith.addf %103, %105 : vector<64x96xf32>
    %cst_163 = arith.constant 0.000000e+00 : f32
    %107 = vector.broadcast %cst_163 : f32 to vector<64x96xf32>
    %108 = arith.maximumf %106, %107 : vector<64x96xf32>
    %c0_164 = arith.constant 0 : index
    %c0_165 = arith.constant 0 : index
    %109 = vector.load %arg12[%c0_164, %c0_165] : memref<16x8xf32, #tpu.memory_space<vmem>>, vector<16x8xf32>
    %cst_166 = arith.constant dense<0.000000e+00> : vector<64x8xf32>
    %110 = tpu.matmul %5, %109, %cst_166 {dimension_numbers = #tpu.dot_dimension_numbers<[1], [0], [0], [1], [0, 0, 1, 1], [], []>} : vector<64x16xf32>, vector<16x8xf32>, vector<64x8xf32> -> vector<64x8xf32>
    %c0_167 = arith.constant 0 : index
    %c0_168 = arith.constant 0 : index
    %111 = vector.load %arg13[%c0_167, %c0_168] : memref<1x8xf32, #tpu.memory_space<vmem>>, vector<1x8xf32>
    %112 = vector.broadcast %111 : vector<1x8xf32> to vector<64x8xf32>
    %113 = arith.addf %110, %112 : vector<64x8xf32>
    %cst_169 = arith.constant 0.000000e+00 : f32
    %114 = vector.broadcast %cst_169 : f32 to vector<64x8xf32>
    %115 = arith.maximumf %113, %114 : vector<64x8xf32>
    %116 = vector.shape_cast %115 : vector<64x8xf32> to vector<1x8x8x8xf32>
    %c0_170 = arith.constant 0 : index
    %c3_171 = arith.constant 3 : index
    %c0_172 = arith.constant 0 : index
    %c0_173 = arith.constant 0 : index
    %117 = vector.load %arg22[%c0_170, %c3_171, %c0_172, %c0_173] : memref<1x14x8x8xf32, #tpu.memory_space<vmem>>, vector<1x8x8x8xf32>
    tpu.vector_store %arg22[%c0_170, %c3_171, %c0_172, %c0_173], %116 {strides = array<i32>} : memref<1x14x8x8xf32, #tpu.memory_space<vmem>>, vector<1x8x8x8xf32>,
    %c0_174 = arith.constant 0 : index
    %c0_175 = arith.constant 0 : index
    %c0_176 = arith.constant 0 : index
    %c0_177 = arith.constant 0 : index
    %118 = vector.load %arg22[%c0_174, %c0_175, %c0_176, %c0_177] : memref<1x14x8x8xf32, #tpu.memory_space<vmem>>, vector<1x8x8x8xf32>
    %119 = vector.shape_cast %118 : vector<1x8x8x8xf32> to vector<64x8xf32>
    %c0_178 = arith.constant 0 : index
    %c1_179 = arith.constant 1 : index
    %c0_180 = arith.constant 0 : index
    %c0_181 = arith.constant 0 : index
    %120 = vector.load %arg22[%c0_178, %c1_179, %c0_180, %c0_181] : memref<1x14x8x8xf32, #tpu.memory_space<vmem>>, vector<1x8x8x8xf32>
    %121 = vector.shape_cast %120 : vector<1x8x8x8xf32> to vector<64x8xf32>
    %c0_182 = arith.constant 0 : index
    %c2_183 = arith.constant 2 : index
    %c0_184 = arith.constant 0 : index
    %c0_185 = arith.constant 0 : index
    %122 = vector.load %arg22[%c0_182, %c2_183, %c0_184, %c0_185] : memref<1x14x8x8xf32, #tpu.memory_space<vmem>>, vector<1x8x8x8xf32>
    %123 = vector.shape_cast %122 : vector<1x8x8x8xf32> to vector<64x8xf32>
    %c0_186 = arith.constant 0 : index
    %c3_187 = arith.constant 3 : index
    %c0_188 = arith.constant 0 : index
    %c0_189 = arith.constant 0 : index
    %124 = vector.load %arg22[%c0_186, %c3_187, %c0_188, %c0_189] : memref<1x14x8x8xf32, #tpu.memory_space<vmem>>, vector<1x8x8x8xf32>
    %125 = vector.shape_cast %124 : vector<1x8x8x8xf32> to vector<64x8xf32>
    %c0_190 = arith.constant 0 : index
    %c4_191 = arith.constant 4 : index
    %c0_192 = arith.constant 0 : index
    %c0_193 = arith.constant 0 : index
    %126 = vector.load %arg22[%c0_190, %c4_191, %c0_192, %c0_193] : memref<1x14x8x8xf32, #tpu.memory_space<vmem>>, vector<1x8x8x8xf32>
    %127 = vector.shape_cast %126 : vector<1x8x8x8xf32> to vector<64x8xf32>
    %c0_194 = arith.constant 0 : index
    %c5_195 = arith.constant 5 : index
    %c0_196 = arith.constant 0 : index
    %c0_197 = arith.constant 0 : index
    %128 = vector.load %arg22[%c0_194, %c5_195, %c0_196, %c0_197] : memref<1x14x8x8xf32, #tpu.memory_space<vmem>>, vector<1x8x8x8xf32>
    %129 = vector.shape_cast %128 : vector<1x8x8x8xf32> to vector<64x8xf32>
    %c0_198 = arith.constant 0 : index
    %c6_199 = arith.constant 6 : index
    %c0_200 = arith.constant 0 : index
    %c0_201 = arith.constant 0 : index
    %130 = vector.load %arg22[%c0_198, %c6_199, %c0_200, %c0_201] : memref<1x14x8x8xf32, #tpu.memory_space<vmem>>, vector<1x8x8x8xf32>
    %131 = vector.shape_cast %130 : vector<1x8x8x8xf32> to vector<64x8xf32>
    %132 = tpu.concatenate %119, %121, %123, %125, %127, %129, %131 in 1 : vector<64x8xf32>, vector<64x8xf32>, vector<64x8xf32>, vector<64x8xf32>, vector<64x8xf32>, vector<64x8xf32>, vector<64x8xf32> -> vector<64x56xf32>
    %c0_202 = arith.constant 0 : index
    %c0_203 = arith.constant 0 : index
    %133 = vector.load %arg14[%c0_202, %c0_203] : memref<56x96xf32, #tpu.memory_space<vmem>>, vector<56x96xf32>
    %cst_204 = arith.constant dense<0.000000e+00> : vector<64x96xf32>
    %134 = tpu.matmul %132, %133, %cst_204 {dimension_numbers = #tpu.dot_dimension_numbers<[1], [0], [0], [1], [0, 0, 1, 1], [], []>} : vector<64x56xf32>, vector<56x96xf32>, vector<64x96xf32> -> vector<64x96xf32>
    %c0_205 = arith.constant 0 : index
    %c0_206 = arith.constant 0 : index
    %135 = vector.load %arg15[%c0_205, %c0_206] : memref<1x96xf32, #tpu.memory_space<vmem>>, vector<1x96xf32>
    %136 = vector.broadcast %135 : vector<1x96xf32> to vector<64x96xf32>
    %137 = arith.addf %134, %136 : vector<64x96xf32>
    %cst_207 = arith.constant 0.000000e+00 : f32
    %138 = vector.broadcast %cst_207 : f32 to vector<64x96xf32>
    %139 = arith.maximumf %137, %138 : vector<64x96xf32>
    %cst_208 = arith.constant 0xFF800000 : f32
    %140 = vector.broadcast %cst_208 : f32 to vector<1x10x10x16xf32>
    %c0_209 = arith.constant 0 : index
    %c0_210 = arith.constant 0 : index
    %c0_211 = arith.constant 0 : index
    %c0_212 = arith.constant 0 : index
    %141 = vector.load %arg23[%c0_209, %c0_210, %c0_211, %c0_212] : memref<1x10x10x16xf32, #tpu.memory_space<vmem>>, vector<1x10x10x16xf32>
    tpu.vector_store %arg23[%c0_209, %c0_210, %c0_211, %c0_212], %140 {strides = array<i32>} : memref<1x10x10x16xf32, #tpu.memory_space<vmem>>, vector<1x10x10x16xf32>,
    %c0_213 = arith.constant 0 : index
    %c1_214 = arith.constant 1 : index
    %c1_215 = arith.constant 1 : index
    %c0_216 = arith.constant 0 : index
    %142 = vector.load %arg23[%c0_213, %c1_214, %c1_215, %c0_216] : memref<1x10x10x16xf32, #tpu.memory_space<vmem>>, vector<1x8x8x16xf32>
    tpu.vector_store %arg23[%c0_213, %c1_214, %c1_215, %c0_216], %4 {strides = array<i32>} : memref<1x10x10x16xf32, #tpu.memory_space<vmem>>, vector<1x8x8x16xf32>,
    %c0_217 = arith.constant 0 : index
    %c0_218 = arith.constant 0 : index
    %c0_219 = arith.constant 0 : index
    %c0_220 = arith.constant 0 : index
    %143 = vector.load %arg23[%c0_217, %c0_218, %c0_219, %c0_220] : memref<1x10x10x16xf32, #tpu.memory_space<vmem>>, vector<1x8x8x16xf32>
    %c0_221 = arith.constant 0 : index
    %c0_222 = arith.constant 0 : index
    %c1_223 = arith.constant 1 : index
    %c0_224 = arith.constant 0 : index
    %144 = vector.load %arg23[%c0_221, %c0_222, %c1_223, %c0_224] : memref<1x10x10x16xf32, #tpu.memory_space<vmem>>, vector<1x8x8x16xf32>
    %145 = arith.maximumf %143, %144 : vector<1x8x8x16xf32>
    %c0_225 = arith.constant 0 : index
    %c0_226 = arith.constant 0 : index
    %c2_227 = arith.constant 2 : index
    %c0_228 = arith.constant 0 : index
    %146 = vector.load %arg23[%c0_225, %c0_226, %c2_227, %c0_228] : memref<1x10x10x16xf32, #tpu.memory_space<vmem>>, vector<1x8x8x16xf32>
    %147 = arith.maximumf %145, %146 : vector<1x8x8x16xf32>
    %c0_229 = arith.constant 0 : index
    %c1_230 = arith.constant 1 : index
    %c0_231 = arith.constant 0 : index
    %c0_232 = arith.constant 0 : index
    %148 = vector.load %arg23[%c0_229, %c1_230, %c0_231, %c0_232] : memref<1x10x10x16xf32, #tpu.memory_space<vmem>>, vector<1x8x8x16xf32>
    %149 = arith.maximumf %147, %148 : vector<1x8x8x16xf32>
    %c0_233 = arith.constant 0 : index
    %c1_234 = arith.constant 1 : index
    %c1_235 = arith.constant 1 : index
    %c0_236 = arith.constant 0 : index
    %150 = vector.load %arg23[%c0_233, %c1_234, %c1_235, %c0_236] : memref<1x10x10x16xf32, #tpu.memory_space<vmem>>, vector<1x8x8x16xf32>
    %151 = arith.maximumf %149, %150 : vector<1x8x8x16xf32>
    %c0_237 = arith.constant 0 : index
    %c1_238 = arith.constant 1 : index
    %c2_239 = arith.constant 2 : index
    %c0_240 = arith.constant 0 : index
    %152 = vector.load %arg23[%c0_237, %c1_238, %c2_239, %c0_240] : memref<1x10x10x16xf32, #tpu.memory_space<vmem>>, vector<1x8x8x16xf32>
    %153 = arith.maximumf %151, %152 : vector<1x8x8x16xf32>
    %c0_241 = arith.constant 0 : index
    %c2_242 = arith.constant 2 : index
    %c0_243 = arith.constant 0 : index
    %c0_244 = arith.constant 0 : index
    %154 = vector.load %arg23[%c0_241, %c2_242, %c0_243, %c0_244] : memref<1x10x10x16xf32, #tpu.memory_space<vmem>>, vector<1x8x8x16xf32>
    %155 = arith.maximumf %153, %154 : vector<1x8x8x16xf32>
    %c0_245 = arith.constant 0 : index
    %c2_246 = arith.constant 2 : index
    %c1_247 = arith.constant 1 : index
    %c0_248 = arith.constant 0 : index
    %156 = vector.load %arg23[%c0_245, %c2_246, %c1_247, %c0_248] : memref<1x10x10x16xf32, #tpu.memory_space<vmem>>, vector<1x8x8x16xf32>
    %157 = arith.maximumf %155, %156 : vector<1x8x8x16xf32>
    %c0_249 = arith.constant 0 : index
    %c2_250 = arith.constant 2 : index
    %c2_251 = arith.constant 2 : index
    %c0_252 = arith.constant 0 : index
    %158 = vector.load %arg23[%c0_249, %c2_250, %c2_251, %c0_252] : memref<1x10x10x16xf32, #tpu.memory_space<vmem>>, vector<1x8x8x16xf32>
    %159 = arith.maximumf %157, %158 : vector<1x8x8x16xf32>
    %160 = vector.shape_cast %159 : vector<1x8x8x16xf32> to vector<64x16xf32>
    %c0_253 = arith.constant 0 : index
    %c0_254 = arith.constant 0 : index
    %161 = vector.load %arg16[%c0_253, %c0_254] : memref<16x96xf32, #tpu.memory_space<vmem>>, vector<16x96xf32>
    %cst_255 = arith.constant dense<0.000000e+00> : vector<64x96xf32>
    %162 = tpu.matmul %160, %161, %cst_255 {dimension_numbers = #tpu.dot_dimension_numbers<[1], [0], [0], [1], [0, 0, 1, 1], [], []>} : vector<64x16xf32>, vector<16x96xf32>, vector<64x96xf32> -> vector<64x96xf32>
    %c0_256 = arith.constant 0 : index
    %c0_257 = arith.constant 0 : index
    %163 = vector.load %arg17[%c0_256, %c0_257] : memref<1x96xf32, #tpu.memory_space<vmem>>, vector<1x96xf32>
    %164 = vector.broadcast %163 : vector<1x96xf32> to vector<64x96xf32>
    %165 = arith.addf %162, %164 : vector<64x96xf32>
    %cst_258 = arith.constant 0.000000e+00 : f32
    %166 = vector.broadcast %cst_258 : f32 to vector<64x96xf32>
    %167 = arith.maximumf %165, %166 : vector<64x96xf32>
    %c0_259 = arith.constant 0 : index
    %c0_260 = arith.constant 0 : index
    %168 = vector.load %arg18[%c0_259, %c0_260] : memref<16x96xf32, #tpu.memory_space<vmem>>, vector<16x96xf32>
    %cst_261 = arith.constant dense<0.000000e+00> : vector<64x96xf32>
    %169 = tpu.matmul %5, %168, %cst_261 {dimension_numbers = #tpu.dot_dimension_numbers<[1], [0], [0], [1], [0, 0, 1, 1], [], []>} : vector<64x16xf32>, vector<16x96xf32>, vector<64x96xf32> -> vector<64x96xf32>
    %c0_262 = arith.constant 0 : index
    %c0_263 = arith.constant 0 : index
    %170 = vector.load %arg19[%c0_262, %c0_263] : memref<1x96xf32, #tpu.memory_space<vmem>>, vector<1x96xf32>
    %171 = vector.broadcast %170 : vector<1x96xf32> to vector<64x96xf32>
    %172 = arith.addf %169, %171 : vector<64x96xf32>
    %cst_264 = arith.constant 0.000000e+00 : f32
    %173 = vector.broadcast %cst_264 : f32 to vector<64x96xf32>
    %174 = arith.maximumf %172, %173 : vector<64x96xf32>
    %175 = tpu.concatenate %108, %139, %167, %174 in 1 : vector<64x96xf32>, vector<64x96xf32>, vector<64x96xf32>, vector<64x96xf32> -> vector<64x384xf32>
    %176 = vector.shape_cast %175 : vector<64x384xf32> to vector<1x8x8x384xf32>
    %c0_265 = arith.constant 0 : index
    %c0_266 = arith.constant 0 : index
    %c0_267 = arith.constant 0 : index
    %c0_268 = arith.constant 0 : index
    %177 = vector.load %arg20[%c0_265, %c0_266, %c0_267, %c0_268] : memref<1x8x8x384xf32, #tpu.memory_space<vmem>>, vector<1x8x8x384xf32>
    tpu.vector_store %arg20[%c0_265, %c0_266, %c0_267, %c0_268], %176 {strides = array<i32>} : memref<1x8x8x384xf32, #tpu.memory_space<vmem>>, vector<1x8x8x384xf32>,
    return
  }
  func.func @transform_0(%arg0: i32) -> (i32, i32, i32, i32) {
    %c0_i32 = arith.constant 0 : i32
    %c0_i32_0 = arith.constant 0 : i32
    %c0_i32_1 = arith.constant 0 : i32
    %c0_i32_2 = arith.constant 0 : i32
    return %arg0, %c0_i32, %c0_i32_0, %c0_i32_1 : i32, i32, i32, i32
  }
  func.func @transform_1(%arg0: i32) -> (i32, i32) {
    %c0_i32 = arith.constant 0 : i32
    %c0_i32_0 = arith.constant 0 : i32
    %c0_i32_1 = arith.constant 0 : i32
    return %c0_i32, %c0_i32_0 : i32, i32
  }
  func.func @transform_2(%arg0: i32) -> (i32, i32) {
    %c0_i32 = arith.constant 0 : i32
    %c0_i32_0 = arith.constant 0 : i32
    %c0_i32_1 = arith.constant 0 : i32
    return %c0_i32, %c0_i32_0 : i32, i32
  }
  func.func @transform_3(%arg0: i32) -> (i32, i32) {
    %c0_i32 = arith.constant 0 : i32
    %c0_i32_0 = arith.constant 0 : i32
    %c0_i32_1 = arith.constant 0 : i32
    return %c0_i32, %c0_i32_0 : i32, i32
  }
  func.func @transform_4(%arg0: i32) -> (i32, i32) {
    %c0_i32 = arith.constant 0 : i32
    %c0_i32_0 = arith.constant 0 : i32
    %c0_i32_1 = arith.constant 0 : i32
    return %c0_i32, %c0_i32_0 : i32, i32
  }
  func.func @transform_5(%arg0: i32) -> (i32, i32) {
    %c0_i32 = arith.constant 0 : i32
    %c0_i32_0 = arith.constant 0 : i32
    %c0_i32_1 = arith.constant 0 : i32
    return %c0_i32, %c0_i32_0 : i32, i32
  }
  func.func @transform_6(%arg0: i32) -> (i32, i32) {
    %c0_i32 = arith.constant 0 : i32
    %c0_i32_0 = arith.constant 0 : i32
    %c0_i32_1 = arith.constant 0 : i32
    return %c0_i32, %c0_i32_0 : i32, i32
  }
  func.func @transform_7(%arg0: i32) -> (i32, i32) {
    %c0_i32 = arith.constant 0 : i32
    %c0_i32_0 = arith.constant 0 : i32
    %c0_i32_1 = arith.constant 0 : i32
    return %c0_i32, %c0_i32_0 : i32, i32
  }
  func.func @transform_8(%arg0: i32) -> (i32, i32) {
    %c0_i32 = arith.constant 0 : i32
    %c0_i32_0 = arith.constant 0 : i32
    %c0_i32_1 = arith.constant 0 : i32
    return %c0_i32, %c0_i32_0 : i32, i32
  }
  func.func @transform_9(%arg0: i32) -> (i32, i32) {
    %c0_i32 = arith.constant 0 : i32
    %c0_i32_0 = arith.constant 0 : i32
    %c0_i32_1 = arith.constant 0 : i32
    return %c0_i32, %c0_i32_0 : i32, i32
  }
  func.func @transform_10(%arg0: i32) -> (i32, i32) {
    %c0_i32 = arith.constant 0 : i32
    %c0_i32_0 = arith.constant 0 : i32
    %c0_i32_1 = arith.constant 0 : i32
    return %c0_i32, %c0_i32_0 : i32, i32
  }
  func.func @transform_11(%arg0: i32) -> (i32, i32) {
    %c0_i32 = arith.constant 0 : i32
    %c0_i32_0 = arith.constant 0 : i32
    %c0_i32_1 = arith.constant 0 : i32
    return %c0_i32, %c0_i32_0 : i32, i32
  }
  func.func @transform_12(%arg0: i32) -> (i32, i32) {
    %c0_i32 = arith.constant 0 : i32
    %c0_i32_0 = arith.constant 0 : i32
    %c0_i32_1 = arith.constant 0 : i32
    return %c0_i32, %c0_i32_0 : i32, i32
  }
  func.func @transform_13(%arg0: i32) -> (i32, i32) {
    %c0_i32 = arith.constant 0 : i32
    %c0_i32_0 = arith.constant 0 : i32
    %c0_i32_1 = arith.constant 0 : i32
    return %c0_i32, %c0_i32_0 : i32, i32
  }
  func.func @transform_14(%arg0: i32) -> (i32, i32) {
    %c0_i32 = arith.constant 0 : i32
    %c0_i32_0 = arith.constant 0 : i32
    %c0_i32_1 = arith.constant 0 : i32
    return %c0_i32, %c0_i32_0 : i32, i32
  }
  func.func @transform_15(%arg0: i32) -> (i32, i32) {
    %c0_i32 = arith.constant 0 : i32
    %c0_i32_0 = arith.constant 0 : i32
    %c0_i32_1 = arith.constant 0 : i32
    return %c0_i32, %c0_i32_0 : i32, i32
  }
  func.func @transform_16(%arg0: i32) -> (i32, i32) {
    %c0_i32 = arith.constant 0 : i32
    %c0_i32_0 = arith.constant 0 : i32
    %c0_i32_1 = arith.constant 0 : i32
    return %c0_i32, %c0_i32_0 : i32, i32
  }
  func.func @transform_17(%arg0: i32) -> (i32, i32) {
    %c0_i32 = arith.constant 0 : i32
    %c0_i32_0 = arith.constant 0 : i32
    %c0_i32_1 = arith.constant 0 : i32
    return %c0_i32, %c0_i32_0 : i32, i32
  }
  func.func @transform_18(%arg0: i32) -> (i32, i32) {
    %c0_i32 = arith.constant 0 : i32
    %c0_i32_0 = arith.constant 0 : i32
    %c0_i32_1 = arith.constant 0 : i32
    return %c0_i32, %c0_i32_0 : i32, i32
  }
  func.func @transform_19(%arg0: i32) -> (i32, i32, i32, i32) {
    %c0_i32 = arith.constant 0 : i32
    %c0_i32_0 = arith.constant 0 : i32
    %c0_i32_1 = arith.constant 0 : i32
    %c0_i32_2 = arith.constant 0 : i32
    return %arg0, %c0_i32, %c0_i32_0, %c0_i32_1 : i32, i32, i32, i32
  }
}

</mosaic_0001>

<llo_original>
// kernel: inception_b_forward.1
$region0: #{inception_b_forward.1}
  #allocation0 [shape = 'u32[]', space=smem, size = 0x4, offset = 0x4, fixed_abs, tag = 'smem constant byte address 0x4 - core index']
  #allocation1 [shape = 'u32[144,128]{1,0:T(1,128)}', space=vmem, size = 0x12000, scoped, tag = 'internal scratch']
  #allocation2 [shape = 'f32[1,8,14,8]{3,2,1,0:T(8,128)}', space=vmem, size = 0x10000, scoped, tag = 'scratch operand']
  #allocation3 [shape = 'f32[1,14,8,8]{3,2,1,0:T(8,128)}', space=vmem, size = 0xe000, scoped, tag = 'scratch operand']
  #allocation4 [shape = 'f32[1,10,10,16]{3,2,1,0:T(8,128)}', space=vmem, size = 0x14000, scoped, tag = 'scratch operand']
  %s0 = inlined_call_operand.hbm [shape: f32[2,8,8,16], index: 0, kind: input, shape index: {}]
  %s1 = inlined_call_operand.hbm [shape: f32[16,8], index: 1, kind: input, shape index: {}]
  %s2 = inlined_call_operand.hbm [shape: f32[1,8], index: 2, kind: input, shape index: {}]
  %s3 = inlined_call_operand.hbm [shape: f32[56,8], index: 3, kind: input, shape index: {}]
  %s4 = inlined_call_operand.hbm [shape: f32[1,8], index: 4, kind: input, shape index: {}]
  %s5 = inlined_call_operand.hbm [shape: f32[56,8], index: 5, kind: input, shape index: {}]
  %s6 = inlined_call_operand.hbm [shape: f32[1,8], index: 6, kind: input, shape index: {}]
  %s7 = inlined_call_operand.hbm [shape: f32[56,8], index: 7, kind: input, shape index: {}]
  %s8 = inlined_call_operand.hbm [shape: f32[1,8], index: 8, kind: input, shape index: {}]
  %s9 = inlined_call_operand.hbm [shape: f32[56,96], index: 9, kind: input, shape index: {}]
  %s10 = inlined_call_operand.vmem [shape: f32[1,96], index: 10, kind: input, shape index: {}]
  %s11 = inlined_call_operand.hbm [shape: f32[16,8], index: 11, kind: input, shape index: {}]
  %s12 = inlined_call_operand.vmem [shape: f32[1,8], index: 12, kind: input, shape index: {}]
  %s13 = inlined_call_operand.hbm [shape: f32[56,96], index: 13, kind: input, shape index: {}]
  %s14 = inlined_call_operand.vmem [shape: f32[1,96], index: 14, kind: input, shape index: {}]
  %s15 = inlined_call_operand.vmem [shape: f32[16,96], index: 15, kind: input, shape index: {}]
  %s16 = inlined_call_operand.vmem [shape: f32[1,96], index: 16, kind: input, shape index: {}]
  %s17 = inlined_call_operand.vmem [shape: f32[16,96], index: 17, kind: input, shape index: {}]
  %s18 = inlined_call_operand.vmem [shape: f32[1,96], index: 18, kind: input, shape index: {}]
  %s19 = inlined_call_operand.hbm [shape: f32[2,8,8,384], index: 19, kind: output, shape index: {}]
  %s20 = sld [smem:[#allocation0]]
  $region157: #{inception_b_forward.1} parent=0
    _
  %s22 = ssub.s32 1, %s20
  %s23 = scalar_select 0, %s22, %s20
  $region1: #{inception_b_forward.1} parent=0
    #allocation5 [shape = 'u8[65536]{0}', space=vmem, size = 0x10000, scoped, tag = 'input window, operand 0']
    #allocation6 [shape = 's32[2]{0}', space=sflag, size = 0x8, scoped, tag = 'scoped memory for inception_b_forward.1']
    #allocation7 [shape = 's32[2]{0}', space=sflag, size = 0x8, scoped, tag = 'scoped memory for inception_b_forward.1']
    #allocation8 [shape = 'u8[8192]{0}', space=vmem, size = 0x2000, scoped, tag = 'input window, operand 1, single buffered']
    #allocation9 [shape = 's32[1]{0}', space=sflag, size = 0x4, scoped, tag = 'scoped memory for inception_b_forward.1']
    #allocation10 [shape = 'u8[512]{0}', space=vmem, size = 0x400, scoped, tag = 'input window, operand 2, single buffered']
    #allocation11 [shape = 'u8[28672]{0}', space=vmem, size = 0x7000, scoped, tag = 'input window, operand 3, single buffered']
    #allocation12 [shape = 's32[1]{0}', space=sflag, size = 0x4, scoped, tag = 'scoped memory for inception_b_forward.1']
    #allocation13 [shape = 'u8[512]{0}', space=vmem, size = 0x400, scoped, tag = 'input window, operand 4, single buffered']
    #allocation14 [shape = 'u8[28672]{0}', space=vmem, size = 0x7000, scoped, tag = 'input window, operand 5, single buffered']
    #allocation15 [shape = 's32[1]{0}', space=sflag, size = 0x4, scoped, tag = 'scoped memory for inception_b_forward.1']
    #allocation16 [shape = 'u8[512]{0}', space=vmem, size = 0x400, scoped, tag = 'input window, operand 6, single buffered']
    #allocation17 [shape = 'u8[28672]{0}', space=vmem, size = 0x7000, scoped, tag = 'input window, operand 7, single buffered']
    #allocation18 [shape = 's32[1]{0}', space=sflag, size = 0x4, scoped, tag = 'scoped memory for inception_b_forward.1']
    #allocation19 [shape = 'u8[512]{0}', space=vmem, size = 0x400, scoped, tag = 'input window, operand 8, single buffered']
    #allocation20 [shape = 'u8[28672]{0}', space=vmem, size = 0x7000, scoped, tag = 'input window, operand 9, single buffered']
    #allocation21 [shape = 's32[1]{0}', space=sflag, size = 0x4, scoped, tag = 'scoped memory for inception_b_forward.1']
    #allocation22 [shape = 'u8[8192]{0}', space=vmem, size = 0x2000, scoped, tag = 'input window, operand 11, single buffered']
    #allocation23 [shape = 'u8[28672]{0}', space=vmem, size = 0x7000, scoped, tag = 'input window, operand 13, single buffered']
    #allocation24 [shape = 's32[1]{0}', space=sflag, size = 0x4, scoped, tag = 'scoped memory for inception_b_forward.1']
    #allocation25 [shape = 'u8[196608]{0}', space=vmem, size = 0x30000, scoped, tag = 'output window, operand 0']
    %24 = vsyncpa [#allocation6], 0
    %s25 = scalar_lea.sflag [#allocation6], 1
    %26 = vsyncpa %s25, 0
    %27 = vsyncpa [#allocation9], 0
    %28 = vsyncpa [#allocation12], 0
    %29 = vsyncpa [#allocation15], 0
    %30 = vsyncpa [#allocation18], 0
    %31 = vsyncpa [#allocation21], 0
    %32 = vsyncpa [#allocation24], 0
    %33 = vsyncpa [#allocation7], 0
    %s34 = scalar_lea.sflag [#allocation7], 1
    %35 = vsyncpa %s34, 0
    loop: start=0, step=1, limit=4
    $region2: #{inception_b_forward.1} parent=1 // loop_pre_header
      _
    $region3: #{inception_b_forward.1} parent=1 // loop_header
      %s37 = sphi 0, %s41
      %p38 = scmp.ge.s32.totalorder %s37, 4
      %s47 = sphi 0, %s49
      %s50 = sphi 0, %s47
      %s51 = sphi 0, %s50
      %s67 = sphi 0, %s51
      %s71 = sphi 0, %s71
      %s73 = sphi 0, %s71
      %s74 = sphi 0, %s73
      %s88 = sphi 0, %s74
      %s92 = sphi 0, %s92
      %s94 = sphi 0, %s92
      %s95 = sphi 0, %s94
      %s109 = sphi 0, %s95
      %s113 = sphi 0, %s113
      %s115 = sphi 0, %s113
      %s116 = sphi 0, %s115
      %s130 = sphi 0, %s116
      %s134 = sphi 0, %s134
      %s136 = sphi 0, %s134
      %s137 = sphi 0, %s136
      %s151 = sphi 0, %s137
      %s155 = sphi 0, %s155
      %s157 = sphi 0, %s155
      %s158 = sphi 0, %s157
      %s172 = sphi 0, %s158
      %s176 = sphi 0, %s176
      %s178 = sphi 0, %s176
      %s179 = sphi 0, %s178
      %s193 = sphi 0, %s179
      %s197 = sphi 0, %s197
      %s199 = sphi 0, %s197
      %s200 = sphi 0, %s199
      %s214 = sphi 0, %s200
      %s218 = sphi 0, %s218
      %s220 = sphi 0, %s218
      %s221 = sphi 0, %s220
      %s235 = sphi 0, %s221
      %s239 = sphi 0, %s239
      %s241 = sphi 0, %s239
      %s242 = sphi 0, %s241
      %s256 = sphi 0, %s242
      %s260 = sphi 0, %s260
      %s262 = sphi 0, %s260
      %s263 = sphi 0, %s262
      %s277 = sphi 0, %s263
      %s281 = sphi 0, %s281
      %s283 = sphi 0, %s281
      %s284 = sphi 0, %s283
      %s298 = sphi 0, %s284
      %s302 = sphi 0, %s302
      %s304 = sphi 0, %s302
      %s305 = sphi 0, %s304
      %s319 = sphi 0, %s305
      %s323 = sphi 0, %s323
      %s325 = sphi 0, %s323
      %s326 = sphi 0, %s325
      %s340 = sphi 0, %s326
      %s344 = sphi 0, %s344
      %s346 = sphi 0, %s344
      %s347 = sphi 0, %s346
      %s361 = sphi 0, %s347
      %s365 = sphi 0, %s365
      %s367 = sphi 0, %s365
      %s368 = sphi 0, %s367
      %s382 = sphi 0, %s368
      %s386 = sphi 0, %s386
      %s388 = sphi 0, %s386
      %s389 = sphi 0, %s388
      %s403 = sphi 0, %s389
      %s407 = sphi 0, %s407
      %s409 = sphi 0, %s407
      %s410 = sphi 0, %s409
      %s424 = sphi 0, %s410
      %s428 = sphi 0, %s428
      %s430 = sphi 0, %s428
      %s431 = sphi 0, %s430
      %s445 = sphi 0, %s431
      %s451 = sphi 0, %s453
      %s454 = sphi 0, %s451
      %s455 = sphi 0, %s454
      %s471 = sphi 0, %s455
    $region4: #{inception_b_forward.1} parent=1 // loop_header_branch
      %40 = sbr.rel (%p38) target = $region8
    $region5: #{inception_b_forward.1} parent=1 // loop_body
      %s42 = ssub.s32 %s37, 1
      %s43 = ssub.s32 %s37, 2
      %s44 = sadd.s32 %s37, 1
      %s45 = ssub.s32 %s37, %s44
      %p46 = scmp.eq.s32.totalorder %s45, 0
      %s48 = sadd.s32 %s47, 1
      %s49 = scalar_select %p46, %s47, %s48
      %p52 = pneg %p46
      %p53 = scmp.eq.s32.totalorder %s37, 1
      %p54 = por %p52, %p53
      %p55 = scmp.ne.s32.totalorder %s47, %s50
      %p56 = scmp.eq.s32.totalorder %s37, 0
      %p57 = por %p55, %p56
      %p58 = scmp.ne.s32.totalorder %s47, %s50
      %p59 = scmp.eq.s32.totalorder %s42, 1
      %p60 = por %p58, %p59
      %p61 = scmp.ne.s32.totalorder %s50, %s51
      %p62 = scmp.eq.s32.totalorder %s42, 0
      %p63 = por %p61, %p62
      %p64 = scmp.ne.s32.totalorder %s50, %s51
      %p65 = scmp.eq.s32.totalorder %s43, 1
      %p66 = por %p64, %p65
      %p68 = scmp.ne.s32.totalorder %s51, %s67
      %p69 = scmp.eq.s32.totalorder %s43, 0
      %p70 = por %p68, %p69
      %s72 = sadd.s32 %s71, 1
      %p75 = scmp.eq.s32.totalorder %s37, 1
      %p76 = scmp.ne.s32.totalorder %s71, %s73
      %p77 = scmp.eq.s32.totalorder %s37, 0
      %p78 = por %p76, %p77
      %p79 = scmp.ne.s32.totalorder %s71, %s73
      %p80 = scmp.eq.s32.totalorder %s42, 1
      %p81 = por %p79, %p80
      %p82 = scmp.ne.s32.totalorder %s73, %s74
      %p83 = scmp.eq.s32.totalorder %s42, 0
      %p84 = por %p82, %p83
      %p85 = scmp.ne.s32.totalorder %s73, %s74
      %p86 = scmp.eq.s32.totalorder %s43, 1
      %p87 = por %p85, %p86
      %p89 = scmp.ne.s32.totalorder %s74, %s88
      %p90 = scmp.eq.s32.totalorder %s43, 0
      %p91 = por %p89, %p90
      %s93 = sadd.s32 %s92, 1
      %p96 = scmp.eq.s32.totalorder %s37, 1
      %p97 = scmp.ne.s32.totalorder %s92, %s94
      %p98 = scmp.eq.s32.totalorder %s37, 0
      %p99 = por %p97, %p98
      %p100 = scmp.ne.s32.totalorder %s92, %s94
      %p101 = scmp.eq.s32.totalorder %s42, 1
      %p102 = por %p100, %p101
      %p103 = scmp.ne.s32.totalorder %s94, %s95
      %p104 = scmp.eq.s32.totalorder %s42, 0
      %p105 = por %p103, %p104
      %p106 = scmp.ne.s32.totalorder %s94, %s95
      %p107 = scmp.eq.s32.totalorder %s43, 1
      %p108 = por %p106, %p107
      %p110 = scmp.ne.s32.totalorder %s95, %s109
      %p111 = scmp.eq.s32.totalorder %s43, 0
      %p112 = por %p110, %p111
      %s114 = sadd.s32 %s113, 1
      %p117 = scmp.eq.s32.totalorder %s37, 1
      %p118 = scmp.ne.s32.totalorder %s113, %s115
      %p119 = scmp.eq.s32.totalorder %s37, 0
      %p120 = por %p118, %p119
      %p121 = scmp.ne.s32.totalorder %s113, %s115
      %p122 = scmp.eq.s32.totalorder %s42, 1
      %p123 = por %p121, %p122
      %p124 = scmp.ne.s32.totalorder %s115, %s116
      %p125 = scmp.eq.s32.totalorder %s42, 0
      %p126 = por %p124, %p125
      %p127 = scmp.ne.s32.totalorder %s115, %s116
      %p128 = scmp.eq.s32.totalorder %s43, 1
      %p129 = por %p127, %p128
      %p131 = scmp.ne.s32.totalorder %s116, %s130
      %p132 = scmp.eq.s32.totalorder %s43, 0
      %p133 = por %p131, %p132
      %s135 = sadd.s32 %s134, 1
      %p138 = scmp.eq.s32.totalorder %s37, 1
      %p139 = scmp.ne.s32.totalorder %s134, %s136
      %p140 = scmp.eq.s32.totalorder %s37, 0
      %p141 = por %p139, %p140
      %p142 = scmp.ne.s32.totalorder %s134, %s136
      %p143 = scmp.eq.s32.totalorder %s42, 1
      %p144 = por %p142, %p143
      %p145 = scmp.ne.s32.totalorder %s136, %s137
      %p146 = scmp.eq.s32.totalorder %s42, 0
      %p147 = por %p145, %p146
      %p148 = scmp.ne.s32.totalorder %s136, %s137
      %p149 = scmp.eq.s32.totalorder %s43, 1
      %p150 = por %p148, %p149
      %p152 = scmp.ne.s32.totalorder %s137, %s151
      %p153 = scmp.eq.s32.totalorder %s43, 0
      %p154 = por %p152, %p153
      %s156 = sadd.s32 %s155, 1
      %p159 = scmp.eq.s32.totalorder %s37, 1
      %p160 = scmp.ne.s32.totalorder %s155, %s157
      %p161 = scmp.eq.s32.totalorder %s37, 0
      %p162 = por %p160, %p161
      %p163 = scmp.ne.s32.totalorder %s155, %s157
      %p164 = scmp.eq.s32.totalorder %s42, 1
      %p165 = por %p163, %p164
      %p166 = scmp.ne.s32.totalorder %s157, %s158
      %p167 = scmp.eq.s32.totalorder %s42, 0
      %p168 = por %p166, %p167
      %p169 = scmp.ne.s32.totalorder %s157, %s158
      %p170 = scmp.eq.s32.totalorder %s43, 1
      %p171 = por %p169, %p170
      %p173 = scmp.ne.s32.totalorder %s158, %s172
      %p174 = scmp.eq.s32.totalorder %s43, 0
      %p175 = por %p173, %p174
      %s177 = sadd.s32 %s176, 1
      %p180 = scmp.eq.s32.totalorder %s37, 1
      %p181 = scmp.ne.s32.totalorder %s176, %s178
      %p182 = scmp.eq.s32.totalorder %s37, 0
      %p183 = por %p181, %p182
      %p184 = scmp.ne.s32.totalorder %s176, %s178
      %p185 = scmp.eq.s32.totalorder %s42, 1
      %p186 = por %p184, %p185
      %p187 = scmp.ne.s32.totalorder %s178, %s179
      %p188 = scmp.eq.s32.totalorder %s42, 0
      %p189 = por %p187, %p188
      %p190 = scmp.ne.s32.totalorder %s178, %s179
      %p191 = scmp.eq.s32.totalorder %s43, 1
      %p192 = por %p190, %p191
      %p194 = scmp.ne.s32.totalorder %s179, %s193
      %p195 = scmp.eq.s32.totalorder %s43, 0
      %p196 = por %p194, %p195
      %s198 = sadd.s32 %s197, 1
      %p201 = scmp.eq.s32.totalorder %s37, 1
      %p202 = scmp.ne.s32.totalorder %s197, %s199
      %p203 = scmp.eq.s32.totalorder %s37, 0
      %p204 = por %p202, %p203
      %p205 = scmp.ne.s32.totalorder %s197, %s199
      %p206 = scmp.eq.s32.totalorder %s42, 1
      %p207 = por %p205, %p206
      %p208 = scmp.ne.s32.totalorder %s199, %s200
      %p209 = scmp.eq.s32.totalorder %s42, 0
      %p210 = por %p208, %p209
      %p211 = scmp.ne.s32.totalorder %s199, %s200
      %p212 = scmp.eq.s32.totalorder %s43, 1
      %p213 = por %p211, %p212
      %p215 = scmp.ne.s32.totalorder %s200, %s214
      %p216 = scmp.eq.s32.totalorder %s43, 0
      %p217 = por %p215, %p216
      %s219 = sadd.s32 %s218, 1
      %p222 = scmp.eq.s32.totalorder %s37, 1
      %p223 = scmp.ne.s32.totalorder %s218, %s220
      %p224 = scmp.eq.s32.totalorder %s37, 0
      %p225 = por %p223, %p224
      %p226 = scmp.ne.s32.totalorder %s218, %s220
      %p227 = scmp.eq.s32.totalorder %s42, 1
      %p228 = por %p226, %p227
      %p229 = scmp.ne.s32.totalorder %s220, %s221
      %p230 = scmp.eq.s32.totalorder %s42, 0
      %p231 = por %p229, %p230
      %p232 = scmp.ne.s32.totalorder %s220, %s221
      %p233 = scmp.eq.s32.totalorder %s43, 1
      %p234 = por %p232, %p233
      %p236 = scmp.ne.s32.totalorder %s221, %s235
      %p237 = scmp.eq.s32.totalorder %s43, 0
      %p238 = por %p236, %p237
      %s240 = sadd.s32 %s239, 1
      %p243 = scmp.eq.s32.totalorder %s37, 1
      %p244 = scmp.ne.s32.totalorder %s239, %s241
      %p245 = scmp.eq.s32.totalorder %s37, 0
      %p246 = por %p244, %p245
      %p247 = scmp.ne.s32.totalorder %s239, %s241
      %p248 = scmp.eq.s32.totalorder %s42, 1
      %p249 = por %p247, %p248
      %p250 = scmp.ne.s32.totalorder %s241, %s242
      %p251 = scmp.eq.s32.totalorder %s42, 0
      %p252 = por %p250, %p251
      %p253 = scmp.ne.s32.totalorder %s241, %s242
      %p254 = scmp.eq.s32.totalorder %s43, 1
      %p255 = por %p253, %p254
      %p257 = scmp.ne.s32.totalorder %s242, %s256
      %p258 = scmp.eq.s32.totalorder %s43, 0
      %p259 = por %p257, %p258
      %s261 = sadd.s32 %s260, 1
      %p264 = scmp.eq.s32.totalorder %s37, 1
      %p265 = scmp.ne.s32.totalorder %s260, %s262
      %p266 = scmp.eq.s32.totalorder %s37, 0
      %p267 = por %p265, %p266
      %p268 = scmp.ne.s32.totalorder %s260, %s262
      %p269 = scmp.eq.s32.totalorder %s42, 1
      %p270 = por %p268, %p269
      %p271 = scmp.ne.s32.totalorder %s262, %s263
      %p272 = scmp.eq.s32.totalorder %s42, 0
      %p273 = por %p271, %p272
      %p274 = scmp.ne.s32.totalorder %s262, %s263
      %p275 = scmp.eq.s32.totalorder %s43, 1
      %p276 = por %p274, %p275
      %p278 = scmp.ne.s32.totalorder %s263, %s277
      %p279 = scmp.eq.s32.totalorder %s43, 0
      %p280 = por %p278, %p279
      %s282 = sadd.s32 %s281, 1
      %p285 = scmp.eq.s32.totalorder %s37, 1
      %p286 = scmp.ne.s32.totalorder %s281, %s283
      %p287 = scmp.eq.s32.totalorder %s37, 0
      %p288 = por %p286, %p287
      %p289 = scmp.ne.s32.totalorder %s281, %s283
      %p290 = scmp.eq.s32.totalorder %s42, 1
      %p291 = por %p289, %p290
      %p292 = scmp.ne.s32.totalorder %s283, %s284
      %p293 = scmp.eq.s32.totalorder %s42, 0
      %p294 = por %p292, %p293
      %p295 = scmp.ne.s32.totalorder %s283, %s284
      %p296 = scmp.eq.s32.totalorder %s43, 1
      %p297 = por %p295, %p296
      %p299 = scmp.ne.s32.totalorder %s284, %s298
      %p300 = scmp.eq.s32.totalorder %s43, 0
      %p301 = por %p299, %p300
      %s303 = sadd.s32 %s302, 1
      %p306 = scmp.eq.s32.totalorder %s37, 1
      %p307 = scmp.ne.s32.totalorder %s302, %s304
      %p308 = scmp.eq.s32.totalorder %s37, 0
      %p309 = por %p307, %p308
      %p310 = scmp.ne.s32.totalorder %s302, %s304
      %p311 = scmp.eq.s32.totalorder %s42, 1
      %p312 = por %p310, %p311
      %p313 = scmp.ne.s32.totalorder %s304, %s305
      %p314 = scmp.eq.s32.totalorder %s42, 0
      %p315 = por %p313, %p314
      %p316 = scmp.ne.s32.totalorder %s304, %s305
      %p317 = scmp.eq.s32.totalorder %s43, 1
      %p318 = por %p316, %p317
      %p320 = scmp.ne.s32.totalorder %s305, %s319
      %p321 = scmp.eq.s32.totalorder %s43, 0
      %p322 = por %p320, %p321
      %s324 = sadd.s32 %s323, 1
      %p327 = scmp.eq.s32.totalorder %s37, 1
      %p328 = scmp.ne.s32.totalorder %s323, %s325
      %p329 = scmp.eq.s32.totalorder %s37, 0
      %p330 = por %p328, %p329
      %p331 = scmp.ne.s32.totalorder %s323, %s325
      %p332 = scmp.eq.s32.totalorder %s42, 1
      %p333 = por %p331, %p332
      %p334 = scmp.ne.s32.totalorder %s325, %s326
      %p335 = scmp.eq.s32.totalorder %s42, 0
      %p336 = por %p334, %p335
      %p337 = scmp.ne.s32.totalorder %s325, %s326
      %p338 = scmp.eq.s32.totalorder %s43, 1
      %p339 = por %p337, %p338
      %p341 = scmp.ne.s32.totalorder %s326, %s340
      %p342 = scmp.eq.s32.totalorder %s43, 0
      %p343 = por %p341, %p342
      %s345 = sadd.s32 %s344, 1
      %p348 = scmp.eq.s32.totalorder %s37, 1
      %p349 = scmp.ne.s32.totalorder %s344, %s346
      %p350 = scmp.eq.s32.totalorder %s37, 0
      %p351 = por %p349, %p350
      %p352 = scmp.ne.s32.totalorder %s344, %s346
      %p353 = scmp.eq.s32.totalorder %s42, 1
      %p354 = por %p352, %p353
      %p355 = scmp.ne.s32.totalorder %s346, %s347
      %p356 = scmp.eq.s32.totalorder %s42, 0
      %p357 = por %p355, %p356
      %p358 = scmp.ne.s32.totalorder %s346, %s347
      %p359 = scmp.eq.s32.totalorder %s43, 1
      %p360 = por %p358, %p359
      %p362 = scmp.ne.s32.totalorder %s347, %s361
      %p363 = scmp.eq.s32.totalorder %s43, 0
      %p364 = por %p362, %p363
      %s366 = sadd.s32 %s365, 1
      %p369 = scmp.eq.s32.totalorder %s37, 1
      %p370 = scmp.ne.s32.totalorder %s365, %s367
      %p371 = scmp.eq.s32.totalorder %s37, 0
      %p372 = por %p370, %p371
      %p373 = scmp.ne.s32.totalorder %s365, %s367
      %p374 = scmp.eq.s32.totalorder %s42, 1
      %p375 = por %p373, %p374
      %p376 = scmp.ne.s32.totalorder %s367, %s368
      %p377 = scmp.eq.s32.totalorder %s42, 0
      %p378 = por %p376, %p377
      %p379 = scmp.ne.s32.totalorder %s367, %s368
      %p380 = scmp.eq.s32.totalorder %s43, 1
      %p381 = por %p379, %p380
      %p383 = scmp.ne.s32.totalorder %s368, %s382
      %p384 = scmp.eq.s32.totalorder %s43, 0
      %p385 = por %p383, %p384
      %s387 = sadd.s32 %s386, 1
      %p390 = scmp.eq.s32.totalorder %s37, 1
      %p391 = scmp.ne.s32.totalorder %s386, %s388
      %p392 = scmp.eq.s32.totalorder %s37, 0
      %p393 = por %p391, %p392
      %p394 = scmp.ne.s32.totalorder %s386, %s388
      %p395 = scmp.eq.s32.totalorder %s42, 1
      %p396 = por %p394, %p395
      %p397 = scmp.ne.s32.totalorder %s388, %s389
      %p398 = scmp.eq.s32.totalorder %s42, 0
      %p399 = por %p397, %p398
      %p400 = scmp.ne.s32.totalorder %s388, %s389
      %p401 = scmp.eq.s32.totalorder %s43, 1
      %p402 = por %p400, %p401
      %p404 = scmp.ne.s32.totalorder %s389, %s403
      %p405 = scmp.eq.s32.totalorder %s43, 0
      %p406 = por %p404, %p405
      %s408 = sadd.s32 %s407, 1
      %p411 = scmp.eq.s32.totalorder %s37, 1
      %p412 = scmp.ne.s32.totalorder %s407, %s409
      %p413 = scmp.eq.s32.totalorder %s37, 0
      %p414 = por %p412, %p413
      %p415 = scmp.ne.s32.totalorder %s407, %s409
      %p416 = scmp.eq.s32.totalorder %s42, 1
      %p417 = por %p415, %p416
      %p418 = scmp.ne.s32.totalorder %s409, %s410
      %p419 = scmp.eq.s32.totalorder %s42, 0
      %p420 = por %p418, %p419
      %p421 = scmp.ne.s32.totalorder %s409, %s410
      %p422 = scmp.eq.s32.totalorder %s43, 1
      %p423 = por %p421, %p422
      %p425 = scmp.ne.s32.totalorder %s410, %s424
      %p426 = scmp.eq.s32.totalorder %s43, 0
      %p427 = por %p425, %p426
      %s429 = sadd.s32 %s428, 1
      %p432 = scmp.eq.s32.totalorder %s37, 1
      %p433 = scmp.ne.s32.totalorder %s428, %s430
      %p434 = scmp.eq.s32.totalorder %s37, 0
      %p435 = por %p433, %p434
      %p436 = scmp.ne.s32.totalorder %s428, %s430
      %p437 = scmp.eq.s32.totalorder %s42, 1
      %p438 = por %p436, %p437
      %p439 = scmp.ne.s32.totalorder %s430, %s431
      %p440 = scmp.eq.s32.totalorder %s42, 0
      %p441 = por %p439, %p440
      %p442 = scmp.ne.s32.totalorder %s430, %s431
      %p443 = scmp.eq.s32.totalorder %s43, 1
      %p444 = por %p442, %p443
      %p446 = scmp.ne.s32.totalorder %s431, %s445
      %p447 = scmp.eq.s32.totalorder %s43, 0
      %p448 = por %p446, %p447
      %s449 = ssub.s32 %s37, %s44
      %p450 = scmp.eq.s32.totalorder %s449, 0
      %s452 = sadd.s32 %s451, 1
      %s453 = scalar_select %p450, %s451, %s452
      %p456 = pneg %p450
      %p457 = scmp.eq.s32.totalorder %s37, 1
      %p458 = por %p456, %p457
      %p459 = scmp.ne.s32.totalorder %s451, %s454
      %p460 = scmp.eq.s32.totalorder %s37, 0
      %p461 = por %p459, %p460
      %p462 = scmp.ne.s32.totalorder %s451, %s454
      %p463 = scmp.eq.s32.totalorder %s42, 1
      %p464 = por %p462, %p463
      %p465 = scmp.ne.s32.totalorder %s454, %s455
      %p466 = scmp.eq.s32.totalorder %s42, 0
      %p467 = por %p465, %p466
      %p468 = scmp.ne.s32.totalorder %s454, %s455
      %p469 = scmp.eq.s32.totalorder %s43, 1
      %p470 = por %p468, %p469
      %p472 = scmp.ne.s32.totalorder %s455, %s471
      %p473 = scmp.eq.s32.totalorder %s43, 0
      %p474 = por %p472, %p473
      %p475 = scmp.le.s32.totalorder 1, %s37
      %p476 = scmp.lt.s32.totalorder %s37, 3
      %p477 = pnand %p475, %p476
      %p478 = pneg %p477
      // Predicated region
      $region9: #{inception_b_forward.1} parent=5 // pred_check
        _
      $region10: #{inception_b_forward.1} parent=5 // pred_check_branch
        %480 = sbr.rel (%p477) target = $region12
      $region11: #{inception_b_forward.1} parent=5 // pred_region
        %s481 = ssub.s32 %s37, 1
        // Predicated region
        $region13: #{inception_b_forward.1} parent=11 // pred_check
          %p482 = pneg %p84
        $region14: #{inception_b_forward.1} parent=11 // pred_check_branch
          %484 = sbr.rel (%p482) target = $region16
        $region15: #{inception_b_forward.1} parent=11 // pred_region
          %s486 = ssub.s32 256, 256
          %487 = vsyncadd [#allocation9], %s486
          %s488 = sshll.u32 [#allocation8], 4
          %s489 = int_to_ptr.vmem [resolvable:$true] %s488
          %494 = dma.hbm_to_vmem [thread:$0]  %s1, 256, %s489, [#allocation9], 128, 128, 8
        $region16: #{inception_b_forward.1} parent=11 // pred_fallthru
          _
        // Predicated region
        $region17: #{inception_b_forward.1} parent=11 // pred_check
          %p495 = pneg %p105
        $region18: #{inception_b_forward.1} parent=11 // pred_check_branch
          %497 = sbr.rel (%p495) target = $region20
        $region19: #{inception_b_forward.1} parent=11 // pred_region
          %s499 = ssub.s32 16, 16
          %500 = vsyncadd [#allocation9], %s499
          %s502 = sshll.u32 [#allocation10], 4
          %s503 = int_to_ptr.vmem [resolvable:$true] %s502
          %505 = dma.hbm_to_vmem [thread:$0]  %s2, 16, %s503, [#allocation9]
        $region20: #{inception_b_forward.1} parent=11 // pred_fallthru
          _
        // Predicated region
        $region21: #{inception_b_forward.1} parent=11 // pred_check
          %p506 = pneg %p126
        $region22: #{inception_b_forward.1} parent=11 // pred_check_branch
          %508 = sbr.rel (%p506) target = $region24
        $region23: #{inception_b_forward.1} parent=11 // pred_region
          %s510 = ssub.s32 896, 896
          %511 = vsyncadd [#allocation12], %s510
          %s512 = sshll.u32 [#allocation11], 4
          %s513 = int_to_ptr.vmem [resolvable:$true] %s512
          %518 = dma.hbm_to_vmem [thread:$0]  %s3, 896, %s513, [#allocation12], 128, 128, 8
        $region24: #{inception_b_forward.1} parent=11 // pred_fallthru
          _
        // Predicated region
        $region25: #{inception_b_forward.1} parent=11 // pred_check
          %p519 = pneg %p147
        $region26: #{inception_b_forward.1} parent=11 // pred_check_branch
          %521 = sbr.rel (%p519) target = $region28
        $region27: #{inception_b_forward.1} parent=11 // pred_region
          %s523 = ssub.s32 16, 16
          %524 = vsyncadd [#allocation12], %s523
          %s526 = sshll.u32 [#allocation13], 4
          %s527 = int_to_ptr.vmem [resolvable:$true] %s526
          %529 = dma.hbm_to_vmem [thread:$0]  %s4, 16, %s527, [#allocation12]
        $region28: #{inception_b_forward.1} parent=11 // pred_fallthru
          _
        // Predicated region
        $region29: #{inception_b_forward.1} parent=11 // pred_check
          %p530 = pneg %p168
        $region30: #{inception_b_forward.1} parent=11 // pred_check_branch
          %532 = sbr.rel (%p530) target = $region32
        $region31: #{inception_b_forward.1} parent=11 // pred_region
          %s534 = ssub.s32 896, 896
          %535 = vsyncadd [#allocation15], %s534
          %s536 = sshll.u32 [#allocation14], 4
          %s537 = int_to_ptr.vmem [resolvable:$true] %s536
          %542 = dma.hbm_to_vmem [thread:$0]  %s5, 896, %s537, [#allocation15], 128, 128, 8
        $region32: #{inception_b_forward.1} parent=11 // pred_fallthru
          _
        // Predicated region
        $region33: #{inception_b_forward.1} parent=11 // pred_check
          %p543 = pneg %p189
        $region34: #{inception_b_forward.1} parent=11 // pred_check_branch
          %545 = sbr.rel (%p543) target = $region36
        $region35: #{inception_b_forward.1} parent=11 // pred_region
          %s547 = ssub.s32 16, 16
          %548 = vsyncadd [#allocation15], %s547
          %s550 = sshll.u32 [#allocation16], 4
          %s551 = int_to_ptr.vmem [resolvable:$true] %s550
          %553 = dma.hbm_to_vmem [thread:$0]  %s6, 16, %s551, [#allocation15]
        $region36: #{inception_b_forward.1} parent=11 // pred_fallthru
          _
        // Predicated region
        $region37: #{inception_b_forward.1} parent=11 // pred_check
          %p554 = pneg %p210
        $region38: #{inception_b_forward.1} parent=11 // pred_check_branch
          %556 = sbr.rel (%p554) target = $region40
        $region39: #{inception_b_forward.1} parent=11 // pred_region
          %s558 = ssub.s32 896, 896
          %559 = vsyncadd [#allocation18], %s558
          %s560 = sshll.u32 [#allocation17], 4
          %s561 = int_to_ptr.vmem [resolvable:$true] %s560
          %566 = dma.hbm_to_vmem [thread:$0]  %s7, 896, %s561, [#allocation18], 128, 128, 8
        $region40: #{inception_b_forward.1} parent=11 // pred_fallthru
          _
        // Predicated region
        $region41: #{inception_b_forward.1} parent=11 // pred_check
          %p567 = pneg %p231
        $region42: #{inception_b_forward.1} parent=11 // pred_check_branch
          %569 = sbr.rel (%p567) target = $region44
        $region43: #{inception_b_forward.1} parent=11 // pred_region
          %s571 = ssub.s32 16, 16
          %572 = vsyncadd [#allocation18], %s571
          %s574 = sshll.u32 [#allocation19], 4
          %s575 = int_to_ptr.vmem [resolvable:$true] %s574
          %577 = dma.hbm_to_vmem [thread:$0]  %s8, 16, %s575, [#allocation18]
        $region44: #{inception_b_forward.1} parent=11 // pred_fallthru
          _
        // Predicated region
        $region45: #{inception_b_forward.1} parent=11 // pred_check
          %p578 = pneg %p252
        $region46: #{inception_b_forward.1} parent=11 // pred_check_branch
          %580 = sbr.rel (%p578) target = $region48
        $region47: #{inception_b_forward.1} parent=11 // pred_region
          %s582 = ssub.s32 896, 896
          %583 = vsyncadd [#allocation21], %s582
          %s584 = sshll.u32 [#allocation20], 4
          %s585 = int_to_ptr.vmem [resolvable:$true] %s584
          %590 = dma.hbm_to_vmem [thread:$0]  %s9, 896, %s585, [#allocation21], 128, 128, 8
        $region48: #{inception_b_forward.1} parent=11 // pred_fallthru
          _
        // Predicated region
        $region49: #{inception_b_forward.1} parent=11 // pred_check
          %p591 = pneg %p273
        $region50: #{inception_b_forward.1} parent=11 // pred_check_branch
          %593 = sbr.rel (%p591) target = $region52
        $region51: #{inception_b_forward.1} parent=11 // pred_region
          _
        $region52: #{inception_b_forward.1} parent=11 // pred_fallthru
          _
        // Predicated region
        $region53: #{inception_b_forward.1} parent=11 // pred_check
          %p594 = pneg %p294
        $region54: #{inception_b_forward.1} parent=11 // pred_check_branch
          %596 = sbr.rel (%p594) target = $region56
        $region55: #{inception_b_forward.1} parent=11 // pred_region
          %s598 = ssub.s32 256, 256
          %599 = vsyncadd [#allocation21], %s598
          %s600 = sshll.u32 [#allocation22], 4
          %s601 = int_to_ptr.vmem [resolvable:$true] %s600
          %606 = dma.hbm_to_vmem [thread:$0]  %s11, 256, %s601, [#allocation21], 128, 128, 8
        $region56: #{inception_b_forward.1} parent=11 // pred_fallthru
          _
        // Predicated region
        $region57: #{inception_b_forward.1} parent=11 // pred_check
          %p607 = pneg %p315
        $region58: #{inception_b_forward.1} parent=11 // pred_check_branch
          %609 = sbr.rel (%p607) target = $region60
        $region59: #{inception_b_forward.1} parent=11 // pred_region
          _
        $region60: #{inception_b_forward.1} parent=11 // pred_fallthru
          _
        // Predicated region
        $region61: #{inception_b_forward.1} parent=11 // pred_check
          %p610 = pneg %p336
        $region62: #{inception_b_forward.1} parent=11 // pred_check_branch
          %612 = sbr.rel (%p610) target = $region64
        $region63: #{inception_b_forward.1} parent=11 // pred_region
          %s614 = ssub.s32 896, 896
          %615 = vsyncadd [#allocation24], %s614
          %s616 = sshll.u32 [#allocation23], 4
          %s617 = int_to_ptr.vmem [resolvable:$true] %s616
          %622 = dma.hbm_to_vmem [thread:$0]  %s13, 896, %s617, [#allocation24], 128, 128, 8
        $region64: #{inception_b_forward.1} parent=11 // pred_fallthru
          _
        // Predicated region
        $region65: #{inception_b_forward.1} parent=11 // pred_check
          %p623 = pneg %p357
        $region66: #{inception_b_forward.1} parent=11 // pred_check_branch
          %625 = sbr.rel (%p623) target = $region68
        $region67: #{inception_b_forward.1} parent=11 // pred_region
          _
        $region68: #{inception_b_forward.1} parent=11 // pred_fallthru
          _
        // Predicated region
        $region69: #{inception_b_forward.1} parent=11 // pred_check
          %p626 = pneg %p378
        $region70: #{inception_b_forward.1} parent=11 // pred_check_branch
          %628 = sbr.rel (%p626) target = $region72
        $region71: #{inception_b_forward.1} parent=11 // pred_region
          _
        $region72: #{inception_b_forward.1} parent=11 // pred_fallthru
          _
        // Predicated region
        $region73: #{inception_b_forward.1} parent=11 // pred_check
          %p629 = pneg %p399
        $region74: #{inception_b_forward.1} parent=11 // pred_check_branch
          %631 = sbr.rel (%p629) target = $region76
        $region75: #{inception_b_forward.1} parent=11 // pred_region
          _
        $region76: #{inception_b_forward.1} parent=11 // pred_fallthru
          _
        // Predicated region
        $region77: #{inception_b_forward.1} parent=11 // pred_check
          %p632 = pneg %p420
        $region78: #{inception_b_forward.1} parent=11 // pred_check_branch
          %634 = sbr.rel (%p632) target = $region80
        $region79: #{inception_b_forward.1} parent=11 // pred_region
          _
        $region80: #{inception_b_forward.1} parent=11 // pred_fallthru
          _
        // Predicated region
        $region81: #{inception_b_forward.1} parent=11 // pred_check
          %p635 = pneg %p441
        $region82: #{inception_b_forward.1} parent=11 // pred_check_branch
          %637 = sbr.rel (%p635) target = $region84
        $region83: #{inception_b_forward.1} parent=11 // pred_region
          _
        $region84: #{inception_b_forward.1} parent=11 // pred_fallthru
          _
      $region12: #{inception_b_forward.1} parent=5 // pred_fallthru
        _
      %p638 = scmp.lt.s32.totalorder %s37, 2
      // Predicated region
      $region85: #{inception_b_forward.1} parent=5 // pred_check
        %p639 = pneg %p638
      $region86: #{inception_b_forward.1} parent=5 // pred_check_branch
        %641 = sbr.rel (%p639) target = $region88
      $region87: #{inception_b_forward.1} parent=5 // pred_region
        // Predicated region
        $region89: #{inception_b_forward.1} parent=87 // pred_check
          %p642 = pneg %p57
        $region90: #{inception_b_forward.1} parent=87 // pred_check_branch
          %644 = sbr.rel (%p642) target = $region92
        $region91: #{inception_b_forward.1} parent=87 // pred_region
          %s645 = sand.u32 %s47, 1
          %s646 = scalar_lea.sflag [#allocation6], %s645
          %s647 = sand.u32 %s47, 1
          %s648 = smul.addr %s647, 64
          %s649 = scalar_lea.vmem [#allocation5], %s648
          %s651 = ssub.s32 1024, 1024
          %652 = vsyncadd %s646, %s651
          %s653 = smul.addr %s37, 8
          %s654 = smul.addr %s653, 128
          %s655 = scalar_lea.hbm %s0, %s654
          %s656 = sshll.u32 %s649, 4
          %s657 = int_to_ptr.vmem [resolvable:$true] %s656
          %662 = dma.hbm_to_vmem [thread:$0]  %s655, 1024, %s657, %s646, 128, 128, 8
        $region92: #{inception_b_forward.1} parent=87 // pred_fallthru
          _
      $region88: #{inception_b_forward.1} parent=5 // pred_fallthru
        _
      %p663 = scmp.le.s32.totalorder 1, %s37
      %p664 = scmp.lt.s32.totalorder %s37, 3
      %p665 = pnand %p663, %p664
      %p666 = pneg %p665
      // Predicated region
      $region93: #{inception_b_forward.1} parent=5 // pred_check
        _
      $region94: #{inception_b_forward.1} parent=5 // pred_check_branch
        %668 = sbr.rel (%p665) target = $region96
      $region95: #{inception_b_forward.1} parent=5 // pred_region
        %s669 = ssub.s32 %s37, 1
        %s670 = sand.u32 %s50, 1
        %s671 = scalar_lea.sflag [#allocation6], %s670
        %s672 = sand.u32 %s50, 1
        %s673 = smul.addr %s672, 64
        %s674 = scalar_lea.vmem [#allocation5], %s673
        // Predicated region
        $region97: #{inception_b_forward.1} parent=95 // pred_check
          %p675 = pneg %p63
        $region98: #{inception_b_forward.1} parent=95 // pred_check_branch
          %677 = sbr.rel (%p675) target = $region100
        $region99: #{inception_b_forward.1} parent=95 // pred_region
          %678 = dma.done %s671, 1024
        $region100: #{inception_b_forward.1} parent=95 // pred_fallthru
          _
        // Predicated region
        $region101: #{inception_b_forward.1} parent=95 // pred_check
          %p679 = pneg %p84
        $region102: #{inception_b_forward.1} parent=95 // pred_check_branch
          %681 = sbr.rel (%p679) target = $region104
        $region103: #{inception_b_forward.1} parent=95 // pred_region
          %682 = dma.done [#allocation9], 256
        $region104: #{inception_b_forward.1} parent=95 // pred_fallthru
          _
        // Predicated region
        $region105: #{inception_b_forward.1} parent=95 // pred_check
          %p683 = pneg %p105
        $region106: #{inception_b_forward.1} parent=95 // pred_check_branch
          %685 = sbr.rel (%p683) target = $region108
        $region107: #{inception_b_forward.1} parent=95 // pred_region
          %686 = dma.done [#allocation9], 16
        $region108: #{inception_b_forward.1} parent=95 // pred_fallthru
          _
        // Predicated region
        $region109: #{inception_b_forward.1} parent=95 // pred_check
          %p687 = pneg %p126
        $region110: #{inception_b_forward.1} parent=95 // pred_check_branch
          %689 = sbr.rel (%p687) target = $region112
        $region111: #{inception_b_forward.1} parent=95 // pred_region
          %690 = dma.done [#allocation12], 896
        $region112: #{inception_b_forward.1} parent=95 // pred_fallthru
          _
        // Predicated region
        $region113: #{inception_b_forward.1} parent=95 // pred_check
          %p691 = pneg %p147
        $region114: #{inception_b_forward.1} parent=95 // pred_check_branch
          %693 = sbr.rel (%p691) target = $region116
        $region115: #{inception_b_forward.1} parent=95 // pred_region
          %694 = dma.done [#allocation12], 16
        $region116: #{inception_b_forward.1} parent=95 // pred_fallthru
          _
        // Predicated region
        $region117: #{inception_b_forward.1} parent=95 // pred_check
          %p695 = pneg %p168
        $region118: #{inception_b_forward.1} parent=95 // pred_check_branch
          %697 = sbr.rel (%p695) target = $region120
        $region119: #{inception_b_forward.1} parent=95 // pred_region
          %698 = dma.done [#allocation15], 896
        $region120: #{inception_b_forward.1} parent=95 // pred_fallthru
          _
        // Predicated region
        $region121: #{inception_b_forward.1} parent=95 // pred_check
          %p699 = pneg %p189
        $region122: #{inception_b_forward.1} parent=95 // pred_check_branch
          %701 = sbr.rel (%p699) target = $region124
        $region123: #{inception_b_forward.1} parent=95 // pred_region
          %702 = dma.done [#allocation15], 16
        $region124: #{inception_b_forward.1} parent=95 // pred_fallthru
          _
        // Predicated region
        $region125: #{inception_b_forward.1} parent=95 // pred_check
          %p703 = pneg %p210
        $region126: #{inception_b_forward.1} parent=95 // pred_check_branch
          %705 = sbr.rel (%p703) target = $region128
        $region127: #{inception_b_forward.1} parent=95 // pred_region
          %706 = dma.done [#allocation18], 896
        $region128: #{inception_b_forward.1} parent=95 // pred_fallthru
          _
        // Predicated region
        $region129: #{inception_b_forward.1} parent=95 // pred_check
          %p707 = pneg %p231
        $region130: #{inception_b_forward.1} parent=95 // pred_check_branch
          %709 = sbr.rel (%p707) target = $region132
        $region131: #{inception_b_forward.1} parent=95 // pred_region
          %710 = dma.done [#allocation18], 16
        $region132: #{inception_b_forward.1} parent=95 // pred_fallthru
          _
        // Predicated region
        $region133: #{inception_b_forward.1} parent=95 // pred_check
          %p711 = pneg %p252
        $region134: #{inception_b_forward.1} parent=95 // pred_check_branch
          %713 = sbr.rel (%p711) target = $region136
        $region135: #{inception_b_forward.1} parent=95 // pred_region
          %714 = dma.done [#allocation21], 896
        $region136: #{inception_b_forward.1} parent=95 // pred_fallthru
          _
        // Predicated region
        $region137: #{inception_b_forward.1} parent=95 // pred_check
          %p715 = pneg %p294
        $region138: #{inception_b_forward.1} parent=95 // pred_check_branch
          %717 = sbr.rel (%p715) target = $region140
        $region139: #{inception_b_forward.1} parent=95 // pred_region
          %718 = dma.done [#allocation21], 256
        $region140: #{inception_b_forward.1} parent=95 // pred_fallthru
          _
        // Predicated region
        $region141: #{inception_b_forward.1} parent=95 // pred_check
          %p719 = pneg %p336
        $region142: #{inception_b_forward.1} parent=95 // pred_check_branch
          %721 = sbr.rel (%p719) target = $region144
        $region143: #{inception_b_forward.1} parent=95 // pred_region
          %722 = dma.done [#allocation24], 896
        $region144: #{inception_b_forward.1} parent=95 // pred_fallthru
          _
        %s723 = sand.u32 %s50, 1
        %s724 = scalar_lea.sflag [#allocation6], %s723
        %s725 = sand.u32 %s50, 1
        %s726 = smul.addr %s725, 64
        %s727 = scalar_lea.vmem [#allocation5], %s726
        %p728 = pneg %p63
        %p729 = pneg %p60
        %p730 = pneg %p84
        %p731 = pneg %p81
        %p732 = pneg %p105
        %p733 = pneg %p102
        %p734 = pneg %p126
        %p735 = pneg %p123
        %p736 = pneg %p147
        %p737 = pneg %p144
        %p738 = pneg %p168
        %p739 = pneg %p165
        %p740 = pneg %p189
        %p741 = pneg %p186
        %p742 = pneg %p210
        %p743 = pneg %p207
        %p744 = pneg %p231
        %p745 = pneg %p228
        %p746 = pneg %p252
        %p747 = pneg %p249
        %p748 = pneg %p273
        %p749 = pneg %p270
        %p750 = pneg %p294
        %p751 = pneg %p291
        %p752 = pneg %p315
        %p753 = pneg %p312
        %p754 = pneg %p336
        %p755 = pneg %p333
        %p756 = pneg %p357
        %p757 = pneg %p354
        %p758 = pneg %p378
        %p759 = pneg %p375
        %p760 = pneg %p399
        %p761 = pneg %p396
        %p762 = pneg %p420
        %p763 = pneg %p417
        %p764 = pneg %p441
        %p765 = pneg %p438
        %p766 = pneg %p467
        %p767 = pneg %p464
        %s768 = sand.u32 %s454, 1
        %s769 = scalar_lea.sflag [#allocation7], %s768
        %s770 = sand.u32 %s454, 1
        %s771 = smul.addr %s770, 192
        %s772 = scalar_lea.vmem [#allocation25], %s771
        %vm773 = vcmask 64512
        %774 = vst.msk [vmem:[#allocation2] sm:$0xff] %vm773, 0.0
        %vm775 = vcmask 62464
        %776 = vst.msk [vmem:[#allocation2 + $0x8] sm:$0x3f] %vm775, 0.0
        %777 = vst.msk [vmem:[#allocation2 + $0x10] sm:$0xff] %vm773, 0.0
        %778 = vst.msk [vmem:[#allocation2 + $0x18] sm:$0x3f] %vm775, 0.0
        %779 = vst.msk [vmem:[#allocation2 + $0x20] sm:$0xff] %vm773, 0.0
        %780 = vst.msk [vmem:[#allocation2 + $0x28] sm:$0x3f] %vm775, 0.0
        %781 = vst.msk [vmem:[#allocation2 + $0x30] sm:$0xff] %vm773, 0.0
        %782 = vst.msk [vmem:[#allocation2 + $0x38] sm:$0x3f] %vm775, 0.0
        %783 = vst.msk [vmem:[#allocation2 + $0x40] sm:$0xff] %vm773, 0.0
        %784 = vst.msk [vmem:[#allocation2 + $0x48] sm:$0x3f] %vm775, 0.0
        %785 = vst.msk [vmem:[#allocation2 + $0x50] sm:$0xff] %vm773, 0.0
        %786 = vst.msk [vmem:[#allocation2 + $0x58] sm:$0x3f] %vm775, 0.0
        %787 = vst.msk [vmem:[#allocation2 + $0x60] sm:$0xff] %vm773, 0.0
        %788 = vst.msk [vmem:[#allocation2 + $0x68] sm:$0x3f] %vm775, 0.0
        %789 = vst.msk [vmem:[#allocation2 + $0x70] sm:$0xff] %vm773, 0.0
        %790 = vst.msk [vmem:[#allocation2 + $0x78] sm:$0x3f] %vm775, 0.0
        %791 = vst.msk [vmem:[#allocation3] sm:$0xff] %vm773, 0.0
        %792 = vst.msk [vmem:[#allocation3 + $0x8] sm:$0xff] %vm773, 0.0
        %793 = vst.msk [vmem:[#allocation3 + $0x10] sm:$0xff] %vm773, 0.0
        %794 = vst.msk [vmem:[#allocation3 + $0x18] sm:$0xff] %vm773, 0.0
        %795 = vst.msk [vmem:[#allocation3 + $0x20] sm:$0xff] %vm773, 0.0
        %796 = vst.msk [vmem:[#allocation3 + $0x28] sm:$0xff] %vm773, 0.0
        %797 = vst.msk [vmem:[#allocation3 + $0x30] sm:$0xff] %vm773, 0.0
        %798 = vst.msk [vmem:[#allocation3 + $0x38] sm:$0xff] %vm773, 0.0
        %799 = vst.msk [vmem:[#allocation3 + $0x40] sm:$0xff] %vm773, 0.0
        %800 = vst.msk [vmem:[#allocation3 + $0x48] sm:$0xff] %vm773, 0.0
        %801 = vst.msk [vmem:[#allocation3 + $0x50] sm:$0xff] %vm773, 0.0
        %802 = vst.msk [vmem:[#allocation3 + $0x58] sm:$0xff] %vm773, 0.0
        %803 = vst.msk [vmem:[#allocation3 + $0x60] sm:$0xff] %vm773, 0.0
        %804 = vst.msk [vmem:[#allocation3 + $0x68] sm:$0xff] %vm773, 0.0
        %v805 = vld [vmem:[%s674] sm:$0xff]
        %v806 = vld [vmem:[%s674 + $0x8] sm:$0xff]
        %v807 = vld [vmem:[%s674 + $0x10] sm:$0xff]
        %v808 = vld [vmem:[%s674 + $0x18] sm:$0xff]
        %v809 = vld [vmem:[%s674 + $0x20] sm:$0xff]
        %v810 = vld [vmem:[%s674 + $0x28] sm:$0xff]
        %v811 = vld [vmem:[%s674 + $0x30] sm:$0xff]
        %v812 = vld [vmem:[%s674 + $0x38] sm:$0xff]
        %v813 = vld [vmem:[#allocation8] sm:$0xff]
        %v814 = vld [vmem:[#allocation8 + $0x8] sm:$0xff]
        %v815 = vld [vmem:[#allocation10] sm:$0x1]
        %v817 = vlaneseq
        %v818 = vshrl.u32 %v817, 7
        %v819 = vsub.s32 0, %v818
        %v820 = vrot.slane %v815, %v819
        %vm822 = vcmask 130048
        %v824 = vsel %vm822, %v805, 0
        %v827 = vsel %vm822, %v806, 0
        %v830 = vsel %vm822, %v807, 0
        %v833 = vsel %vm822, %v808, 0
        %v836 = vsel %vm822, %v809, 0
        %v839 = vsel %vm822, %v810, 0
        %v842 = vsel %vm822, %v811, 0
        %v845 = vsel %vm822, %v812, 0
        %847 = vmatprep.subr.mxu0 0.0
        %848 = vmatpush1.msra.mxu0 %v813
        %849 = vmatprep.subr.mxu0 0.0
        %850 = vmatpush1.msra.mxu0 %v814
        %851 = vmatprep.subr.mxu0 0.0
        %852 = vmatpush1.msra.mxu0 0.0
        %853 = vmatprep.subr.mxu0 0.0
        %854 = vmatpush1.msra.mxu0 0.0
        %855 = vmatprep.subr.mxu0 0.0
        %856 = vmatpush1.msra.mxu0 0.0
        %857 = vmatprep.subr.mxu0 0.0
        %858 = vmatpush1.msra.mxu0 0.0
        %859 = vmatprep.subr.mxu0 0.0
        %860 = vmatpush1.msra.mxu0 0.0
        %861 = vmatprep.subr.mxu0 0.0
        %862 = vmatpush1.msra.mxu0 0.0
        %863 = vmatprep.subr.mxu0 0.0
        %864 = vmatpush1.msra.mxu0 0.0
        %865 = vmatprep.subr.mxu0 0.0
        %866 = vmatpush1.msra.mxu0 0.0
        %867 = vmatprep.subr.mxu0 0.0
        %868 = vmatpush1.msra.mxu0 0.0
        %869 = vmatprep.subr.mxu0 0.0
        %870 = vmatpush1.msra.mxu0 0.0
        %871 = vmatprep.subr.mxu0 0.0
        %872 = vmatpush1.msra.mxu0 0.0
        %873 = vmatprep.subr.mxu0 0.0
        %874 = vmatpush1.msra.mxu0 0.0
        %875 = vmatprep.subr.mxu0 0.0
        %876 = vmatpush1.msra.mxu0 0.0
        %877 = vmatprep.subr.mxu0 0.0
        %878 = vmatpush1.msra.mxu0 0.0
        %879 = vmatprep.subr.mxu0 0.0
        %880 = vmatpush1.msra.mxu0 0.0
        %881 = vmatprep.subr.mxu0 0.0
        %882 = vmatpush1.msra.mxu0 0.0
        %883 = vmatprep.subr.mxu0 0.0
        %884 = vmatpush1.msra.mxu0 0.0
        %885 = vmatprep.subr.mxu0 0.0
        %886 = vmatpush1.msra.mxu0 0.0
        %887 = vmatprep.subr.mxu0 0.0
        %888 = vmatpush1.msra.mxu0 0.0
        %889 = vmatprep.subr.mxu0 0.0
        %890 = vmatpush1.msra.mxu0 0.0
        %891 = vmatprep.subr.mxu0 0.0
        %892 = vmatpush1.msra.mxu0 0.0
        %893 = vmatprep.subr.mxu0 0.0
        %894 = vmatpush1.msra.mxu0 0.0
        %895 = vmatprep.subr.mxu0 0.0
        %896 = vmatpush1.msra.mxu0 0.0
        %897 = vmatprep.subr.mxu0 0.0
        %898 = vmatpush1.msra.mxu0 0.0
        %899 = vmatprep.subr.mxu0 0.0
        %900 = vmatpush1.msra.mxu0 0.0
        %901 = vmatprep.subr.mxu0 0.0
        %902 = vmatpush1.msra.mxu0 0.0
        %903 = vmatprep.subr.mxu0 0.0
        %904 = vmatpush1.msra.mxu0 0.0
        %905 = vmatprep.subr.mxu0 0.0
        %906 = vmatpush1.msra.mxu0 0.0
        %907 = vmatprep.subr.mxu0 0.0
        %908 = vmatpush1.msra.mxu0 0.0
        %909 = vmatprep.subr.mxu0 0.0
        %910 = vmatpush1.msra.mxu0 0.0
        %911 = vmatprep.mubr.f32.mxu0 0.0
        %912 = vmatmul.mubr.f32.gmra.mrb[0].mxu0 %v824
        %v913 = vpop.f32.mrb[0].mxu0
        %v914 = vadd.f32 %v820, %v913
        %v915 = vpop.f32.mrb[0].mxu0
        %916 = vmatprep.mubr.f32.mxu0 0.0
        %917 = vmatmul.mubr.f32.gmra.mrb[0].mxu0 %v827
        %v918 = vpop.f32.mrb[0].mxu0
        %v919 = vadd.f32 %v820, %v918
        %v920 = vpop.f32.mrb[0].mxu0
        %921 = vmatprep.mubr.f32.mxu0 0.0
        %922 = vmatmul.mubr.f32.gmra.mrb[0].mxu0 %v830
        %v923 = vpop.f32.mrb[0].mxu0
        %v924 = vadd.f32 %v820, %v923
        %v925 = vpop.f32.mrb[0].mxu0
        %926 = vmatprep.mubr.f32.mxu0 0.0
        %927 = vmatmul.mubr.f32.gmra.mrb[0].mxu0 %v833
        %v928 = vpop.f32.mrb[0].mxu0
        %v929 = vadd.f32 %v820, %v928
        %v930 = vpop.f32.mrb[0].mxu0
        %931 = vmatprep.mubr.f32.mxu0 0.0
        %932 = vmatmul.mubr.f32.gmra.mrb[0].mxu0 %v836
        %v933 = vpop.f32.mrb[0].mxu0
        %v934 = vadd.f32 %v820, %v933
        %v935 = vpop.f32.mrb[0].mxu0
        %936 = vmatprep.mubr.f32.mxu0 0.0
        %937 = vmatmul.mubr.f32.gmra.mrb[0].mxu0 %v839
        %v938 = vpop.f32.mrb[0].mxu0
        %v939 = vadd.f32 %v820, %v938
        %v940 = vpop.f32.mrb[0].mxu0
        %941 = vmatprep.mubr.f32.mxu0 0.0
        %942 = vmatmul.mubr.f32.gmra.mrb[0].mxu0 %v842
        %v943 = vpop.f32.mrb[0].mxu0
        %v944 = vadd.f32 %v820, %v943
        %v945 = vpop.f32.mrb[0].mxu0
        %946 = vmatprep.mubr.f32.mxu0 0.0
        %947 = vmatmul.mubr.f32.gmra.mrb[0].mxu0 %v845
        %v948 = vpop.f32.mrb[0].mxu0
        %v949 = vadd.f32 %v820, %v948
        %v950 = vpop.f32.mrb[0].mxu0
        %951 = vdwg.mxu0
        %v952 = vmax.f32 %v914, 0.0
        %v953 = vmax.f32 %v919, 0.0
        %v954 = vmax.f32 %v924, 0.0
        %v955 = vmax.f32 %v929, 0.0
        %v956 = vmax.f32 %v934, 0.0
        %v957 = vmax.f32 %v939, 0.0
        %v958 = vmax.f32 %v944, 0.0
        %v959 = vmax.f32 %v949, 0.0
        %960 = vst.msk [vmem:[#allocation2 + $0x3] sm:$0xff] %vm773, %v952
        %961 = vst.msk [vmem:[#allocation2 + $0x13] sm:$0xff] %vm773, %v953
        %962 = vst.msk [vmem:[#allocation2 + $0x23] sm:$0xff] %vm773, %v954
        %963 = vst.msk [vmem:[#allocation2 + $0x33] sm:$0xff] %vm773, %v955
        %964 = vst.msk [vmem:[#allocation2 + $0x43] sm:$0xff] %vm773, %v956
        %965 = vst.msk [vmem:[#allocation2 + $0x53] sm:$0xff] %vm773, %v957
        %966 = vst.msk [vmem:[#allocation2 + $0x63] sm:$0xff] %vm773, %v958
        %967 = vst.msk [vmem:[#allocation2 + $0x73] sm:$0xff] %vm773, %v959
        %v968 = vld [vmem:[#allocation2] sm:$0xff]
        %v969 = vld [vmem:[#allocation2 + $0x10] sm:$0xff]
        %v970 = vld [vmem:[#allocation2 + $0x20] sm:$0xff]
        %v971 = vld [vmem:[#allocation2 + $0x30] sm:$0xff]
        %v972 = vld [vmem:[#allocation2 + $0x40] sm:$0xff]
        %v973 = vld [vmem:[#allocation2 + $0x50] sm:$0xff]
        %v974 = vld [vmem:[#allocation2 + $0x60] sm:$0xff]
        %v975 = vld [vmem:[#allocation2 + $0x70] sm:$0xff]
        %v976 = vld [vmem:[#allocation2 + $0x1] sm:$0xff]
        %v977 = vld [vmem:[#allocation2 + $0x11] sm:$0xff]
        %v978 = vld [vmem:[#allocation2 + $0x21] sm:$0xff]
        %v979 = vld [vmem:[#allocation2 + $0x31] sm:$0xff]
        %v980 = vld [vmem:[#allocation2 + $0x41] sm:$0xff]
        %v981 = vld [vmem:[#allocation2 + $0x51] sm:$0xff]
        %v982 = vld [vmem:[#allocation2 + $0x61] sm:$0xff]
        %v983 = vld [vmem:[#allocation2 + $0x71] sm:$0xff]
        %v984 = vld [vmem:[#allocation2 + $0x2] sm:$0xff]
        %v985 = vld [vmem:[#allocation2 + $0x12] sm:$0xff]
        %v986 = vld [vmem:[#allocation2 + $0x22] sm:$0xff]
        %v987 = vld [vmem:[#allocation2 + $0x32] sm:$0xff]
        %v988 = vld [vmem:[#allocation2 + $0x42] sm:$0xff]
        %v989 = vld [vmem:[#allocation2 + $0x52] sm:$0xff]
        %v990 = vld [vmem:[#allocation2 + $0x62] sm:$0xff]
        %v991 = vld [vmem:[#allocation2 + $0x72] sm:$0xff]
        %v992 = vld [vmem:[#allocation2 + $0x3] sm:$0xff]
        %v993 = vld [vmem:[#allocation2 + $0x13] sm:$0xff]
        %v994 = vld [vmem:[#allocation2 + $0x23] sm:$0xff]
        %v995 = vld [vmem:[#allocation2 + $0x33] sm:$0xff]
        %v996 = vld [vmem:[#allocation2 + $0x43] sm:$0xff]
        %v997 = vld [vmem:[#allocation2 + $0x53] sm:$0xff]
        %v998 = vld [vmem:[#allocation2 + $0x63] sm:$0xff]
        %v999 = vld [vmem:[#allocation2 + $0x73] sm:$0xff]
        %v1000 = vld [vmem:[#allocation2 + $0x4] sm:$0xff]
        %v1001 = vld [vmem:[#allocation2 + $0x14] sm:$0xff]
        %v1002 = vld [vmem:[#allocation2 + $0x24] sm:$0xff]
        %v1003 = vld [vmem:[#allocation2 + $0x34] sm:$0xff]
        %v1004 = vld [vmem:[#allocation2 + $0x44] sm:$0xff]
        %v1005 = vld [vmem:[#allocation2 + $0x54] sm:$0xff]
        %v1006 = vld [vmem:[#allocation2 + $0x64] sm:$0xff]
        %v1007 = vld [vmem:[#allocation2 + $0x74] sm:$0xff]
        %v1008 = vld [vmem:[#allocation2 + $0x5] sm:$0xff]
        %v1009 = vld [vmem:[#allocation2 + $0x15] sm:$0xff]
        %v1010 = vld [vmem:[#allocation2 + $0x25] sm:$0xff]
        %v1011 = vld [vmem:[#allocation2 + $0x35] sm:$0xff]
        %v1012 = vld [vmem:[#allocation2 + $0x45] sm:$0xff]
        %v1013 = vld [vmem:[#allocation2 + $0x55] sm:$0xff]
        %v1014 = vld [vmem:[#allocation2 + $0x65] sm:$0xff]
        %v1015 = vld [vmem:[#allocation2 + $0x75] sm:$0xff]
        %v1016 = vld [vmem:[#allocation2 + $0x6] sm:$0xff]
        %v1017 = vld [vmem:[#allocation2 + $0x16] sm:$0xff]
        %v1018 = vld [vmem:[#allocation2 + $0x26] sm:$0xff]
        %v1019 = vld [vmem:[#allocation2 + $0x36] sm:$0xff]
        %v1020 = vld [vmem:[#allocation2 + $0x46] sm:$0xff]
        %v1021 = vld [vmem:[#allocation2 + $0x56] sm:$0xff]
        %v1022 = vld [vmem:[#allocation2 + $0x66] sm:$0xff]
        %v1023 = vld [vmem:[#allocation2 + $0x76] sm:$0xff]
        %1032 = vrot.lane.b32.xlu0 %v976, 8
        %v1033 = vpop.permute.xlu0 %1032
        %1034 = vrot.lane.b32.xlu0 %v977, 8
        %v1035 = vpop.permute.xlu0 %1034
        %1036 = vrot.lane.b32.xlu0 %v978, 8
        %v1037 = vpop.permute.xlu0 %1036
        %1038 = vrot.lane.b32.xlu0 %v979, 8
        %v1039 = vpop.permute.xlu0 %1038
        %1040 = vrot.lane.b32.xlu0 %v980, 8
        %v1041 = vpop.permute.xlu0 %1040
        %1042 = vrot.lane.b32.xlu0 %v981, 8
        %v1043 = vpop.permute.xlu0 %1042
        %1044 = vrot.lane.b32.xlu0 %v982, 8
        %v1045 = vpop.permute.xlu0 %1044
        %1046 = vrot.lane.b32.xlu0 %v983, 8
        %v1047 = vpop.permute.xlu0 %1046
        %1064 = vrot.lane.b32.xlu0 %v984, 16
        %v1065 = vpop.permute.xlu0 %1064
        %1066 = vrot.lane.b32.xlu0 %v985, 16
        %v1067 = vpop.permute.xlu0 %1066
        %1068 = vrot.lane.b32.xlu0 %v986, 16
        %v1069 = vpop.permute.xlu0 %1068
        %1070 = vrot.lane.b32.xlu0 %v987, 16
        %v1071 = vpop.permute.xlu0 %1070
        %1072 = vrot.lane.b32.xlu0 %v988, 16
        %v1073 = vpop.permute.xlu0 %1072
        %1074 = vrot.lane.b32.xlu0 %v989, 16
        %v1075 = vpop.permute.xlu0 %1074
        %1076 = vrot.lane.b32.xlu0 %v990, 16
        %v1077 = vpop.permute.xlu0 %1076
        %1078 = vrot.lane.b32.xlu0 %v991, 16
        %v1079 = vpop.permute.xlu0 %1078
        %1096 = vrot.lane.b32.xlu0 %v992, 24
        %v1097 = vpop.permute.xlu0 %1096
        %1098 = vrot.lane.b32.xlu0 %v993, 24
        %v1099 = vpop.permute.xlu0 %1098
        %1100 = vrot.lane.b32.xlu0 %v994, 24
        %v1101 = vpop.permute.xlu0 %1100
        %1102 = vrot.lane.b32.xlu0 %v995, 24
        %v1103 = vpop.permute.xlu0 %1102
        %1104 = vrot.lane.b32.xlu0 %v996, 24
        %v1105 = vpop.permute.xlu0 %1104
        %1106 = vrot.lane.b32.xlu0 %v997, 24
        %v1107 = vpop.permute.xlu0 %1106
        %1108 = vrot.lane.b32.xlu0 %v998, 24
        %v1109 = vpop.permute.xlu0 %1108
        %1110 = vrot.lane.b32.xlu0 %v999, 24
        %v1111 = vpop.permute.xlu0 %1110
        %1128 = vrot.lane.b32.xlu0 %v1000, 32
        %v1129 = vpop.permute.xlu0 %1128
        %1130 = vrot.lane.b32.xlu0 %v1001, 32
        %v1131 = vpop.permute.xlu0 %1130
        %1132 = vrot.lane.b32.xlu0 %v1002, 32
        %v1133 = vpop.permute.xlu0 %1132
        %1134 = vrot.lane.b32.xlu0 %v1003, 32
        %v1135 = vpop.permute.xlu0 %1134
        %1136 = vrot.lane.b32.xlu0 %v1004, 32
        %v1137 = vpop.permute.xlu0 %1136
        %1138 = vrot.lane.b32.xlu0 %v1005, 32
        %v1139 = vpop.permute.xlu0 %1138
        %1140 = vrot.lane.b32.xlu0 %v1006, 32
        %v1141 = vpop.permute.xlu0 %1140
        %1142 = vrot.lane.b32.xlu0 %v1007, 32
        %v1143 = vpop.permute.xlu0 %1142
        %1160 = vrot.lane.b32.xlu0 %v1008, 40
        %v1161 = vpop.permute.xlu0 %1160
        %1162 = vrot.lane.b32.xlu0 %v1009, 40
        %v1163 = vpop.permute.xlu0 %1162
        %1164 = vrot.lane.b32.xlu0 %v1010, 40
        %v1165 = vpop.permute.xlu0 %1164
        %1166 = vrot.lane.b32.xlu0 %v1011, 40
        %v1167 = vpop.permute.xlu0 %1166
        %1168 = vrot.lane.b32.xlu0 %v1012, 40
        %v1169 = vpop.permute.xlu0 %1168
        %1170 = vrot.lane.b32.xlu0 %v1013, 40
        %v1171 = vpop.permute.xlu0 %1170
        %1172 = vrot.lane.b32.xlu0 %v1014, 40
        %v1173 = vpop.permute.xlu0 %1172
        %1174 = vrot.lane.b32.xlu0 %v1015, 40
        %v1175 = vpop.permute.xlu0 %1174
        %1192 = vrot.lane.b32.xlu0 %v1016, 48
        %v1193 = vpop.permute.xlu0 %1192
        %1194 = vrot.lane.b32.xlu0 %v1017, 48
        %v1195 = vpop.permute.xlu0 %1194
        %1196 = vrot.lane.b32.xlu0 %v1018, 48
        %v1197 = vpop.permute.xlu0 %1196
        %1198 = vrot.lane.b32.xlu0 %v1019, 48
        %v1199 = vpop.permute.xlu0 %1198
        %1200 = vrot.lane.b32.xlu0 %v1020, 48
        %v1201 = vpop.permute.xlu0 %1200
        %1202 = vrot.lane.b32.xlu0 %v1021, 48
        %v1203 = vpop.permute.xlu0 %1202
        %1204 = vrot.lane.b32.xlu0 %v1022, 48
        %v1205 = vpop.permute.xlu0 %1204
        %1206 = vrot.lane.b32.xlu0 %v1023, 48
        %v1207 = vpop.permute.xlu0 %1206
        %v1216 = vsel %vm773, %v968, %v1033
        %v1217 = vsel %vm773, %v969, %v1035
        %v1218 = vsel %vm773, %v970, %v1037
        %v1219 = vsel %vm773, %v971, %v1039
        %v1220 = vsel %vm773, %v972, %v1041
        %v1221 = vsel %vm773, %v973, %v1043
        %v1222 = vsel %vm773, %v974, %v1045
        %v1223 = vsel %vm773, %v975, %v1047
        %v1224 = vsel %vm822, %v1216, %v1065
        %v1225 = vsel %vm822, %v1217, %v1067
        %v1226 = vsel %vm822, %v1218, %v1069
        %v1227 = vsel %vm822, %v1219, %v1071
        %v1228 = vsel %vm822, %v1220, %v1073
        %v1229 = vsel %vm822, %v1221, %v1075
        %v1230 = vsel %vm822, %v1222, %v1077
        %v1231 = vsel %vm822, %v1223, %v1079
        %vm1232 = vcmask 195584
        %v1233 = vsel %vm1232, %v1224, %v1097
        %v1234 = vsel %vm1232, %v1225, %v1099
        %v1235 = vsel %vm1232, %v1226, %v1101
        %v1236 = vsel %vm1232, %v1227, %v1103
        %v1237 = vsel %vm1232, %v1228, %v1105
        %v1238 = vsel %vm1232, %v1229, %v1107
        %v1239 = vsel %vm1232, %v1230, %v1109
        %v1240 = vsel %vm1232, %v1231, %v1111
        %vm1241 = vcmask 261120
        %v1242 = vsel %vm1241, %v1233, %v1129
        %v1243 = vsel %vm1241, %v1234, %v1131
        %v1244 = vsel %vm1241, %v1235, %v1133
        %v1245 = vsel %vm1241, %v1236, %v1135
        %v1246 = vsel %vm1241, %v1237, %v1137
        %v1247 = vsel %vm1241, %v1238, %v1139
        %v1248 = vsel %vm1241, %v1239, %v1141
        %v1249 = vsel %vm1241, %v1240, %v1143
        %vm1250 = vcmask 326656
        %v1251 = vsel %vm1250, %v1242, %v1161
        %v1252 = vsel %vm1250, %v1243, %v1163
        %v1253 = vsel %vm1250, %v1244, %v1165
        %v1254 = vsel %vm1250, %v1245, %v1167
        %v1255 = vsel %vm1250, %v1246, %v1169
        %v1256 = vsel %vm1250, %v1247, %v1171
        %v1257 = vsel %vm1250, %v1248, %v1173
        %v1258 = vsel %vm1250, %v1249, %v1175
        %vm1259 = vcmask 392192
        %v1260 = vsel %vm1259, %v1251, %v1193
        %v1261 = vsel %vm1259, %v1252, %v1195
        %v1262 = vsel %vm1259, %v1253, %v1197
        %v1263 = vsel %vm1259, %v1254, %v1199
        %v1264 = vsel %vm1259, %v1255, %v1201
        %v1265 = vsel %vm1259, %v1256, %v1203
        %v1266 = vsel %vm1259, %v1257, %v1205
        %v1267 = vsel %vm1259, %v1258, %v1207
        %v1268 = vld [vmem:[#allocation11] sm:$0xff]
        %v1269 = vld [vmem:[#allocation11 + $0x8] sm:$0xff]
        %v1270 = vld [vmem:[#allocation11 + $0x10] sm:$0xff]
        %v1271 = vld [vmem:[#allocation11 + $0x18] sm:$0xff]
        %v1272 = vld [vmem:[#allocation11 + $0x20] sm:$0xff]
        %v1273 = vld [vmem:[#allocation11 + $0x28] sm:$0xff]
        %v1274 = vld [vmem:[#allocation11 + $0x30] sm:$0xff]
        %v1275 = vld [vmem:[#allocation13] sm:$0x1]
        %v1277 = vlaneseq
        %v1278 = vshrl.u32 %v1277, 7
        %v1279 = vsub.s32 0, %v1278
        %v1280 = vrot.slane %v1275, %v1279
        %vm1282 = vcmask 457728
        %v1284 = vsel %vm1282, %v1260, 0
        %v1287 = vsel %vm1282, %v1261, 0
        %v1290 = vsel %vm1282, %v1262, 0
        %v1293 = vsel %vm1282, %v1263, 0
        %v1296 = vsel %vm1282, %v1264, 0
        %v1299 = vsel %vm1282, %v1265, 0
        %v1302 = vsel %vm1282, %v1266, 0
        %v1305 = vsel %vm1282, %v1267, 0
        %1307 = vmatprep.subr.mxu0 0.0
        %1308 = vmatpush1.msra.mxu0 %v1268
        %1309 = vmatprep.subr.mxu0 0.0
        %1310 = vmatpush1.msra.mxu0 %v1269
        %1311 = vmatprep.subr.mxu0 0.0
        %1312 = vmatpush1.msra.mxu0 %v1270
        %1313 = vmatprep.subr.mxu0 0.0
        %1314 = vmatpush1.msra.mxu0 %v1271
        %1315 = vmatprep.subr.mxu0 0.0
        %1316 = vmatpush1.msra.mxu0 %v1272
        %1317 = vmatprep.subr.mxu0 0.0
        %1318 = vmatpush1.msra.mxu0 %v1273
        %1319 = vmatprep.subr.mxu0 0.0
        %1320 = vmatpush1.msra.mxu0 %v1274
        %1321 = vmatprep.subr.mxu0 0.0
        %1322 = vmatpush1.msra.mxu0 0.0
        %1323 = vmatprep.subr.mxu0 0.0
        %1324 = vmatpush1.msra.mxu0 0.0
        %1325 = vmatprep.subr.mxu0 0.0
        %1326 = vmatpush1.msra.mxu0 0.0
        %1327 = vmatprep.subr.mxu0 0.0
        %1328 = vmatpush1.msra.mxu0 0.0
        %1329 = vmatprep.subr.mxu0 0.0
        %1330 = vmatpush1.msra.mxu0 0.0
        %1331 = vmatprep.subr.mxu0 0.0
        %1332 = vmatpush1.msra.mxu0 0.0
        %1333 = vmatprep.subr.mxu0 0.0
        %1334 = vmatpush1.msra.mxu0 0.0
        %1335 = vmatprep.subr.mxu0 0.0
        %1336 = vmatpush1.msra.mxu0 0.0
        %1337 = vmatprep.subr.mxu0 0.0
        %1338 = vmatpush1.msra.mxu0 0.0
        %1339 = vmatprep.subr.mxu0 0.0
        %1340 = vmatpush1.msra.mxu0 0.0
        %1341 = vmatprep.subr.mxu0 0.0
        %1342 = vmatpush1.msra.mxu0 0.0
        %1343 = vmatprep.subr.mxu0 0.0
        %1344 = vmatpush1.msra.mxu0 0.0
        %1345 = vmatprep.subr.mxu0 0.0
        %1346 = vmatpush1.msra.mxu0 0.0
        %1347 = vmatprep.subr.mxu0 0.0
        %1348 = vmatpush1.msra.mxu0 0.0
        %1349 = vmatprep.subr.mxu0 0.0
        %1350 = vmatpush1.msra.mxu0 0.0
        %1351 = vmatprep.subr.mxu0 0.0
        %1352 = vmatpush1.msra.mxu0 0.0
        %1353 = vmatprep.subr.mxu0 0.0
        %1354 = vmatpush1.msra.mxu0 0.0
        %1355 = vmatprep.subr.mxu0 0.0
        %1356 = vmatpush1.msra.mxu0 0.0
        %1357 = vmatprep.subr.mxu0 0.0
        %1358 = vmatpush1.msra.mxu0 0.0
        %1359 = vmatprep.subr.mxu0 0.0
        %1360 = vmatpush1.msra.mxu0 0.0
        %1361 = vmatprep.subr.mxu0 0.0
        %1362 = vmatpush1.msra.mxu0 0.0
        %1363 = vmatprep.subr.mxu0 0.0
        %1364 = vmatpush1.msra.mxu0 0.0
        %1365 = vmatprep.subr.mxu0 0.0
        %1366 = vmatpush1.msra.mxu0 0.0
        %1367 = vmatprep.subr.mxu0 0.0
        %1368 = vmatpush1.msra.mxu0 0.0
        %1369 = vmatprep.subr.mxu0 0.0
        %1370 = vmatpush1.msra.mxu0 0.0
        %1371 = vmatprep.mubr.f32.mxu0 0.0
        %1372 = vmatmul.mubr.f32.gmra.mrb[0].mxu0 %v1284
        %v1373 = vpop.f32.mrb[0].mxu0
        %v1374 = vadd.f32 %v1280, %v1373
        %v1375 = vpop.f32.mrb[0].mxu0
        %1376 = vmatprep.mubr.f32.mxu0 0.0
        %1377 = vmatmul.mubr.f32.gmra.mrb[0].mxu0 %v1287
        %v1378 = vpop.f32.mrb[0].mxu0
        %v1379 = vadd.f32 %v1280, %v1378
        %v1380 = vpop.f32.mrb[0].mxu0
        %1381 = vmatprep.mubr.f32.mxu0 0.0
        %1382 = vmatmul.mubr.f32.gmra.mrb[0].mxu0 %v1290
        %v1383 = vpop.f32.mrb[0].mxu0
        %v1384 = vadd.f32 %v1280, %v1383
        %v1385 = vpop.f32.mrb[0].mxu0
        %1386 = vmatprep.mubr.f32.mxu0 0.0
        %1387 = vmatmul.mubr.f32.gmra.mrb[0].mxu0 %v1293
        %v1388 = vpop.f32.mrb[0].mxu0
        %v1389 = vadd.f32 %v1280, %v1388
        %v1390 = vpop.f32.mrb[0].mxu0
        %1391 = vmatprep.mubr.f32.mxu0 0.0
        %1392 = vmatmul.mubr.f32.gmra.mrb[0].mxu0 %v1296
        %v1393 = vpop.f32.mrb[0].mxu0
        %v1394 = vadd.f32 %v1280, %v1393
        %v1395 = vpop.f32.mrb[0].mxu0
        %1396 = vmatprep.mubr.f32.mxu0 0.0
        %1397 = vmatmul.mubr.f32.gmra.mrb[0].mxu0 %v1299
        %v1398 = vpop.f32.mrb[0].mxu0
        %v1399 = vadd.f32 %v1280, %v1398
        %v1400 = vpop.f32.mrb[0].mxu0
        %1401 = vmatprep.mubr.f32.mxu0 0.0
        %1402 = vmatmul.mubr.f32.gmra.mrb[0].mxu0 %v1302
        %v1403 = vpop.f32.mrb[0].mxu0
        %v1404 = vadd.f32 %v1280, %v1403
        %v1405 = vpop.f32.mrb[0].mxu0
        %1406 = vmatprep.mubr.f32.mxu0 0.0
        %1407 = vmatmul.mubr.f32.gmra.mrb[0].mxu0 %v1305
        %v1408 = vpop.f32.mrb[0].mxu0
        %v1409 = vadd.f32 %v1280, %v1408
        %v1410 = vpop.f32.mrb[0].mxu0
        %1411 = vdwg.mxu0
        %v1412 = vmax.f32 %v1374, 0.0
        %v1413 = vmax.f32 %v1379, 0.0
        %v1414 = vmax.f32 %v1384, 0.0
        %v1415 = vmax.f32 %v1389, 0.0
        %v1416 = vmax.f32 %v1394, 0.0
        %v1417 = vmax.f32 %v1399, 0.0
        %v1418 = vmax.f32 %v1404, 0.0
        %v1419 = vmax.f32 %v1409, 0.0
        %s1420 = scalar_lea.vmem [#allocation3], 24
        %1421 = vst.msk [vmem:[%s1420] sm:$0xff] %vm773, %v1412
        %1422 = vst.msk [vmem:[%s1420 + $0x8] sm:$0xff] %vm773, %v1413
        %1423 = vst.msk [vmem:[%s1420 + $0x10] sm:$0xff] %vm773, %v1414
        %1424 = vst.msk [vmem:[%s1420 + $0x18] sm:$0xff] %vm773, %v1415
        %1425 = vst.msk [vmem:[%s1420 + $0x20] sm:$0xff] %vm773, %v1416
        %1426 = vst.msk [vmem:[%s1420 + $0x28] sm:$0xff] %vm773, %v1417
        %1427 = vst.msk [vmem:[%s1420 + $0x30] sm:$0xff] %vm773, %v1418
        %1428 = vst.msk [vmem:[%s1420 + $0x38] sm:$0xff] %vm773, %v1419
        %v1429 = vld [vmem:[#allocation3] sm:$0xff]
        %v1430 = vld [vmem:[#allocation3 + $0x8] sm:$0xff]
        %v1431 = vld [vmem:[#allocation3 + $0x10] sm:$0xff]
        %v1432 = vld [vmem:[#allocation3 + $0x18] sm:$0xff]
        %v1433 = vld [vmem:[#allocation3 + $0x20] sm:$0xff]
        %v1434 = vld [vmem:[#allocation3 + $0x28] sm:$0xff]
        %v1435 = vld [vmem:[#allocation3 + $0x30] sm:$0xff]
        %v1436 = vld [vmem:[#allocation3 + $0x38] sm:$0xff]
        %s1437 = scalar_lea.vmem [#allocation3], 8
        %v1438 = vld [vmem:[%s1437] sm:$0xff]
        %v1439 = vld [vmem:[%s1437 + $0x8] sm:$0xff]
        %v1440 = vld [vmem:[%s1437 + $0x10] sm:$0xff]
        %v1441 = vld [vmem:[%s1437 + $0x18] sm:$0xff]
        %v1442 = vld [vmem:[%s1437 + $0x20] sm:$0xff]
        %v1443 = vld [vmem:[%s1437 + $0x28] sm:$0xff]
        %v1444 = vld [vmem:[%s1437 + $0x30] sm:$0xff]
        %v1445 = vld [vmem:[%s1437 + $0x38] sm:$0xff]
        %s1446 = scalar_lea.vmem [#allocation3], 16
        %v1447 = vld [vmem:[%s1446] sm:$0xff]
        %v1448 = vld [vmem:[%s1446 + $0x8] sm:$0xff]
        %v1449 = vld [vmem:[%s1446 + $0x10] sm:$0xff]
        %v1450 = vld [vmem:[%s1446 + $0x18] sm:$0xff]
        %v1451 = vld [vmem:[%s1446 + $0x20] sm:$0xff]
        %v1452 = vld [vmem:[%s1446 + $0x28] sm:$0xff]
        %v1453 = vld [vmem:[%s1446 + $0x30] sm:$0xff]
        %v1454 = vld [vmem:[%s1446 + $0x38] sm:$0xff]
        %v1455 = vld [vmem:[%s1420] sm:$0xff]
        %v1456 = vld [vmem:[%s1420 + $0x8] sm:$0xff]
        %v1457 = vld [vmem:[%s1420 + $0x10] sm:$0xff]
        %v1458 = vld [vmem:[%s1420 + $0x18] sm:$0xff]
        %v1459 = vld [vmem:[%s1420 + $0x20] sm:$0xff]
        %v1460 = vld [vmem:[%s1420 + $0x28] sm:$0xff]
        %v1461 = vld [vmem:[%s1420 + $0x30] sm:$0xff]
        %v1462 = vld [vmem:[%s1420 + $0x38] sm:$0xff]
        %s1463 = scalar_lea.vmem [#allocation3], 32
        %v1464 = vld [vmem:[%s1463] sm:$0xff]
        %v1465 = vld [vmem:[%s1463 + $0x8] sm:$0xff]
        %v1466 = vld [vmem:[%s1463 + $0x10] sm:$0xff]
        %v1467 = vld [vmem:[%s1463 + $0x18] sm:$0xff]
        %v1468 = vld [vmem:[%s1463 + $0x20] sm:$0xff]
        %v1469 = vld [vmem:[%s1463 + $0x28] sm:$0xff]
        %v1470 = vld [vmem:[%s1463 + $0x30] sm:$0xff]
        %v1471 = vld [vmem:[%s1463 + $0x38] sm:$0xff]
        %s1472 = scalar_lea.vmem [#allocation3], 40
        %v1473 = vld [vmem:[%s1472] sm:$0xff]
        %v1474 = vld [vmem:[%s1472 + $0x8] sm:$0xff]
        %v1475 = vld [vmem:[%s1472 + $0x10] sm:$0xff]
        %v1476 = vld [vmem:[%s1472 + $0x18] sm:$0xff]
        %v1477 = vld [vmem:[%s1472 + $0x20] sm:$0xff]
        %v1478 = vld [vmem:[%s1472 + $0x28] sm:$0xff]
        %v1479 = vld [vmem:[%s1472 + $0x30] sm:$0xff]
        %v1480 = vld [vmem:[%s1472 + $0x38] sm:$0xff]
        %s1481 = scalar_lea.vmem [#allocation3], 48
        %v1482 = vld [vmem:[%s1481] sm:$0xff]
        %v1483 = vld [vmem:[%s1481 + $0x8] sm:$0xff]
        %v1484 = vld [vmem:[%s1481 + $0x10] sm:$0xff]
        %v1485 = vld [vmem:[%s1481 + $0x18] sm:$0xff]
        %v1486 = vld [vmem:[%s1481 + $0x20] sm:$0xff]
        %v1487 = vld [vmem:[%s1481 + $0x28] sm:$0xff]
        %v1488 = vld [vmem:[%s1481 + $0x30] sm:$0xff]
        %v1489 = vld [vmem:[%s1481 + $0x38] sm:$0xff]
        %1498 = vrot.lane.b32.xlu0 %v1438, 8
        %v1499 = vpop.permute.xlu0 %1498
        %1500 = vrot.lane.b32.xlu0 %v1439, 8
        %v1501 = vpop.permute.xlu0 %1500
        %1502 = vrot.lane.b32.xlu0 %v1440, 8
        %v1503 = vpop.permute.xlu0 %1502
        %1504 = vrot.lane.b32.xlu0 %v1441, 8
        %v1505 = vpop.permute.xlu0 %1504
        %1506 = vrot.lane.b32.xlu0 %v1442, 8
        %v1507 = vpop.permute.xlu0 %1506
        %1508 = vrot.lane.b32.xlu0 %v1443, 8
        %v1509 = vpop.permute.xlu0 %1508
        %1510 = vrot.lane.b32.xlu0 %v1444, 8
        %v1511 = vpop.permute.xlu0 %1510
        %1512 = vrot.lane.b32.xlu0 %v1445, 8
        %v1513 = vpop.permute.xlu0 %1512
        %1530 = vrot.lane.b32.xlu0 %v1447, 16
        %v1531 = vpop.permute.xlu0 %1530
        %1532 = vrot.lane.b32.xlu0 %v1448, 16
        %v1533 = vpop.permute.xlu0 %1532
        %1534 = vrot.lane.b32.xlu0 %v1449, 16
        %v1535 = vpop.permute.xlu0 %1534
        %1536 = vrot.lane.b32.xlu0 %v1450, 16
        %v1537 = vpop.permute.xlu0 %1536
        %1538 = vrot.lane.b32.xlu0 %v1451, 16
        %v1539 = vpop.permute.xlu0 %1538
        %1540 = vrot.lane.b32.xlu0 %v1452, 16
        %v1541 = vpop.permute.xlu0 %1540
        %1542 = vrot.lane.b32.xlu0 %v1453, 16
        %v1543 = vpop.permute.xlu0 %1542
        %1544 = vrot.lane.b32.xlu0 %v1454, 16
        %v1545 = vpop.permute.xlu0 %1544
        %1562 = vrot.lane.b32.xlu0 %v1455, 24
        %v1563 = vpop.permute.xlu0 %1562
        %1564 = vrot.lane.b32.xlu0 %v1456, 24
        %v1565 = vpop.permute.xlu0 %1564
        %1566 = vrot.lane.b32.xlu0 %v1457, 24
        %v1567 = vpop.permute.xlu0 %1566
        %1568 = vrot.lane.b32.xlu0 %v1458, 24
        %v1569 = vpop.permute.xlu0 %1568
        %1570 = vrot.lane.b32.xlu0 %v1459, 24
        %v1571 = vpop.permute.xlu0 %1570
        %1572 = vrot.lane.b32.xlu0 %v1460, 24
        %v1573 = vpop.permute.xlu0 %1572
        %1574 = vrot.lane.b32.xlu0 %v1461, 24
        %v1575 = vpop.permute.xlu0 %1574
        %1576 = vrot.lane.b32.xlu0 %v1462, 24
        %v1577 = vpop.permute.xlu0 %1576
        %1594 = vrot.lane.b32.xlu0 %v1464, 32
        %v1595 = vpop.permute.xlu0 %1594
        %1596 = vrot.lane.b32.xlu0 %v1465, 32
        %v1597 = vpop.permute.xlu0 %1596
        %1598 = vrot.lane.b32.xlu0 %v1466, 32
        %v1599 = vpop.permute.xlu0 %1598
        %1600 = vrot.lane.b32.xlu0 %v1467, 32
        %v1601 = vpop.permute.xlu0 %1600
        %1602 = vrot.lane.b32.xlu0 %v1468, 32
        %v1603 = vpop.permute.xlu0 %1602
        %1604 = vrot.lane.b32.xlu0 %v1469, 32
        %v1605 = vpop.permute.xlu0 %1604
        %1606 = vrot.lane.b32.xlu0 %v1470, 32
        %v1607 = vpop.permute.xlu0 %1606
        %1608 = vrot.lane.b32.xlu0 %v1471, 32
        %v1609 = vpop.permute.xlu0 %1608
        %1626 = vrot.lane.b32.xlu0 %v1473, 40
        %v1627 = vpop.permute.xlu0 %1626
        %1628 = vrot.lane.b32.xlu0 %v1474, 40
        %v1629 = vpop.permute.xlu0 %1628
        %1630 = vrot.lane.b32.xlu0 %v1475, 40
        %v1631 = vpop.permute.xlu0 %1630
        %1632 = vrot.lane.b32.xlu0 %v1476, 40
        %v1633 = vpop.permute.xlu0 %1632
        %1634 = vrot.lane.b32.xlu0 %v1477, 40
        %v1635 = vpop.permute.xlu0 %1634
        %1636 = vrot.lane.b32.xlu0 %v1478, 40
        %v1637 = vpop.permute.xlu0 %1636
        %1638 = vrot.lane.b32.xlu0 %v1479, 40
        %v1639 = vpop.permute.xlu0 %1638
        %1640 = vrot.lane.b32.xlu0 %v1480, 40
        %v1641 = vpop.permute.xlu0 %1640
        %1658 = vrot.lane.b32.xlu0 %v1482, 48
        %v1659 = vpop.permute.xlu0 %1658
        %1660 = vrot.lane.b32.xlu0 %v1483, 48
        %v1661 = vpop.permute.xlu0 %1660
        %1662 = vrot.lane.b32.xlu0 %v1484, 48
        %v1663 = vpop.permute.xlu0 %1662
        %1664 = vrot.lane.b32.xlu0 %v1485, 48
        %v1665 = vpop.permute.xlu0 %1664
        %1666 = vrot.lane.b32.xlu0 %v1486, 48
        %v1667 = vpop.permute.xlu0 %1666
        %1668 = vrot.lane.b32.xlu0 %v1487, 48
        %v1669 = vpop.permute.xlu0 %1668
        %1670 = vrot.lane.b32.xlu0 %v1488, 48
        %v1671 = vpop.permute.xlu0 %1670
        %1672 = vrot.lane.b32.xlu0 %v1489, 48
        %v1673 = vpop.permute.xlu0 %1672
        %v1682 = vsel %vm773, %v1429, %v1499
        %v1683 = vsel %vm773, %v1430, %v1501
        %v1684 = vsel %vm773, %v1431, %v1503
        %v1685 = vsel %vm773, %v1432, %v1505
        %v1686 = vsel %vm773, %v1433, %v1507
        %v1687 = vsel %vm773, %v1434, %v1509
        %v1688 = vsel %vm773, %v1435, %v1511
        %v1689 = vsel %vm773, %v1436, %v1513
        %v1690 = vsel %vm822, %v1682, %v1531
        %v1691 = vsel %vm822, %v1683, %v1533
        %v1692 = vsel %vm822, %v1684, %v1535
        %v1693 = vsel %vm822, %v1685, %v1537
        %v1694 = vsel %vm822, %v1686, %v1539
        %v1695 = vsel %vm822, %v1687, %v1541
        %v1696 = vsel %vm822, %v1688, %v1543
        %v1697 = vsel %vm822, %v1689, %v1545
        %v1698 = vsel %vm1232, %v1690, %v1563
        %v1699 = vsel %vm1232, %v1691, %v1565
        %v1700 = vsel %vm1232, %v1692, %v1567
        %v1701 = vsel %vm1232, %v1693, %v1569
        %v1702 = vsel %vm1232, %v1694, %v1571
        %v1703 = vsel %vm1232, %v1695, %v1573
        %v1704 = vsel %vm1232, %v1696, %v1575
        %v1705 = vsel %vm1232, %v1697, %v1577
        %v1706 = vsel %vm1241, %v1698, %v1595
        %v1707 = vsel %vm1241, %v1699, %v1597
        %v1708 = vsel %vm1241, %v1700, %v1599
        %v1709 = vsel %vm1241, %v1701, %v1601
        %v1710 = vsel %vm1241, %v1702, %v1603
        %v1711 = vsel %vm1241, %v1703, %v1605
        %v1712 = vsel %vm1241, %v1704, %v1607
        %v1713 = vsel %vm1241, %v1705, %v1609
        %v1714 = vsel %vm1250, %v1706, %v1627
        %v1715 = vsel %vm1250, %v1707, %v1629
        %v1716 = vsel %vm1250, %v1708, %v1631
        %v1717 = vsel %vm1250, %v1709, %v1633
        %v1718 = vsel %vm1250, %v1710, %v1635
        %v1719 = vsel %vm1250, %v1711, %v1637
        %v1720 = vsel %vm1250, %v1712, %v1639
        %v1721 = vsel %vm1250, %v1713, %v1641
        %v1722 = vsel %vm1259, %v1714, %v1659
        %v1723 = vsel %vm1259, %v1715, %v1661
        %v1724 = vsel %vm1259, %v1716, %v1663
        %v1725 = vsel %vm1259, %v1717, %v1665
        %v1726 = vsel %vm1259, %v1718, %v1667
        %v1727 = vsel %vm1259, %v1719, %v1669
        %v1728 = vsel %vm1259, %v1720, %v1671
        %v1729 = vsel %vm1259, %v1721, %v1673
        %v1730 = vld [vmem:[#allocation14] sm:$0xff]
        %v1731 = vld [vmem:[#allocation14 + $0x8] sm:$0xff]
        %v1732 = vld [vmem:[#allocation14 + $0x10] sm:$0xff]
        %v1733 = vld [vmem:[#allocation14 + $0x18] sm:$0xff]
        %v1734 = vld [vmem:[#allocation14 + $0x20] sm:$0xff]
        %v1735 = vld [vmem:[#allocation14 + $0x28] sm:$0xff]
        %v1736 = vld [vmem:[#allocation14 + $0x30] sm:$0xff]
        %v1737 = vld [vmem:[#allocation16] sm:$0x1]
        %v1739 = vlaneseq
        %v1740 = vshrl.u32 %v1739, 7
        %v1741 = vsub.s32 0, %v1740
        %v1742 = vrot.slane %v1737, %v1741
        %v1745 = vsel %vm1282, %v1722, 0
        %v1748 = vsel %vm1282, %v1723, 0
        %v1751 = vsel %vm1282, %v1724, 0
        %v1754 = vsel %vm1282, %v1725, 0
        %v1757 = vsel %vm1282, %v1726, 0
        %v1760 = vsel %vm1282, %v1727, 0
        %v1763 = vsel %vm1282, %v1728, 0
        %v1766 = vsel %vm1282, %v1729, 0
        %1768 = vmatprep.subr.mxu0 0.0
        %1769 = vmatpush1.msra.mxu0 %v1730
        %1770 = vmatprep.subr.mxu0 0.0
        %1771 = vmatpush1.msra.mxu0 %v1731
        %1772 = vmatprep.subr.mxu0 0.0
        %1773 = vmatpush1.msra.mxu0 %v1732
        %1774 = vmatprep.subr.mxu0 0.0
        %1775 = vmatpush1.msra.mxu0 %v1733
        %1776 = vmatprep.subr.mxu0 0.0
        %1777 = vmatpush1.msra.mxu0 %v1734
        %1778 = vmatprep.subr.mxu0 0.0
        %1779 = vmatpush1.msra.mxu0 %v1735
        %1780 = vmatprep.subr.mxu0 0.0
        %1781 = vmatpush1.msra.mxu0 %v1736
        %1782 = vmatprep.subr.mxu0 0.0
        %1783 = vmatpush1.msra.mxu0 0.0
        %1784 = vmatprep.subr.mxu0 0.0
        %1785 = vmatpush1.msra.mxu0 0.0
        %1786 = vmatprep.subr.mxu0 0.0
        %1787 = vmatpush1.msra.mxu0 0.0
        %1788 = vmatprep.subr.mxu0 0.0
        %1789 = vmatpush1.msra.mxu0 0.0
        %1790 = vmatprep.subr.mxu0 0.0
        %1791 = vmatpush1.msra.mxu0 0.0
        %1792 = vmatprep.subr.mxu0 0.0
        %1793 = vmatpush1.msra.mxu0 0.0
        %1794 = vmatprep.subr.mxu0 0.0
        %1795 = vmatpush1.msra.mxu0 0.0
        %1796 = vmatprep.subr.mxu0 0.0
        %1797 = vmatpush1.msra.mxu0 0.0
        %1798 = vmatprep.subr.mxu0 0.0
        %1799 = vmatpush1.msra.mxu0 0.0
        %1800 = vmatprep.subr.mxu0 0.0
        %1801 = vmatpush1.msra.mxu0 0.0
        %1802 = vmatprep.subr.mxu0 0.0
        %1803 = vmatpush1.msra.mxu0 0.0
        %1804 = vmatprep.subr.mxu0 0.0
        %1805 = vmatpush1.msra.mxu0 0.0
        %1806 = vmatprep.subr.mxu0 0.0
        %1807 = vmatpush1.msra.mxu0 0.0
        %1808 = vmatprep.subr.mxu0 0.0
        %1809 = vmatpush1.msra.mxu0 0.0
        %1810 = vmatprep.subr.mxu0 0.0
        %1811 = vmatpush1.msra.mxu0 0.0
        %1812 = vmatprep.subr.mxu0 0.0
        %1813 = vmatpush1.msra.mxu0 0.0
        %1814 = vmatprep.subr.mxu0 0.0
        %1815 = vmatpush1.msra.mxu0 0.0
        %1816 = vmatprep.subr.mxu0 0.0
        %1817 = vmatpush1.msra.mxu0 0.0
        %1818 = vmatprep.subr.mxu0 0.0
        %1819 = vmatpush1.msra.mxu0 0.0
        %1820 = vmatprep.subr.mxu0 0.0
        %1821 = vmatpush1.msra.mxu0 0.0
        %1822 = vmatprep.subr.mxu0 0.0
        %1823 = vmatpush1.msra.mxu0 0.0
        %1824 = vmatprep.subr.mxu0 0.0
        %1825 = vmatpush1.msra.mxu0 0.0
        %1826 = vmatprep.subr.mxu0 0.0
        %1827 = vmatpush1.msra.mxu0 0.0
        %1828 = vmatprep.subr.mxu0 0.0
        %1829 = vmatpush1.msra.mxu0 0.0
        %1830 = vmatprep.subr.mxu0 0.0
        %1831 = vmatpush1.msra.mxu0 0.0
        %1832 = vmatprep.mubr.f32.mxu0 0.0
        %1833 = vmatmul.mubr.f32.gmra.mrb[0].mxu0 %v1745
        %v1834 = vpop.f32.mrb[0].mxu0
        %v1835 = vadd.f32 %v1742, %v1834
        %v1836 = vpop.f32.mrb[0].mxu0
        %1837 = vmatprep.mubr.f32.mxu0 0.0
        %1838 = vmatmul.mubr.f32.gmra.mrb[0].mxu0 %v1748
        %v1839 = vpop.f32.mrb[0].mxu0
        %v1840 = vadd.f32 %v1742, %v1839
        %v1841 = vpop.f32.mrb[0].mxu0
        %1842 = vmatprep.mubr.f32.mxu0 0.0
        %1843 = vmatmul.mubr.f32.gmra.mrb[0].mxu0 %v1751
        %v1844 = vpop.f32.mrb[0].mxu0
        %v1845 = vadd.f32 %v1742, %v1844
        %v1846 = vpop.f32.mrb[0].mxu0
        %1847 = vmatprep.mubr.f32.mxu0 0.0
        %1848 = vmatmul.mubr.f32.gmra.mrb[0].mxu0 %v1754
        %v1849 = vpop.f32.mrb[0].mxu0
        %v1850 = vadd.f32 %v1742, %v1849
        %v1851 = vpop.f32.mrb[0].mxu0
        %1852 = vmatprep.mubr.f32.mxu0 0.0
        %1853 = vmatmul.mubr.f32.gmra.mrb[0].mxu0 %v1757
        %v1854 = vpop.f32.mrb[0].mxu0
        %v1855 = vadd.f32 %v1742, %v1854
        %v1856 = vpop.f32.mrb[0].mxu0
        %1857 = vmatprep.mubr.f32.mxu0 0.0
        %1858 = vmatmul.mubr.f32.gmra.mrb[0].mxu0 %v1760
        %v1859 = vpop.f32.mrb[0].mxu0
        %v1860 = vadd.f32 %v1742, %v1859
        %v1861 = vpop.f32.mrb[0].mxu0
        %1862 = vmatprep.mubr.f32.mxu0 0.0
        %1863 = vmatmul.mubr.f32.gmra.mrb[0].mxu0 %v1763
        %v1864 = vpop.f32.mrb[0].mxu0
        %v1865 = vadd.f32 %v1742, %v1864
        %v1866 = vpop.f32.mrb[0].mxu0
        %1867 = vmatprep.mubr.f32.mxu0 0.0
        %1868 = vmatmul.mubr.f32.gmra.mrb[0].mxu0 %v1766
        %v1869 = vpop.f32.mrb[0].mxu0
        %v1870 = vadd.f32 %v1742, %v1869
        %v1871 = vpop.f32.mrb[0].mxu0
        %1872 = vdwg.mxu0
        %v1873 = vmax.f32 %v1835, 0.0
        %v1874 = vmax.f32 %v1840, 0.0
        %v1875 = vmax.f32 %v1845, 0.0
        %v1876 = vmax.f32 %v1850, 0.0
        %v1877 = vmax.f32 %v1855, 0.0
        %v1878 = vmax.f32 %v1860, 0.0
        %v1879 = vmax.f32 %v1865, 0.0
        %v1880 = vmax.f32 %v1870, 0.0
        %1881 = vst.msk [vmem:[#allocation2 + $0x3] sm:$0xff] %vm773, %v1873
        %1882 = vst.msk [vmem:[#allocation2 + $0x13] sm:$0xff] %vm773, %v1874
        %1883 = vst.msk [vmem:[#allocation2 + $0x23] sm:$0xff] %vm773, %v1875
        %1884 = vst.msk [vmem:[#allocation2 + $0x33] sm:$0xff] %vm773, %v1876
        %1885 = vst.msk [vmem:[#allocation2 + $0x43] sm:$0xff] %vm773, %v1877
        %1886 = vst.msk [vmem:[#allocation2 + $0x53] sm:$0xff] %vm773, %v1878
        %1887 = vst.msk [vmem:[#allocation2 + $0x63] sm:$0xff] %vm773, %v1879
        %1888 = vst.msk [vmem:[#allocation2 + $0x73] sm:$0xff] %vm773, %v1880
        %v1889 = vld [vmem:[#allocation2] sm:$0xff]
        %v1890 = vld [vmem:[#allocation2 + $0x10] sm:$0xff]
        %v1891 = vld [vmem:[#allocation2 + $0x20] sm:$0xff]
        %v1892 = vld [vmem:[#allocation2 + $0x30] sm:$0xff]
        %v1893 = vld [vmem:[#allocation2 + $0x40] sm:$0xff]
        %v1894 = vld [vmem:[#allocation2 + $0x50] sm:$0xff]
        %v1895 = vld [vmem:[#allocation2 + $0x60] sm:$0xff]
        %v1896 = vld [vmem:[#allocation2 + $0x70] sm:$0xff]
        %v1897 = vld [vmem:[#allocation2 + $0x1] sm:$0xff]
        %v1898 = vld [vmem:[#allocation2 + $0x11] sm:$0xff]
        %v1899 = vld [vmem:[#allocation2 + $0x21] sm:$0xff]
        %v1900 = vld [vmem:[#allocation2 + $0x31] sm:$0xff]
        %v1901 = vld [vmem:[#allocation2 + $0x41] sm:$0xff]
        %v1902 = vld [vmem:[#allocation2 + $0x51] sm:$0xff]
        %v1903 = vld [vmem:[#allocation2 + $0x61] sm:$0xff]
        %v1904 = vld [vmem:[#allocation2 + $0x71] sm:$0xff]
        %v1905 = vld [vmem:[#allocation2 + $0x2] sm:$0xff]
        %v1906 = vld [vmem:[#allocation2 + $0x12] sm:$0xff]
        %v1907 = vld [vmem:[#allocation2 + $0x22] sm:$0xff]
        %v1908 = vld [vmem:[#allocation2 + $0x32] sm:$0xff]
        %v1909 = vld [vmem:[#allocation2 + $0x42] sm:$0xff]
        %v1910 = vld [vmem:[#allocation2 + $0x52] sm:$0xff]
        %v1911 = vld [vmem:[#allocation2 + $0x62] sm:$0xff]
        %v1912 = vld [vmem:[#allocation2 + $0x72] sm:$0xff]
        %v1913 = vld [vmem:[#allocation2 + $0x3] sm:$0xff]
        %v1914 = vld [vmem:[#allocation2 + $0x13] sm:$0xff]
        %v1915 = vld [vmem:[#allocation2 + $0x23] sm:$0xff]
        %v1916 = vld [vmem:[#allocation2 + $0x33] sm:$0xff]
        %v1917 = vld [vmem:[#allocation2 + $0x43] sm:$0xff]
        %v1918 = vld [vmem:[#allocation2 + $0x53] sm:$0xff]
        %v1919 = vld [vmem:[#allocation2 + $0x63] sm:$0xff]
        %v1920 = vld [vmem:[#allocation2 + $0x73] sm:$0xff]
        %v1921 = vld [vmem:[#allocation2 + $0x4] sm:$0xff]
        %v1922 = vld [vmem:[#allocation2 + $0x14] sm:$0xff]
        %v1923 = vld [vmem:[#allocation2 + $0x24] sm:$0xff]
        %v1924 = vld [vmem:[#allocation2 + $0x34] sm:$0xff]
        %v1925 = vld [vmem:[#allocation2 + $0x44] sm:$0xff]
        %v1926 = vld [vmem:[#allocation2 + $0x54] sm:$0xff]
        %v1927 = vld [vmem:[#allocation2 + $0x64] sm:$0xff]
        %v1928 = vld [vmem:[#allocation2 + $0x74] sm:$0xff]
        %v1929 = vld [vmem:[#allocation2 + $0x5] sm:$0xff]
        %v1930 = vld [vmem:[#allocation2 + $0x15] sm:$0xff]
        %v1931 = vld [vmem:[#allocation2 + $0x25] sm:$0xff]
        %v1932 = vld [vmem:[#allocation2 + $0x35] sm:$0xff]
        %v1933 = vld [vmem:[#allocation2 + $0x45] sm:$0xff]
        %v1934 = vld [vmem:[#allocation2 + $0x55] sm:$0xff]
        %v1935 = vld [vmem:[#allocation2 + $0x65] sm:$0xff]
        %v1936 = vld [vmem:[#allocation2 + $0x75] sm:$0xff]
        %v1937 = vld [vmem:[#allocation2 + $0x6] sm:$0xff]
        %v1938 = vld [vmem:[#allocation2 + $0x16] sm:$0xff]
        %v1939 = vld [vmem:[#allocation2 + $0x26] sm:$0xff]
        %v1940 = vld [vmem:[#allocation2 + $0x36] sm:$0xff]
        %v1941 = vld [vmem:[#allocation2 + $0x46] sm:$0xff]
        %v1942 = vld [vmem:[#allocation2 + $0x56] sm:$0xff]
        %v1943 = vld [vmem:[#allocation2 + $0x66] sm:$0xff]
        %v1944 = vld [vmem:[#allocation2 + $0x76] sm:$0xff]
        %1953 = vrot.lane.b32.xlu0 %v1897, 8
        %v1954 = vpop.permute.xlu0 %1953
        %1955 = vrot.lane.b32.xlu0 %v1898, 8
        %v1956 = vpop.permute.xlu0 %1955
        %1957 = vrot.lane.b32.xlu0 %v1899, 8
        %v1958 = vpop.permute.xlu0 %1957
        %1959 = vrot.lane.b32.xlu0 %v1900, 8
        %v1960 = vpop.permute.xlu0 %1959
        %1961 = vrot.lane.b32.xlu0 %v1901, 8
        %v1962 = vpop.permute.xlu0 %1961
        %1963 = vrot.lane.b32.xlu0 %v1902, 8
        %v1964 = vpop.permute.xlu0 %1963
        %1965 = vrot.lane.b32.xlu0 %v1903, 8
        %v1966 = vpop.permute.xlu0 %1965
        %1967 = vrot.lane.b32.xlu0 %v1904, 8
        %v1968 = vpop.permute.xlu0 %1967
        %1985 = vrot.lane.b32.xlu0 %v1905, 16
        %v1986 = vpop.permute.xlu0 %1985
        %1987 = vrot.lane.b32.xlu0 %v1906, 16
        %v1988 = vpop.permute.xlu0 %1987
        %1989 = vrot.lane.b32.xlu0 %v1907, 16
        %v1990 = vpop.permute.xlu0 %1989
        %1991 = vrot.lane.b32.xlu0 %v1908, 16
        %v1992 = vpop.permute.xlu0 %1991
        %1993 = vrot.lane.b32.xlu0 %v1909, 16
        %v1994 = vpop.permute.xlu0 %1993
        %1995 = vrot.lane.b32.xlu0 %v1910, 16
        %v1996 = vpop.permute.xlu0 %1995
        %1997 = vrot.lane.b32.xlu0 %v1911, 16
        %v1998 = vpop.permute.xlu0 %1997
        %1999 = vrot.lane.b32.xlu0 %v1912, 16
        %v2000 = vpop.permute.xlu0 %1999
        %2017 = vrot.lane.b32.xlu0 %v1913, 24
        %v2018 = vpop.permute.xlu0 %2017
        %2019 = vrot.lane.b32.xlu0 %v1914, 24
        %v2020 = vpop.permute.xlu0 %2019
        %2021 = vrot.lane.b32.xlu0 %v1915, 24
        %v2022 = vpop.permute.xlu0 %2021
        %2023 = vrot.lane.b32.xlu0 %v1916, 24
        %v2024 = vpop.permute.xlu0 %2023
        %2025 = vrot.lane.b32.xlu0 %v1917, 24
        %v2026 = vpop.permute.xlu0 %2025
        %2027 = vrot.lane.b32.xlu0 %v1918, 24
        %v2028 = vpop.permute.xlu0 %2027
        %2029 = vrot.lane.b32.xlu0 %v1919, 24
        %v2030 = vpop.permute.xlu0 %2029
        %2031 = vrot.lane.b32.xlu0 %v1920, 24
        %v2032 = vpop.permute.xlu0 %2031
        %2049 = vrot.lane.b32.xlu0 %v1921, 32
        %v2050 = vpop.permute.xlu0 %2049
        %2051 = vrot.lane.b32.xlu0 %v1922, 32
        %v2052 = vpop.permute.xlu0 %2051
        %2053 = vrot.lane.b32.xlu0 %v1923, 32
        %v2054 = vpop.permute.xlu0 %2053
        %2055 = vrot.lane.b32.xlu0 %v1924, 32
        %v2056 = vpop.permute.xlu0 %2055
        %2057 = vrot.lane.b32.xlu0 %v1925, 32
        %v2058 = vpop.permute.xlu0 %2057
        %2059 = vrot.lane.b32.xlu0 %v1926, 32
        %v2060 = vpop.permute.xlu0 %2059
        %2061 = vrot.lane.b32.xlu0 %v1927, 32
        %v2062 = vpop.permute.xlu0 %2061
        %2063 = vrot.lane.b32.xlu0 %v1928, 32
        %v2064 = vpop.permute.xlu0 %2063
        %2081 = vrot.lane.b32.xlu0 %v1929, 40
        %v2082 = vpop.permute.xlu0 %2081
        %2083 = vrot.lane.b32.xlu0 %v1930, 40
        %v2084 = vpop.permute.xlu0 %2083
        %2085 = vrot.lane.b32.xlu0 %v1931, 40
        %v2086 = vpop.permute.xlu0 %2085
        %2087 = vrot.lane.b32.xlu0 %v1932, 40
        %v2088 = vpop.permute.xlu0 %2087
        %2089 = vrot.lane.b32.xlu0 %v1933, 40
        %v2090 = vpop.permute.xlu0 %2089
        %2091 = vrot.lane.b32.xlu0 %v1934, 40
        %v2092 = vpop.permute.xlu0 %2091
        %2093 = vrot.lane.b32.xlu0 %v1935, 40
        %v2094 = vpop.permute.xlu0 %2093
        %2095 = vrot.lane.b32.xlu0 %v1936, 40
        %v2096 = vpop.permute.xlu0 %2095
        %2113 = vrot.lane.b32.xlu0 %v1937, 48
        %v2114 = vpop.permute.xlu0 %2113
        %2115 = vrot.lane.b32.xlu0 %v1938, 48
        %v2116 = vpop.permute.xlu0 %2115
        %2117 = vrot.lane.b32.xlu0 %v1939, 48
        %v2118 = vpop.permute.xlu0 %2117
        %2119 = vrot.lane.b32.xlu0 %v1940, 48
        %v2120 = vpop.permute.xlu0 %2119
        %2121 = vrot.lane.b32.xlu0 %v1941, 48
        %v2122 = vpop.permute.xlu0 %2121
        %2123 = vrot.lane.b32.xlu0 %v1942, 48
        %v2124 = vpop.permute.xlu0 %2123
        %2125 = vrot.lane.b32.xlu0 %v1943, 48
        %v2126 = vpop.permute.xlu0 %2125
        %2127 = vrot.lane.b32.xlu0 %v1944, 48
        %v2128 = vpop.permute.xlu0 %2127
        %v2137 = vsel %vm773, %v1889, %v1954
        %v2138 = vsel %vm773, %v1890, %v1956
        %v2139 = vsel %vm773, %v1891, %v1958
        %v2140 = vsel %vm773, %v1892, %v1960
        %v2141 = vsel %vm773, %v1893, %v1962
        %v2142 = vsel %vm773, %v1894, %v1964
        %v2143 = vsel %vm773, %v1895, %v1966
        %v2144 = vsel %vm773, %v1896, %v1968
        %v2145 = vsel %vm822, %v2137, %v1986
        %v2146 = vsel %vm822, %v2138, %v1988
        %v2147 = vsel %vm822, %v2139, %v1990
        %v2148 = vsel %vm822, %v2140, %v1992
        %v2149 = vsel %vm822, %v2141, %v1994
        %v2150 = vsel %vm822, %v2142, %v1996
        %v2151 = vsel %vm822, %v2143, %v1998
        %v2152 = vsel %vm822, %v2144, %v2000
        %v2153 = vsel %vm1232, %v2145, %v2018
        %v2154 = vsel %vm1232, %v2146, %v2020
        %v2155 = vsel %vm1232, %v2147, %v2022
        %v2156 = vsel %vm1232, %v2148, %v2024
        %v2157 = vsel %vm1232, %v2149, %v2026
        %v2158 = vsel %vm1232, %v2150, %v2028
        %v2159 = vsel %vm1232, %v2151, %v2030
        %v2160 = vsel %vm1232, %v2152, %v2032
        %v2161 = vsel %vm1241, %v2153, %v2050
        %v2162 = vsel %vm1241, %v2154, %v2052
        %v2163 = vsel %vm1241, %v2155, %v2054
        %v2164 = vsel %vm1241, %v2156, %v2056
        %v2165 = vsel %vm1241, %v2157, %v2058
        %v2166 = vsel %vm1241, %v2158, %v2060
        %v2167 = vsel %vm1241, %v2159, %v2062
        %v2168 = vsel %vm1241, %v2160, %v2064
        %v2169 = vsel %vm1250, %v2161, %v2082
        %v2170 = vsel %vm1250, %v2162, %v2084
        %v2171 = vsel %vm1250, %v2163, %v2086
        %v2172 = vsel %vm1250, %v2164, %v2088
        %v2173 = vsel %vm1250, %v2165, %v2090
        %v2174 = vsel %vm1250, %v2166, %v2092
        %v2175 = vsel %vm1250, %v2167, %v2094
        %v2176 = vsel %vm1250, %v2168, %v2096
        %v2177 = vsel %vm1259, %v2169, %v2114
        %v2178 = vsel %vm1259, %v2170, %v2116
        %v2179 = vsel %vm1259, %v2171, %v2118
        %v2180 = vsel %vm1259, %v2172, %v2120
        %v2181 = vsel %vm1259, %v2173, %v2122
        %v2182 = vsel %vm1259, %v2174, %v2124
        %v2183 = vsel %vm1259, %v2175, %v2126
        %v2184 = vsel %vm1259, %v2176, %v2128
        %v2185 = vld [vmem:[#allocation17] sm:$0xff]
        %v2186 = vld [vmem:[#allocation17 + $0x8] sm:$0xff]
        %v2187 = vld [vmem:[#allocation17 + $0x10] sm:$0xff]
        %v2188 = vld [vmem:[#allocation17 + $0x18] sm:$0xff]
        %v2189 = vld [vmem:[#allocation17 + $0x20] sm:$0xff]
        %v2190 = vld [vmem:[#allocation17 + $0x28] sm:$0xff]
        %v2191 = vld [vmem:[#allocation17 + $0x30] sm:$0xff]
        %v2192 = vld [vmem:[#allocation19] sm:$0x1]
        %v2194 = vlaneseq
        %v2195 = vshrl.u32 %v2194, 7
        %v2196 = vsub.s32 0, %v2195
        %v2197 = vrot.slane %v2192, %v2196
        %v2200 = vsel %vm1282, %v2177, 0
        %v2203 = vsel %vm1282, %v2178, 0
        %v2206 = vsel %vm1282, %v2179, 0
        %v2209 = vsel %vm1282, %v2180, 0
        %v2212 = vsel %vm1282, %v2181, 0
        %v2215 = vsel %vm1282, %v2182, 0
        %v2218 = vsel %vm1282, %v2183, 0
        %v2221 = vsel %vm1282, %v2184, 0
        %2223 = vmatprep.subr.mxu0 0.0
        %2224 = vmatpush1.msra.mxu0 %v2185
        %2225 = vmatprep.subr.mxu0 0.0
        %2226 = vmatpush1.msra.mxu0 %v2186
        %2227 = vmatprep.subr.mxu0 0.0
        %2228 = vmatpush1.msra.mxu0 %v2187
        %2229 = vmatprep.subr.mxu0 0.0
        %2230 = vmatpush1.msra.mxu0 %v2188
        %2231 = vmatprep.subr.mxu0 0.0
        %2232 = vmatpush1.msra.mxu0 %v2189
        %2233 = vmatprep.subr.mxu0 0.0
        %2234 = vmatpush1.msra.mxu0 %v2190
        %2235 = vmatprep.subr.mxu0 0.0
        %2236 = vmatpush1.msra.mxu0 %v2191
        %2237 = vmatprep.subr.mxu0 0.0
        %2238 = vmatpush1.msra.mxu0 0.0
        %2239 = vmatprep.subr.mxu0 0.0
        %2240 = vmatpush1.msra.mxu0 0.0
        %2241 = vmatprep.subr.mxu0 0.0
        %2242 = vmatpush1.msra.mxu0 0.0
        %2243 = vmatprep.subr.mxu0 0.0
        %2244 = vmatpush1.msra.mxu0 0.0
        %2245 = vmatprep.subr.mxu0 0.0
        %2246 = vmatpush1.msra.mxu0 0.0
        %2247 = vmatprep.subr.mxu0 0.0
        %2248 = vmatpush1.msra.mxu0 0.0
        %2249 = vmatprep.subr.mxu0 0.0
        %2250 = vmatpush1.msra.mxu0 0.0
        %2251 = vmatprep.subr.mxu0 0.0
        %2252 = vmatpush1.msra.mxu0 0.0
        %2253 = vmatprep.subr.mxu0 0.0
        %2254 = vmatpush1.msra.mxu0 0.0
        %2255 = vmatprep.subr.mxu0 0.0
        %2256 = vmatpush1.msra.mxu0 0.0
        %2257 = vmatprep.subr.mxu0 0.0
        %2258 = vmatpush1.msra.mxu0 0.0
        %2259 = vmatprep.subr.mxu0 0.0
        %2260 = vmatpush1.msra.mxu0 0.0
        %2261 = vmatprep.subr.mxu0 0.0
        %2262 = vmatpush1.msra.mxu0 0.0
        %2263 = vmatprep.subr.mxu0 0.0
        %2264 = vmatpush1.msra.mxu0 0.0
        %2265 = vmatprep.subr.mxu0 0.0
        %2266 = vmatpush1.msra.mxu0 0.0
        %2267 = vmatprep.subr.mxu0 0.0
        %2268 = vmatpush1.msra.mxu0 0.0
        %2269 = vmatprep.subr.mxu0 0.0
        %2270 = vmatpush1.msra.mxu0 0.0
        %2271 = vmatprep.subr.mxu0 0.0
        %2272 = vmatpush1.msra.mxu0 0.0
        %2273 = vmatprep.subr.mxu0 0.0
        %2274 = vmatpush1.msra.mxu0 0.0
        %2275 = vmatprep.subr.mxu0 0.0
        %2276 = vmatpush1.msra.mxu0 0.0
        %2277 = vmatprep.subr.mxu0 0.0
        %2278 = vmatpush1.msra.mxu0 0.0
        %2279 = vmatprep.subr.mxu0 0.0
        %2280 = vmatpush1.msra.mxu0 0.0
        %2281 = vmatprep.subr.mxu0 0.0
        %2282 = vmatpush1.msra.mxu0 0.0
        %2283 = vmatprep.subr.mxu0 0.0
        %2284 = vmatpush1.msra.mxu0 0.0
        %2285 = vmatprep.subr.mxu0 0.0
        %2286 = vmatpush1.msra.mxu0 0.0
        %2287 = vmatprep.mubr.f32.mxu0 0.0
        %2288 = vmatmul.mubr.f32.gmra.mrb[0].mxu0 %v2200
        %v2289 = vpop.f32.mrb[0].mxu0
        %v2290 = vadd.f32 %v2197, %v2289
        %v2291 = vpop.f32.mrb[0].mxu0
        %2292 = vmatprep.mubr.f32.mxu0 0.0
        %2293 = vmatmul.mubr.f32.gmra.mrb[0].mxu0 %v2203
        %v2294 = vpop.f32.mrb[0].mxu0
        %v2295 = vadd.f32 %v2197, %v2294
        %v2296 = vpop.f32.mrb[0].mxu0
        %2297 = vmatprep.mubr.f32.mxu0 0.0
        %2298 = vmatmul.mubr.f32.gmra.mrb[0].mxu0 %v2206
        %v2299 = vpop.f32.mrb[0].mxu0
        %v2300 = vadd.f32 %v2197, %v2299
        %v2301 = vpop.f32.mrb[0].mxu0
        %2302 = vmatprep.mubr.f32.mxu0 0.0
        %2303 = vmatmul.mubr.f32.gmra.mrb[0].mxu0 %v2209
        %v2304 = vpop.f32.mrb[0].mxu0
        %v2305 = vadd.f32 %v2197, %v2304
        %v2306 = vpop.f32.mrb[0].mxu0
        %2307 = vmatprep.mubr.f32.mxu0 0.0
        %2308 = vmatmul.mubr.f32.gmra.mrb[0].mxu0 %v2212
        %v2309 = vpop.f32.mrb[0].mxu0
        %v2310 = vadd.f32 %v2197, %v2309
        %v2311 = vpop.f32.mrb[0].mxu0
        %2312 = vmatprep.mubr.f32.mxu0 0.0
        %2313 = vmatmul.mubr.f32.gmra.mrb[0].mxu0 %v2215
        %v2314 = vpop.f32.mrb[0].mxu0
        %v2315 = vadd.f32 %v2197, %v2314
        %v2316 = vpop.f32.mrb[0].mxu0
        %2317 = vmatprep.mubr.f32.mxu0 0.0
        %2318 = vmatmul.mubr.f32.gmra.mrb[0].mxu0 %v2218
        %v2319 = vpop.f32.mrb[0].mxu0
        %v2320 = vadd.f32 %v2197, %v2319
        %v2321 = vpop.f32.mrb[0].mxu0
        %2322 = vmatprep.mubr.f32.mxu0 0.0
        %2323 = vmatmul.mubr.f32.gmra.mrb[0].mxu0 %v2221
        %v2324 = vpop.f32.mrb[0].mxu0
        %v2325 = vadd.f32 %v2197, %v2324
        %v2326 = vpop.f32.mrb[0].mxu0
        %2327 = vdwg.mxu0
        %v2328 = vmax.f32 %v2290, 0.0
        %v2329 = vmax.f32 %v2295, 0.0
        %v2330 = vmax.f32 %v2300, 0.0
        %v2331 = vmax.f32 %v2305, 0.0
        %v2332 = vmax.f32 %v2310, 0.0
        %v2333 = vmax.f32 %v2315, 0.0
        %v2334 = vmax.f32 %v2320, 0.0
        %v2335 = vmax.f32 %v2325, 0.0
        %2336 = vst.msk [vmem:[%s1420] sm:$0xff] %vm773, %v2328
        %2337 = vst.msk [vmem:[%s1420 + $0x8] sm:$0xff] %vm773, %v2329
        %2338 = vst.msk [vmem:[%s1420 + $0x10] sm:$0xff] %vm773, %v2330
        %2339 = vst.msk [vmem:[%s1420 + $0x18] sm:$0xff] %vm773, %v2331
        %2340 = vst.msk [vmem:[%s1420 + $0x20] sm:$0xff] %vm773, %v2332
        %2341 = vst.msk [vmem:[%s1420 + $0x28] sm:$0xff] %vm773, %v2333
        %2342 = vst.msk [vmem:[%s1420 + $0x30] sm:$0xff] %vm773, %v2334
        %2343 = vst.msk [vmem:[%s1420 + $0x38] sm:$0xff] %vm773, %v2335
        %v2344 = vld [vmem:[#allocation3] sm:$0xff]
        %v2345 = vld [vmem:[#allocation3 + $0x8] sm:$0xff]
        %v2346 = vld [vmem:[#allocation3 + $0x10] sm:$0xff]
        %v2347 = vld [vmem:[#allocation3 + $0x18] sm:$0xff]
        %v2348 = vld [vmem:[#allocation3 + $0x20] sm:$0xff]
        %v2349 = vld [vmem:[#allocation3 + $0x28] sm:$0xff]
        %v2350 = vld [vmem:[#allocation3 + $0x30] sm:$0xff]
        %v2351 = vld [vmem:[#allocation3 + $0x38] sm:$0xff]
        %v2352 = vld [vmem:[%s1437] sm:$0xff]
        %v2353 = vld [vmem:[%s1437 + $0x8] sm:$0xff]
        %v2354 = vld [vmem:[%s1437 + $0x10] sm:$0xff]
        %v2355 = vld [vmem:[%s1437 + $0x18] sm:$0xff]
        %v2356 = vld [vmem:[%s1437 + $0x20] sm:$0xff]
        %v2357 = vld [vmem:[%s1437 + $0x28] sm:$0xff]
        %v2358 = vld [vmem:[%s1437 + $0x30] sm:$0xff]
        %v2359 = vld [vmem:[%s1437 + $0x38] sm:$0xff]
        %v2360 = vld [vmem:[%s1446] sm:$0xff]
        %v2361 = vld [vmem:[%s1446 + $0x8] sm:$0xff]
        %v2362 = vld [vmem:[%s1446 + $0x10] sm:$0xff]
        %v2363 = vld [vmem:[%s1446 + $0x18] sm:$0xff]
        %v2364 = vld [vmem:[%s1446 + $0x20] sm:$0xff]
        %v2365 = vld [vmem:[%s1446 + $0x28] sm:$0xff]
        %v2366 = vld [vmem:[%s1446 + $0x30] sm:$0xff]
        %v2367 = vld [vmem:[%s1446 + $0x38] sm:$0xff]
        %v2368 = vld [vmem:[%s1420] sm:$0xff]
        %v2369 = vld [vmem:[%s1420 + $0x8] sm:$0xff]
        %v2370 = vld [vmem:[%s1420 + $0x10] sm:$0xff]
        %v2371 = vld [vmem:[%s1420 + $0x18] sm:$0xff]
        %v2372 = vld [vmem:[%s1420 + $0x20] sm:$0xff]
        %v2373 = vld [vmem:[%s1420 + $0x28] sm:$0xff]
        %v2374 = vld [vmem:[%s1420 + $0x30] sm:$0xff]
        %v2375 = vld [vmem:[%s1420 + $0x38] sm:$0xff]
        %v2376 = vld [vmem:[%s1463] sm:$0xff]
        %v2377 = vld [vmem:[%s1463 + $0x8] sm:$0xff]
        %v2378 = vld [vmem:[%s1463 + $0x10] sm:$0xff]
        %v2379 = vld [vmem:[%s1463 + $0x18] sm:$0xff]
        %v2380 = vld [vmem:[%s1463 + $0x20] sm:$0xff]
        %v2381 = vld [vmem:[%s1463 + $0x28] sm:$0xff]
        %v2382 = vld [vmem:[%s1463 + $0x30] sm:$0xff]
        %v2383 = vld [vmem:[%s1463 + $0x38] sm:$0xff]
        %v2384 = vld [vmem:[%s1472] sm:$0xff]
        %v2385 = vld [vmem:[%s1472 + $0x8] sm:$0xff]
        %v2386 = vld [vmem:[%s1472 + $0x10] sm:$0xff]
        %v2387 = vld [vmem:[%s1472 + $0x18] sm:$0xff]
        %v2388 = vld [vmem:[%s1472 + $0x20] sm:$0xff]
        %v2389 = vld [vmem:[%s1472 + $0x28] sm:$0xff]
        %v2390 = vld [vmem:[%s1472 + $0x30] sm:$0xff]
        %v2391 = vld [vmem:[%s1472 + $0x38] sm:$0xff]
        %v2392 = vld [vmem:[%s1481] sm:$0xff]
        %v2393 = vld [vmem:[%s1481 + $0x8] sm:$0xff]
        %v2394 = vld [vmem:[%s1481 + $0x10] sm:$0xff]
        %v2395 = vld [vmem:[%s1481 + $0x18] sm:$0xff]
        %v2396 = vld [vmem:[%s1481 + $0x20] sm:$0xff]
        %v2397 = vld [vmem:[%s1481 + $0x28] sm:$0xff]
        %v2398 = vld [vmem:[%s1481 + $0x30] sm:$0xff]
        %v2399 = vld [vmem:[%s1481 + $0x38] sm:$0xff]
        %2408 = vrot.lane.b32.xlu0 %v2352, 8
        %v2409 = vpop.permute.xlu0 %2408
        %2410 = vrot.lane.b32.xlu0 %v2353, 8
        %v2411 = vpop.permute.xlu0 %2410
        %2412 = vrot.lane.b32.xlu0 %v2354, 8
        %v2413 = vpop.permute.xlu0 %2412
        %2414 = vrot.lane.b32.xlu0 %v2355, 8
        %v2415 = vpop.permute.xlu0 %2414
        %2416 = vrot.lane.b32.xlu0 %v2356, 8
        %v2417 = vpop.permute.xlu0 %2416
        %2418 = vrot.lane.b32.xlu0 %v2357, 8
        %v2419 = vpop.permute.xlu0 %2418
        %2420 = vrot.lane.b32.xlu0 %v2358, 8
        %v2421 = vpop.permute.xlu0 %2420
        %2422 = vrot.lane.b32.xlu0 %v2359, 8
        %v2423 = vpop.permute.xlu0 %2422
        %2440 = vrot.lane.b32.xlu0 %v2360, 16
        %v2441 = vpop.permute.xlu0 %2440
        %2442 = vrot.lane.b32.xlu0 %v2361, 16
        %v2443 = vpop.permute.xlu0 %2442
        %2444 = vrot.lane.b32.xlu0 %v2362, 16
        %v2445 = vpop.permute.xlu0 %2444
        %2446 = vrot.lane.b32.xlu0 %v2363, 16
        %v2447 = vpop.permute.xlu0 %2446
        %2448 = vrot.lane.b32.xlu0 %v2364, 16
        %v2449 = vpop.permute.xlu0 %2448
        %2450 = vrot.lane.b32.xlu0 %v2365, 16
        %v2451 = vpop.permute.xlu0 %2450
        %2452 = vrot.lane.b32.xlu0 %v2366, 16
        %v2453 = vpop.permute.xlu0 %2452
        %2454 = vrot.lane.b32.xlu0 %v2367, 16
        %v2455 = vpop.permute.xlu0 %2454
        %2472 = vrot.lane.b32.xlu0 %v2368, 24
        %v2473 = vpop.permute.xlu0 %2472
        %2474 = vrot.lane.b32.xlu0 %v2369, 24
        %v2475 = vpop.permute.xlu0 %2474
        %2476 = vrot.lane.b32.xlu0 %v2370, 24
        %v2477 = vpop.permute.xlu0 %2476
        %2478 = vrot.lane.b32.xlu0 %v2371, 24
        %v2479 = vpop.permute.xlu0 %2478
        %2480 = vrot.lane.b32.xlu0 %v2372, 24
        %v2481 = vpop.permute.xlu0 %2480
        %2482 = vrot.lane.b32.xlu0 %v2373, 24
        %v2483 = vpop.permute.xlu0 %2482
        %2484 = vrot.lane.b32.xlu0 %v2374, 24
        %v2485 = vpop.permute.xlu0 %2484
        %2486 = vrot.lane.b32.xlu0 %v2375, 24
        %v2487 = vpop.permute.xlu0 %2486
        %2504 = vrot.lane.b32.xlu0 %v2376, 32
        %v2505 = vpop.permute.xlu0 %2504
        %2506 = vrot.lane.b32.xlu0 %v2377, 32
        %v2507 = vpop.permute.xlu0 %2506
        %2508 = vrot.lane.b32.xlu0 %v2378, 32
        %v2509 = vpop.permute.xlu0 %2508
        %2510 = vrot.lane.b32.xlu0 %v2379, 32
        %v2511 = vpop.permute.xlu0 %2510
        %2512 = vrot.lane.b32.xlu0 %v2380, 32
        %v2513 = vpop.permute.xlu0 %2512
        %2514 = vrot.lane.b32.xlu0 %v2381, 32
        %v2515 = vpop.permute.xlu0 %2514
        %2516 = vrot.lane.b32.xlu0 %v2382, 32
        %v2517 = vpop.permute.xlu0 %2516
        %2518 = vrot.lane.b32.xlu0 %v2383, 32
        %v2519 = vpop.permute.xlu0 %2518
        %2536 = vrot.lane.b32.xlu0 %v2384, 40
        %v2537 = vpop.permute.xlu0 %2536
        %2538 = vrot.lane.b32.xlu0 %v2385, 40
        %v2539 = vpop.permute.xlu0 %2538
        %2540 = vrot.lane.b32.xlu0 %v2386, 40
        %v2541 = vpop.permute.xlu0 %2540
        %2542 = vrot.lane.b32.xlu0 %v2387, 40
        %v2543 = vpop.permute.xlu0 %2542
        %2544 = vrot.lane.b32.xlu0 %v2388, 40
        %v2545 = vpop.permute.xlu0 %2544
        %2546 = vrot.lane.b32.xlu0 %v2389, 40
        %v2547 = vpop.permute.xlu0 %2546
        %2548 = vrot.lane.b32.xlu0 %v2390, 40
        %v2549 = vpop.permute.xlu0 %2548
        %2550 = vrot.lane.b32.xlu0 %v2391, 40
        %v2551 = vpop.permute.xlu0 %2550
        %2568 = vrot.lane.b32.xlu0 %v2392, 48
        %v2569 = vpop.permute.xlu0 %2568
        %2570 = vrot.lane.b32.xlu0 %v2393, 48
        %v2571 = vpop.permute.xlu0 %2570
        %2572 = vrot.lane.b32.xlu0 %v2394, 48
        %v2573 = vpop.permute.xlu0 %2572
        %2574 = vrot.lane.b32.xlu0 %v2395, 48
        %v2575 = vpop.permute.xlu0 %2574
        %2576 = vrot.lane.b32.xlu0 %v2396, 48
        %v2577 = vpop.permute.xlu0 %2576
        %2578 = vrot.lane.b32.xlu0 %v2397, 48
        %v2579 = vpop.permute.xlu0 %2578
        %2580 = vrot.lane.b32.xlu0 %v2398, 48
        %v2581 = vpop.permute.xlu0 %2580
        %2582 = vrot.lane.b32.xlu0 %v2399, 48
        %v2583 = vpop.permute.xlu0 %2582
        %v2592 = vsel %vm773, %v2344, %v2409
        %v2593 = vsel %vm773, %v2345, %v2411
        %v2594 = vsel %vm773, %v2346, %v2413
        %v2595 = vsel %vm773, %v2347, %v2415
        %v2596 = vsel %vm773, %v2348, %v2417
        %v2597 = vsel %vm773, %v2349, %v2419
        %v2598 = vsel %vm773, %v2350, %v2421
        %v2599 = vsel %vm773, %v2351, %v2423
        %v2600 = vsel %vm822, %v2592, %v2441
        %v2601 = vsel %vm822, %v2593, %v2443
        %v2602 = vsel %vm822, %v2594, %v2445
        %v2603 = vsel %vm822, %v2595, %v2447
        %v2604 = vsel %vm822, %v2596, %v2449
        %v2605 = vsel %vm822, %v2597, %v2451
        %v2606 = vsel %vm822, %v2598, %v2453
        %v2607 = vsel %vm822, %v2599, %v2455
        %v2608 = vsel %vm1232, %v2600, %v2473
        %v2609 = vsel %vm1232, %v2601, %v2475
        %v2610 = vsel %vm1232, %v2602, %v2477
        %v2611 = vsel %vm1232, %v2603, %v2479
        %v2612 = vsel %vm1232, %v2604, %v2481
        %v2613 = vsel %vm1232, %v2605, %v2483
        %v2614 = vsel %vm1232, %v2606, %v2485
        %v2615 = vsel %vm1232, %v2607, %v2487
        %v2616 = vsel %vm1241, %v2608, %v2505
        %v2617 = vsel %vm1241, %v2609, %v2507
        %v2618 = vsel %vm1241, %v2610, %v2509
        %v2619 = vsel %vm1241, %v2611, %v2511
        %v2620 = vsel %vm1241, %v2612, %v2513
        %v2621 = vsel %vm1241, %v2613, %v2515
        %v2622 = vsel %vm1241, %v2614, %v2517
        %v2623 = vsel %vm1241, %v2615, %v2519
        %v2624 = vsel %vm1250, %v2616, %v2537
        %v2625 = vsel %vm1250, %v2617, %v2539
        %v2626 = vsel %vm1250, %v2618, %v2541
        %v2627 = vsel %vm1250, %v2619, %v2543
        %v2628 = vsel %vm1250, %v2620, %v2545
        %v2629 = vsel %vm1250, %v2621, %v2547
        %v2630 = vsel %vm1250, %v2622, %v2549
        %v2631 = vsel %vm1250, %v2623, %v2551
        %v2632 = vsel %vm1259, %v2624, %v2569
        %v2633 = vsel %vm1259, %v2625, %v2571
        %v2634 = vsel %vm1259, %v2626, %v2573
        %v2635 = vsel %vm1259, %v2627, %v2575
        %v2636 = vsel %vm1259, %v2628, %v2577
        %v2637 = vsel %vm1259, %v2629, %v2579
        %v2638 = vsel %vm1259, %v2630, %v2581
        %v2639 = vsel %vm1259, %v2631, %v2583
        %v2640 = vld [vmem:[#allocation20] sm:$0xff]
        %v2641 = vld [vmem:[#allocation20 + $0x8] sm:$0xff]
        %v2642 = vld [vmem:[#allocation20 + $0x10] sm:$0xff]
        %v2643 = vld [vmem:[#allocation20 + $0x18] sm:$0xff]
        %v2644 = vld [vmem:[#allocation20 + $0x20] sm:$0xff]
        %v2645 = vld [vmem:[#allocation20 + $0x28] sm:$0xff]
        %v2646 = vld [vmem:[#allocation20 + $0x30] sm:$0xff]
        %v2647 = vld [vmem:[%s10] sm:$0x1]
        %v2649 = vlaneseq
        %v2650 = vshrl.u32 %v2649, 7
        %v2651 = vsub.s32 0, %v2650
        %v2652 = vrot.slane %v2647, %v2651
        %v2655 = vsel %vm1282, %v2632, 0
        %v2658 = vsel %vm1282, %v2633, 0
        %v2661 = vsel %vm1282, %v2634, 0
        %v2664 = vsel %vm1282, %v2635, 0
        %v2667 = vsel %vm1282, %v2636, 0
        %v2670 = vsel %vm1282, %v2637, 0
        %v2673 = vsel %vm1282, %v2638, 0
        %v2676 = vsel %vm1282, %v2639, 0
        %2678 = vmatprep.subr.mxu0 0.0
        %2679 = vmatpush1.msra.mxu0 %v2640
        %2680 = vmatprep.subr.mxu0 0.0
        %2681 = vmatpush1.msra.mxu0 %v2641
        %2682 = vmatprep.subr.mxu0 0.0
        %2683 = vmatpush1.msra.mxu0 %v2642
        %2684 = vmatprep.subr.mxu0 0.0
        %2685 = vmatpush1.msra.mxu0 %v2643
        %2686 = vmatprep.subr.mxu0 0.0
        %2687 = vmatpush1.msra.mxu0 %v2644
        %2688 = vmatprep.subr.mxu0 0.0
        %2689 = vmatpush1.msra.mxu0 %v2645
        %2690 = vmatprep.subr.mxu0 0.0
        %2691 = vmatpush1.msra.mxu0 %v2646
        %2692 = vmatprep.subr.mxu0 0.0
        %2693 = vmatpush1.msra.mxu0 0.0
        %2694 = vmatprep.subr.mxu0 0.0
        %2695 = vmatpush1.msra.mxu0 0.0
        %2696 = vmatprep.subr.mxu0 0.0
        %2697 = vmatpush1.msra.mxu0 0.0
        %2698 = vmatprep.subr.mxu0 0.0
        %2699 = vmatpush1.msra.mxu0 0.0
        %2700 = vmatprep.subr.mxu0 0.0
        %2701 = vmatpush1.msra.mxu0 0.0
        %2702 = vmatprep.subr.mxu0 0.0
        %2703 = vmatpush1.msra.mxu0 0.0
        %2704 = vmatprep.subr.mxu0 0.0
        %2705 = vmatpush1.msra.mxu0 0.0
        %2706 = vmatprep.subr.mxu0 0.0
        %2707 = vmatpush1.msra.mxu0 0.0
        %2708 = vmatprep.subr.mxu0 0.0
        %2709 = vmatpush1.msra.mxu0 0.0
        %2710 = vmatprep.subr.mxu0 0.0
        %2711 = vmatpush1.msra.mxu0 0.0
        %2712 = vmatprep.subr.mxu0 0.0
        %2713 = vmatpush1.msra.mxu0 0.0
        %2714 = vmatprep.subr.mxu0 0.0
        %2715 = vmatpush1.msra.mxu0 0.0
        %2716 = vmatprep.subr.mxu0 0.0
        %2717 = vmatpush1.msra.mxu0 0.0
        %2718 = vmatprep.subr.mxu0 0.0
        %2719 = vmatpush1.msra.mxu0 0.0
        %2720 = vmatprep.subr.mxu0 0.0
        %2721 = vmatpush1.msra.mxu0 0.0
        %2722 = vmatprep.subr.mxu0 0.0
        %2723 = vmatpush1.msra.mxu0 0.0
        %2724 = vmatprep.subr.mxu0 0.0
        %2725 = vmatpush1.msra.mxu0 0.0
        %2726 = vmatprep.subr.mxu0 0.0
        %2727 = vmatpush1.msra.mxu0 0.0
        %2728 = vmatprep.subr.mxu0 0.0
        %2729 = vmatpush1.msra.mxu0 0.0
        %2730 = vmatprep.subr.mxu0 0.0
        %2731 = vmatpush1.msra.mxu0 0.0
        %2732 = vmatprep.subr.mxu0 0.0
        %2733 = vmatpush1.msra.mxu0 0.0
        %2734 = vmatprep.subr.mxu0 0.0
        %2735 = vmatpush1.msra.mxu0 0.0
        %2736 = vmatprep.subr.mxu0 0.0
        %2737 = vmatpush1.msra.mxu0 0.0
        %2738 = vmatprep.subr.mxu0 0.0
        %2739 = vmatpush1.msra.mxu0 0.0
        %2740 = vmatprep.subr.mxu0 0.0
        %2741 = vmatpush1.msra.mxu0 0.0
        %2742 = vmatprep.mubr.f32.mxu0 0.0
        %2743 = vmatmul.mubr.f32.gmra.mrb[0].mxu0 %v2655
        %v2744 = vpop.f32.mrb[0].mxu0
        %v2745 = vadd.f32 %v2652, %v2744
        %v2746 = vpop.f32.mrb[0].mxu0
        %2747 = vmatprep.mubr.f32.mxu0 0.0
        %2748 = vmatmul.mubr.f32.gmra.mrb[0].mxu0 %v2658
        %v2749 = vpop.f32.mrb[0].mxu0
        %v2750 = vadd.f32 %v2652, %v2749
        %v2751 = vpop.f32.mrb[0].mxu0
        %2752 = vmatprep.mubr.f32.mxu0 0.0
        %2753 = vmatmul.mubr.f32.gmra.mrb[0].mxu0 %v2661
        %v2754 = vpop.f32.mrb[0].mxu0
        %v2755 = vadd.f32 %v2652, %v2754
        %v2756 = vpop.f32.mrb[0].mxu0
        %2757 = vmatprep.mubr.f32.mxu0 0.0
        %2758 = vmatmul.mubr.f32.gmra.mrb[0].mxu0 %v2664
        %v2759 = vpop.f32.mrb[0].mxu0
        %v2760 = vadd.f32 %v2652, %v2759
        %v2761 = vpop.f32.mrb[0].mxu0
        %2762 = vmatprep.mubr.f32.mxu0 0.0
        %2763 = vmatmul.mubr.f32.gmra.mrb[0].mxu0 %v2667
        %v2764 = vpop.f32.mrb[0].mxu0
        %v2765 = vadd.f32 %v2652, %v2764
        %v2766 = vpop.f32.mrb[0].mxu0
        %2767 = vmatprep.mubr.f32.mxu0 0.0
        %2768 = vmatmul.mubr.f32.gmra.mrb[0].mxu0 %v2670
        %v2769 = vpop.f32.mrb[0].mxu0
        %v2770 = vadd.f32 %v2652, %v2769
        %v2771 = vpop.f32.mrb[0].mxu0
        %2772 = vmatprep.mubr.f32.mxu0 0.0
        %2773 = vmatmul.mubr.f32.gmra.mrb[0].mxu0 %v2673
        %v2774 = vpop.f32.mrb[0].mxu0
        %v2775 = vadd.f32 %v2652, %v2774
        %v2776 = vpop.f32.mrb[0].mxu0
        %2777 = vmatprep.mubr.f32.mxu0 0.0
        %2778 = vmatmul.mubr.f32.gmra.mrb[0].mxu0 %v2676
        %v2779 = vpop.f32.mrb[0].mxu0
        %v2780 = vadd.f32 %v2652, %v2779
        %v2781 = vpop.f32.mrb[0].mxu0
        %2782 = vdwg.mxu0
        %v2783 = vmax.f32 %v2745, 0.0
        %v2784 = vmax.f32 %v2750, 0.0
        %v2785 = vmax.f32 %v2755, 0.0
        %v2786 = vmax.f32 %v2760, 0.0
        %v2787 = vmax.f32 %v2765, 0.0
        %v2788 = vmax.f32 %v2770, 0.0
        %v2789 = vmax.f32 %v2775, 0.0
        %v2790 = vmax.f32 %v2780, 0.0
        %v2791 = vld [vmem:[#allocation22] sm:$0xff]
        %v2792 = vld [vmem:[#allocation22 + $0x8] sm:$0xff]
        %v2793 = vld [vmem:[%s12] sm:$0x1]
        %v2795 = vlaneseq
        %v2796 = vshrl.u32 %v2795, 7
        %v2797 = vsub.s32 0, %v2796
        %v2798 = vrot.slane %v2793, %v2797
        %2800 = vmatprep.subr.mxu0 0.0
        %2801 = vmatpush1.msra.mxu0 %v2791
        %2802 = vmatprep.subr.mxu0 0.0
        %2803 = vmatpush1.msra.mxu0 %v2792
        %2804 = vmatprep.subr.mxu0 0.0
        %2805 = vmatpush1.msra.mxu0 0.0
        %2806 = vmatprep.subr.mxu0 0.0
        %2807 = vmatpush1.msra.mxu0 0.0
        %2808 = vmatprep.subr.mxu0 0.0
        %2809 = vmatpush1.msra.mxu0 0.0
        %2810 = vmatprep.subr.mxu0 0.0
        %2811 = vmatpush1.msra.mxu0 0.0
        %2812 = vmatprep.subr.mxu0 0.0
        %2813 = vmatpush1.msra.mxu0 0.0
        %2814 = vmatprep.subr.mxu0 0.0
        %2815 = vmatpush1.msra.mxu0 0.0
        %2816 = vmatprep.subr.mxu0 0.0
        %2817 = vmatpush1.msra.mxu0 0.0
        %2818 = vmatprep.subr.mxu0 0.0
        %2819 = vmatpush1.msra.mxu0 0.0
        %2820 = vmatprep.subr.mxu0 0.0
        %2821 = vmatpush1.msra.mxu0 0.0
        %2822 = vmatprep.subr.mxu0 0.0
        %2823 = vmatpush1.msra.mxu0 0.0
        %2824 = vmatprep.subr.mxu0 0.0
        %2825 = vmatpush1.msra.mxu0 0.0
        %2826 = vmatprep.subr.mxu0 0.0
        %2827 = vmatpush1.msra.mxu0 0.0
        %2828 = vmatprep.subr.mxu0 0.0
        %2829 = vmatpush1.msra.mxu0 0.0
        %2830 = vmatprep.subr.mxu0 0.0
        %2831 = vmatpush1.msra.mxu0 0.0
        %2832 = vmatprep.subr.mxu0 0.0
        %2833 = vmatpush1.msra.mxu0 0.0
        %2834 = vmatprep.subr.mxu0 0.0
        %2835 = vmatpush1.msra.mxu0 0.0
        %2836 = vmatprep.subr.mxu0 0.0
        %2837 = vmatpush1.msra.mxu0 0.0
        %2838 = vmatprep.subr.mxu0 0.0
        %2839 = vmatpush1.msra.mxu0 0.0
        %2840 = vmatprep.subr.mxu0 0.0
        %2841 = vmatpush1.msra.mxu0 0.0
        %2842 = vmatprep.subr.mxu0 0.0
        %2843 = vmatpush1.msra.mxu0 0.0
        %2844 = vmatprep.subr.mxu0 0.0
        %2845 = vmatpush1.msra.mxu0 0.0
        %2846 = vmatprep.subr.mxu0 0.0
        %2847 = vmatpush1.msra.mxu0 0.0
        %2848 = vmatprep.subr.mxu0 0.0
        %2849 = vmatpush1.msra.mxu0 0.0
        %2850 = vmatprep.subr.mxu0 0.0
        %2851 = vmatpush1.msra.mxu0 0.0
        %2852 = vmatprep.subr.mxu0 0.0
        %2853 = vmatpush1.msra.mxu0 0.0
        %2854 = vmatprep.subr.mxu0 0.0
        %2855 = vmatpush1.msra.mxu0 0.0
        %2856 = vmatprep.subr.mxu0 0.0
        %2857 = vmatpush1.msra.mxu0 0.0
        %2858 = vmatprep.subr.mxu0 0.0
        %2859 = vmatpush1.msra.mxu0 0.0
        %2860 = vmatprep.subr.mxu0 0.0
        %2861 = vmatpush1.msra.mxu0 0.0
        %2862 = vmatprep.subr.mxu0 0.0
        %2863 = vmatpush1.msra.mxu0 0.0
        %2864 = vmatprep.mubr.f32.mxu0 0.0
        %2865 = vmatmul.mubr.f32.gmra.mrb[0].mxu0 %v824
        %v2866 = vpop.f32.mrb[0].mxu0
        %v2867 = vadd.f32 %v2798, %v2866
        %v2868 = vpop.f32.mrb[0].mxu0
        %2869 = vmatprep.mubr.f32.mxu0 0.0
        %2870 = vmatmul.mubr.f32.gmra.mrb[0].mxu0 %v827
        %v2871 = vpop.f32.mrb[0].mxu0
        %v2872 = vadd.f32 %v2798, %v2871
        %v2873 = vpop.f32.mrb[0].mxu0
        %2874 = vmatprep.mubr.f32.mxu0 0.0
        %2875 = vmatmul.mubr.f32.gmra.mrb[0].mxu0 %v830
        %v2876 = vpop.f32.mrb[0].mxu0
        %v2877 = vadd.f32 %v2798, %v2876
        %v2878 = vpop.f32.mrb[0].mxu0
        %2879 = vmatprep.mubr.f32.mxu0 0.0
        %2880 = vmatmul.mubr.f32.gmra.mrb[0].mxu0 %v833
        %v2881 = vpop.f32.mrb[0].mxu0
        %v2882 = vadd.f32 %v2798, %v2881
        %v2883 = vpop.f32.mrb[0].mxu0
        %2884 = vmatprep.mubr.f32.mxu0 0.0
        %2885 = vmatmul.mubr.f32.gmra.mrb[0].mxu0 %v836
        %v2886 = vpop.f32.mrb[0].mxu0
        %v2887 = vadd.f32 %v2798, %v2886
        %v2888 = vpop.f32.mrb[0].mxu0
        %2889 = vmatprep.mubr.f32.mxu0 0.0
        %2890 = vmatmul.mubr.f32.gmra.mrb[0].mxu0 %v839
        %v2891 = vpop.f32.mrb[0].mxu0
        %v2892 = vadd.f32 %v2798, %v2891
        %v2893 = vpop.f32.mrb[0].mxu0
        %2894 = vmatprep.mubr.f32.mxu0 0.0
        %2895 = vmatmul.mubr.f32.gmra.mrb[0].mxu0 %v842
        %v2896 = vpop.f32.mrb[0].mxu0
        %v2897 = vadd.f32 %v2798, %v2896
        %v2898 = vpop.f32.mrb[0].mxu0
        %2899 = vmatprep.mubr.f32.mxu0 0.0
        %2900 = vmatmul.mubr.f32.gmra.mrb[0].mxu0 %v845
        %v2901 = vpop.f32.mrb[0].mxu0
        %v2902 = vadd.f32 %v2798, %v2901
        %v2903 = vpop.f32.mrb[0].mxu0
        %2904 = vdwg.mxu0
        %v2905 = vmax.f32 %v2867, 0.0
        %v2906 = vmax.f32 %v2872, 0.0
        %v2907 = vmax.f32 %v2877, 0.0
        %v2908 = vmax.f32 %v2882, 0.0
        %v2909 = vmax.f32 %v2887, 0.0
        %v2910 = vmax.f32 %v2892, 0.0
        %v2911 = vmax.f32 %v2897, 0.0
        %v2912 = vmax.f32 %v2902, 0.0
        %2913 = vst.msk [vmem:[%s1420] sm:$0xff] %vm773, %v2905
        %2914 = vst.msk [vmem:[%s1420 + $0x8] sm:$0xff] %vm773, %v2906
        %2915 = vst.msk [vmem:[%s1420 + $0x10] sm:$0xff] %vm773, %v2907
        %2916 = vst.msk [vmem:[%s1420 + $0x18] sm:$0xff] %vm773, %v2908
        %2917 = vst.msk [vmem:[%s1420 + $0x20] sm:$0xff] %vm773, %v2909
        %2918 = vst.msk [vmem:[%s1420 + $0x28] sm:$0xff] %vm773, %v2910
        %2919 = vst.msk [vmem:[%s1420 + $0x30] sm:$0xff] %vm773, %v2911
        %2920 = vst.msk [vmem:[%s1420 + $0x38] sm:$0xff] %vm773, %v2912
        %v2921 = vld [vmem:[#allocation3] sm:$0xff]
        %v2922 = vld [vmem:[#allocation3 + $0x8] sm:$0xff]
        %v2923 = vld [vmem:[#allocation3 + $0x10] sm:$0xff]
        %v2924 = vld [vmem:[#allocation3 + $0x18] sm:$0xff]
        %v2925 = vld [vmem:[#allocation3 + $0x20] sm:$0xff]
        %v2926 = vld [vmem:[#allocation3 + $0x28] sm:$0xff]
        %v2927 = vld [vmem:[#allocation3 + $0x30] sm:$0xff]
        %v2928 = vld [vmem:[#allocation3 + $0x38] sm:$0xff]
        %v2929 = vld [vmem:[%s1437] sm:$0xff]
        %v2930 = vld [vmem:[%s1437 + $0x8] sm:$0xff]
        %v2931 = vld [vmem:[%s1437 + $0x10] sm:$0xff]
        %v2932 = vld [vmem:[%s1437 + $0x18] sm:$0xff]
        %v2933 = vld [vmem:[%s1437 + $0x20] sm:$0xff]
        %v2934 = vld [vmem:[%s1437 + $0x28] sm:$0xff]
        %v2935 = vld [vmem:[%s1437 + $0x30] sm:$0xff]
        %v2936 = vld [vmem:[%s1437 + $0x38] sm:$0xff]
        %v2937 = vld [vmem:[%s1446] sm:$0xff]
        %v2938 = vld [vmem:[%s1446 + $0x8] sm:$0xff]
        %v2939 = vld [vmem:[%s1446 + $0x10] sm:$0xff]
        %v2940 = vld [vmem:[%s1446 + $0x18] sm:$0xff]
        %v2941 = vld [vmem:[%s1446 + $0x20] sm:$0xff]
        %v2942 = vld [vmem:[%s1446 + $0x28] sm:$0xff]
        %v2943 = vld [vmem:[%s1446 + $0x30] sm:$0xff]
        %v2944 = vld [vmem:[%s1446 + $0x38] sm:$0xff]
        %v2945 = vld [vmem:[%s1420] sm:$0xff]
        %v2946 = vld [vmem:[%s1420 + $0x8] sm:$0xff]
        %v2947 = vld [vmem:[%s1420 + $0x10] sm:$0xff]
        %v2948 = vld [vmem:[%s1420 + $0x18] sm:$0xff]
        %v2949 = vld [vmem:[%s1420 + $0x20] sm:$0xff]
        %v2950 = vld [vmem:[%s1420 + $0x28] sm:$0xff]
        %v2951 = vld [vmem:[%s1420 + $0x30] sm:$0xff]
        %v2952 = vld [vmem:[%s1420 + $0x38] sm:$0xff]
        %v2953 = vld [vmem:[%s1463] sm:$0xff]
        %v2954 = vld [vmem:[%s1463 + $0x8] sm:$0xff]
        %v2955 = vld [vmem:[%s1463 + $0x10] sm:$0xff]
        %v2956 = vld [vmem:[%s1463 + $0x18] sm:$0xff]
        %v2957 = vld [vmem:[%s1463 + $0x20] sm:$0xff]
        %v2958 = vld [vmem:[%s1463 + $0x28] sm:$0xff]
        %v2959 = vld [vmem:[%s1463 + $0x30] sm:$0xff]
        %v2960 = vld [vmem:[%s1463 + $0x38] sm:$0xff]
        %v2961 = vld [vmem:[%s1472] sm:$0xff]
        %v2962 = vld [vmem:[%s1472 + $0x8] sm:$0xff]
        %v2963 = vld [vmem:[%s1472 + $0x10] sm:$0xff]
        %v2964 = vld [vmem:[%s1472 + $0x18] sm:$0xff]
        %v2965 = vld [vmem:[%s1472 + $0x20] sm:$0xff]
        %v2966 = vld [vmem:[%s1472 + $0x28] sm:$0xff]
        %v2967 = vld [vmem:[%s1472 + $0x30] sm:$0xff]
        %v2968 = vld [vmem:[%s1472 + $0x38] sm:$0xff]
        %v2969 = vld [vmem:[%s1481] sm:$0xff]
        %v2970 = vld [vmem:[%s1481 + $0x8] sm:$0xff]
        %v2971 = vld [vmem:[%s1481 + $0x10] sm:$0xff]
        %v2972 = vld [vmem:[%s1481 + $0x18] sm:$0xff]
        %v2973 = vld [vmem:[%s1481 + $0x20] sm:$0xff]
        %v2974 = vld [vmem:[%s1481 + $0x28] sm:$0xff]
        %v2975 = vld [vmem:[%s1481 + $0x30] sm:$0xff]
        %v2976 = vld [vmem:[%s1481 + $0x38] sm:$0xff]
        %2985 = vrot.lane.b32.xlu0 %v2929, 8
        %v2986 = vpop.permute.xlu0 %2985
        %2987 = vrot.lane.b32.xlu0 %v2930, 8
        %v2988 = vpop.permute.xlu0 %2987
        %2989 = vrot.lane.b32.xlu0 %v2931, 8
        %v2990 = vpop.permute.xlu0 %2989
        %2991 = vrot.lane.b32.xlu0 %v2932, 8
        %v2992 = vpop.permute.xlu0 %2991
        %2993 = vrot.lane.b32.xlu0 %v2933, 8
        %v2994 = vpop.permute.xlu0 %2993
        %2995 = vrot.lane.b32.xlu0 %v2934, 8
        %v2996 = vpop.permute.xlu0 %2995
        %2997 = vrot.lane.b32.xlu0 %v2935, 8
        %v2998 = vpop.permute.xlu0 %2997
        %2999 = vrot.lane.b32.xlu0 %v2936, 8
        %v3000 = vpop.permute.xlu0 %2999
        %3017 = vrot.lane.b32.xlu0 %v2937, 16
        %v3018 = vpop.permute.xlu0 %3017
        %3019 = vrot.lane.b32.xlu0 %v2938, 16
        %v3020 = vpop.permute.xlu0 %3019
        %3021 = vrot.lane.b32.xlu0 %v2939, 16
        %v3022 = vpop.permute.xlu0 %3021
        %3023 = vrot.lane.b32.xlu0 %v2940, 16
        %v3024 = vpop.permute.xlu0 %3023
        %3025 = vrot.lane.b32.xlu0 %v2941, 16
        %v3026 = vpop.permute.xlu0 %3025
        %3027 = vrot.lane.b32.xlu0 %v2942, 16
        %v3028 = vpop.permute.xlu0 %3027
        %3029 = vrot.lane.b32.xlu0 %v2943, 16
        %v3030 = vpop.permute.xlu0 %3029
        %3031 = vrot.lane.b32.xlu0 %v2944, 16
        %v3032 = vpop.permute.xlu0 %3031
        %3049 = vrot.lane.b32.xlu0 %v2945, 24
        %v3050 = vpop.permute.xlu0 %3049
        %3051 = vrot.lane.b32.xlu0 %v2946, 24
        %v3052 = vpop.permute.xlu0 %3051
        %3053 = vrot.lane.b32.xlu0 %v2947, 24
        %v3054 = vpop.permute.xlu0 %3053
        %3055 = vrot.lane.b32.xlu0 %v2948, 24
        %v3056 = vpop.permute.xlu0 %3055
        %3057 = vrot.lane.b32.xlu0 %v2949, 24
        %v3058 = vpop.permute.xlu0 %3057
        %3059 = vrot.lane.b32.xlu0 %v2950, 24
        %v3060 = vpop.permute.xlu0 %3059
        %3061 = vrot.lane.b32.xlu0 %v2951, 24
        %v3062 = vpop.permute.xlu0 %3061
        %3063 = vrot.lane.b32.xlu0 %v2952, 24
        %v3064 = vpop.permute.xlu0 %3063
        %3081 = vrot.lane.b32.xlu0 %v2953, 32
        %v3082 = vpop.permute.xlu0 %3081
        %3083 = vrot.lane.b32.xlu0 %v2954, 32
        %v3084 = vpop.permute.xlu0 %3083
        %3085 = vrot.lane.b32.xlu0 %v2955, 32
        %v3086 = vpop.permute.xlu0 %3085
        %3087 = vrot.lane.b32.xlu0 %v2956, 32
        %v3088 = vpop.permute.xlu0 %3087
        %3089 = vrot.lane.b32.xlu0 %v2957, 32
        %v3090 = vpop.permute.xlu0 %3089
        %3091 = vrot.lane.b32.xlu0 %v2958, 32
        %v3092 = vpop.permute.xlu0 %3091
        %3093 = vrot.lane.b32.xlu0 %v2959, 32
        %v3094 = vpop.permute.xlu0 %3093
        %3095 = vrot.lane.b32.xlu0 %v2960, 32
        %v3096 = vpop.permute.xlu0 %3095
        %3113 = vrot.lane.b32.xlu0 %v2961, 40
        %v3114 = vpop.permute.xlu0 %3113
        %3115 = vrot.lane.b32.xlu0 %v2962, 40
        %v3116 = vpop.permute.xlu0 %3115
        %3117 = vrot.lane.b32.xlu0 %v2963, 40
        %v3118 = vpop.permute.xlu0 %3117
        %3119 = vrot.lane.b32.xlu0 %v2964, 40
        %v3120 = vpop.permute.xlu0 %3119
        %3121 = vrot.lane.b32.xlu0 %v2965, 40
        %v3122 = vpop.permute.xlu0 %3121
        %3123 = vrot.lane.b32.xlu0 %v2966, 40
        %v3124 = vpop.permute.xlu0 %3123
        %3125 = vrot.lane.b32.xlu0 %v2967, 40
        %v3126 = vpop.permute.xlu0 %3125
        %3127 = vrot.lane.b32.xlu0 %v2968, 40
        %v3128 = vpop.permute.xlu0 %3127
        %3145 = vrot.lane.b32.xlu0 %v2969, 48
        %v3146 = vpop.permute.xlu0 %3145
        %3147 = vrot.lane.b32.xlu0 %v2970, 48
        %v3148 = vpop.permute.xlu0 %3147
        %3149 = vrot.lane.b32.xlu0 %v2971, 48
        %v3150 = vpop.permute.xlu0 %3149
        %3151 = vrot.lane.b32.xlu0 %v2972, 48
        %v3152 = vpop.permute.xlu0 %3151
        %3153 = vrot.lane.b32.xlu0 %v2973, 48
        %v3154 = vpop.permute.xlu0 %3153
        %3155 = vrot.lane.b32.xlu0 %v2974, 48
        %v3156 = vpop.permute.xlu0 %3155
        %3157 = vrot.lane.b32.xlu0 %v2975, 48
        %v3158 = vpop.permute.xlu0 %3157
        %3159 = vrot.lane.b32.xlu0 %v2976, 48
        %v3160 = vpop.permute.xlu0 %3159
        %v3169 = vsel %vm773, %v2921, %v2986
        %v3170 = vsel %vm773, %v2922, %v2988
        %v3171 = vsel %vm773, %v2923, %v2990
        %v3172 = vsel %vm773, %v2924, %v2992
        %v3173 = vsel %vm773, %v2925, %v2994
        %v3174 = vsel %vm773, %v2926, %v2996
        %v3175 = vsel %vm773, %v2927, %v2998
        %v3176 = vsel %vm773, %v2928, %v3000
        %v3177 = vsel %vm822, %v3169, %v3018
        %v3178 = vsel %vm822, %v3170, %v3020
        %v3179 = vsel %vm822, %v3171, %v3022
        %v3180 = vsel %vm822, %v3172, %v3024
        %v3181 = vsel %vm822, %v3173, %v3026
        %v3182 = vsel %vm822, %v3174, %v3028
        %v3183 = vsel %vm822, %v3175, %v3030
        %v3184 = vsel %vm822, %v3176, %v3032
        %v3185 = vsel %vm1232, %v3177, %v3050
        %v3186 = vsel %vm1232, %v3178, %v3052
        %v3187 = vsel %vm1232, %v3179, %v3054
        %v3188 = vsel %vm1232, %v3180, %v3056
        %v3189 = vsel %vm1232, %v3181, %v3058
        %v3190 = vsel %vm1232, %v3182, %v3060
        %v3191 = vsel %vm1232, %v3183, %v3062
        %v3192 = vsel %vm1232, %v3184, %v3064
        %v3193 = vsel %vm1241, %v3185, %v3082
        %v3194 = vsel %vm1241, %v3186, %v3084
        %v3195 = vsel %vm1241, %v3187, %v3086
        %v3196 = vsel %vm1241, %v3188, %v3088
        %v3197 = vsel %vm1241, %v3189, %v3090
        %v3198 = vsel %vm1241, %v3190, %v3092
        %v3199 = vsel %vm1241, %v3191, %v3094
        %v3200 = vsel %vm1241, %v3192, %v3096
        %v3201 = vsel %vm1250, %v3193, %v3114
        %v3202 = vsel %vm1250, %v3194, %v3116
        %v3203 = vsel %vm1250, %v3195, %v3118
        %v3204 = vsel %vm1250, %v3196, %v3120
        %v3205 = vsel %vm1250, %v3197, %v3122
        %v3206 = vsel %vm1250, %v3198, %v3124
        %v3207 = vsel %vm1250, %v3199, %v3126
        %v3208 = vsel %vm1250, %v3200, %v3128
        %v3209 = vsel %vm1259, %v3201, %v3146
        %v3210 = vsel %vm1259, %v3202, %v3148
        %v3211 = vsel %vm1259, %v3203, %v3150
        %v3212 = vsel %vm1259, %v3204, %v3152
        %v3213 = vsel %vm1259, %v3205, %v3154
        %v3214 = vsel %vm1259, %v3206, %v3156
        %v3215 = vsel %vm1259, %v3207, %v3158
        %v3216 = vsel %vm1259, %v3208, %v3160
        %v3217 = vld [vmem:[#allocation23] sm:$0xff]
        %v3218 = vld [vmem:[#allocation23 + $0x8] sm:$0xff]
        %v3219 = vld [vmem:[#allocation23 + $0x10] sm:$0xff]
        %v3220 = vld [vmem:[#allocation23 + $0x18] sm:$0xff]
        %v3221 = vld [vmem:[#allocation23 + $0x20] sm:$0xff]
        %v3222 = vld [vmem:[#allocation23 + $0x28] sm:$0xff]
        %v3223 = vld [vmem:[#allocation23 + $0x30] sm:$0xff]
        %v3224 = vld [vmem:[%s14] sm:$0x1]
        %v3226 = vlaneseq
        %v3227 = vshrl.u32 %v3226, 7
        %v3228 = vsub.s32 0, %v3227
        %v3229 = vrot.slane %v3224, %v3228
        %v3232 = vsel %vm1282, %v3209, 0
        %v3235 = vsel %vm1282, %v3210, 0
        %v3238 = vsel %vm1282, %v3211, 0
        %v3241 = vsel %vm1282, %v3212, 0
        %v3244 = vsel %vm1282, %v3213, 0
        %v3247 = vsel %vm1282, %v3214, 0
        %v3250 = vsel %vm1282, %v3215, 0
        %v3253 = vsel %vm1282, %v3216, 0
        %3255 = vmatprep.subr.mxu0 0.0
        %3256 = vmatpush1.msra.mxu0 %v3217
        %3257 = vmatprep.subr.mxu0 0.0
        %3258 = vmatpush1.msra.mxu0 %v3218
        %3259 = vmatprep.subr.mxu0 0.0
        %3260 = vmatpush1.msra.mxu0 %v3219
        %3261 = vmatprep.subr.mxu0 0.0
        %3262 = vmatpush1.msra.mxu0 %v3220
        %3263 = vmatprep.subr.mxu0 0.0
        %3264 = vmatpush1.msra.mxu0 %v3221
        %3265 = vmatprep.subr.mxu0 0.0
        %3266 = vmatpush1.msra.mxu0 %v3222
        %3267 = vmatprep.subr.mxu0 0.0
        %3268 = vmatpush1.msra.mxu0 %v3223
        %3269 = vmatprep.subr.mxu0 0.0
        %3270 = vmatpush1.msra.mxu0 0.0
        %3271 = vmatprep.subr.mxu0 0.0
        %3272 = vmatpush1.msra.mxu0 0.0
        %3273 = vmatprep.subr.mxu0 0.0
        %3274 = vmatpush1.msra.mxu0 0.0
        %3275 = vmatprep.subr.mxu0 0.0
        %3276 = vmatpush1.msra.mxu0 0.0
        %3277 = vmatprep.subr.mxu0 0.0
        %3278 = vmatpush1.msra.mxu0 0.0
        %3279 = vmatprep.subr.mxu0 0.0
        %3280 = vmatpush1.msra.mxu0 0.0
        %3281 = vmatprep.subr.mxu0 0.0
        %3282 = vmatpush1.msra.mxu0 0.0
        %3283 = vmatprep.subr.mxu0 0.0
        %3284 = vmatpush1.msra.mxu0 0.0
        %3285 = vmatprep.subr.mxu0 0.0
        %3286 = vmatpush1.msra.mxu0 0.0
        %3287 = vmatprep.subr.mxu0 0.0
        %3288 = vmatpush1.msra.mxu0 0.0
        %3289 = vmatprep.subr.mxu0 0.0
        %3290 = vmatpush1.msra.mxu0 0.0
        %3291 = vmatprep.subr.mxu0 0.0
        %3292 = vmatpush1.msra.mxu0 0.0
        %3293 = vmatprep.subr.mxu0 0.0
        %3294 = vmatpush1.msra.mxu0 0.0
        %3295 = vmatprep.subr.mxu0 0.0
        %3296 = vmatpush1.msra.mxu0 0.0
        %3297 = vmatprep.subr.mxu0 0.0
        %3298 = vmatpush1.msra.mxu0 0.0
        %3299 = vmatprep.subr.mxu0 0.0
        %3300 = vmatpush1.msra.mxu0 0.0
        %3301 = vmatprep.subr.mxu0 0.0
        %3302 = vmatpush1.msra.mxu0 0.0
        %3303 = vmatprep.subr.mxu0 0.0
        %3304 = vmatpush1.msra.mxu0 0.0
        %3305 = vmatprep.subr.mxu0 0.0
        %3306 = vmatpush1.msra.mxu0 0.0
        %3307 = vmatprep.subr.mxu0 0.0
        %3308 = vmatpush1.msra.mxu0 0.0
        %3309 = vmatprep.subr.mxu0 0.0
        %3310 = vmatpush1.msra.mxu0 0.0
        %3311 = vmatprep.subr.mxu0 0.0
        %3312 = vmatpush1.msra.mxu0 0.0
        %3313 = vmatprep.subr.mxu0 0.0
        %3314 = vmatpush1.msra.mxu0 0.0
        %3315 = vmatprep.subr.mxu0 0.0
        %3316 = vmatpush1.msra.mxu0 0.0
        %3317 = vmatprep.subr.mxu0 0.0
        %3318 = vmatpush1.msra.mxu0 0.0
        %3319 = vmatprep.mubr.f32.mxu0 0.0
        %3320 = vmatmul.mubr.f32.gmra.mrb[0].mxu0 %v3232
        %v3321 = vpop.f32.mrb[0].mxu0
        %v3322 = vadd.f32 %v3229, %v3321
        %v3323 = vpop.f32.mrb[0].mxu0
        %3324 = vmatprep.mubr.f32.mxu0 0.0
        %3325 = vmatmul.mubr.f32.gmra.mrb[0].mxu0 %v3235
        %v3326 = vpop.f32.mrb[0].mxu0
        %v3327 = vadd.f32 %v3229, %v3326
        %v3328 = vpop.f32.mrb[0].mxu0
        %3329 = vmatprep.mubr.f32.mxu0 0.0
        %3330 = vmatmul.mubr.f32.gmra.mrb[0].mxu0 %v3238
        %v3331 = vpop.f32.mrb[0].mxu0
        %v3332 = vadd.f32 %v3229, %v3331
        %v3333 = vpop.f32.mrb[0].mxu0
        %3334 = vmatprep.mubr.f32.mxu0 0.0
        %3335 = vmatmul.mubr.f32.gmra.mrb[0].mxu0 %v3241
        %v3336 = vpop.f32.mrb[0].mxu0
        %v3337 = vadd.f32 %v3229, %v3336
        %v3338 = vpop.f32.mrb[0].mxu0
        %3339 = vmatprep.mubr.f32.mxu0 0.0
        %3340 = vmatmul.mubr.f32.gmra.mrb[0].mxu0 %v3244
        %v3341 = vpop.f32.mrb[0].mxu0
        %v3342 = vadd.f32 %v3229, %v3341
        %v3343 = vpop.f32.mrb[0].mxu0
        %3344 = vmatprep.mubr.f32.mxu0 0.0
        %3345 = vmatmul.mubr.f32.gmra.mrb[0].mxu0 %v3247
        %v3346 = vpop.f32.mrb[0].mxu0
        %v3347 = vadd.f32 %v3229, %v3346
        %v3348 = vpop.f32.mrb[0].mxu0
        %3349 = vmatprep.mubr.f32.mxu0 0.0
        %3350 = vmatmul.mubr.f32.gmra.mrb[0].mxu0 %v3250
        %v3351 = vpop.f32.mrb[0].mxu0
        %v3352 = vadd.f32 %v3229, %v3351
        %v3353 = vpop.f32.mrb[0].mxu0
        %3354 = vmatprep.mubr.f32.mxu0 0.0
        %3355 = vmatmul.mubr.f32.gmra.mrb[0].mxu0 %v3253
        %v3356 = vpop.f32.mrb[0].mxu0
        %v3357 = vadd.f32 %v3229, %v3356
        %v3358 = vpop.f32.mrb[0].mxu0
        %3359 = vdwg.mxu0
        %v3360 = vmax.f32 %v3322, 0.0
        %v3361 = vmax.f32 %v3327, 0.0
        %v3362 = vmax.f32 %v3332, 0.0
        %v3363 = vmax.f32 %v3337, 0.0
        %v3364 = vmax.f32 %v3342, 0.0
        %v3365 = vmax.f32 %v3347, 0.0
        %v3366 = vmax.f32 %v3352, 0.0
        %v3367 = vmax.f32 %v3357, 0.0
        %3368 = vst.msk [vmem:[#allocation4] sm:$0xff] %vm822, -inf
        %vm3369 = vcmask 123904
        %3370 = vst.msk [vmem:[#allocation4 + $0x8] sm:$0x3] %vm3369, -inf
        %3371 = vst.msk [vmem:[#allocation4 + $0x10] sm:$0xff] %vm822, -inf
        %3372 = vst.msk [vmem:[#allocation4 + $0x18] sm:$0x3] %vm3369, -inf
        %3373 = vst.msk [vmem:[#allocation4 + $0x20] sm:$0xff] %vm822, -inf
        %3374 = vst.msk [vmem:[#allocation4 + $0x28] sm:$0x3] %vm3369, -inf
        %3375 = vst.msk [vmem:[#allocation4 + $0x30] sm:$0xff] %vm822, -inf
        %3376 = vst.msk [vmem:[#allocation4 + $0x38] sm:$0x3] %vm3369, -inf
        %3377 = vst.msk [vmem:[#allocation4 + $0x40] sm:$0xff] %vm822, -inf
        %3378 = vst.msk [vmem:[#allocation4 + $0x48] sm:$0x3] %vm3369, -inf
        %3379 = vst.msk [vmem:[#allocation4 + $0x50] sm:$0xff] %vm822, -inf
        %3380 = vst.msk [vmem:[#allocation4 + $0x58] sm:$0x3] %vm3369, -inf
        %3381 = vst.msk [vmem:[#allocation4 + $0x60] sm:$0xff] %vm822, -inf
        %3382 = vst.msk [vmem:[#allocation4 + $0x68] sm:$0x3] %vm3369, -inf
        %3383 = vst.msk [vmem:[#allocation4 + $0x70] sm:$0xff] %vm822, -inf
        %3384 = vst.msk [vmem:[#allocation4 + $0x78] sm:$0x3] %vm3369, -inf
        %3385 = vst.msk [vmem:[#allocation4 + $0x80] sm:$0xff] %vm822, -inf
        %3386 = vst.msk [vmem:[#allocation4 + $0x88] sm:$0x3] %vm3369, -inf
        %3387 = vst.msk [vmem:[#allocation4 + $0x90] sm:$0xff] %vm822, -inf
        %3388 = vst.msk [vmem:[#allocation4 + $0x98] sm:$0x3] %vm3369, -inf
        %s3389 = scalar_lea.vmem [#allocation4], 16
        %3390 = vst.msk [vmem:[%s3389 + $0x1] sm:$0xff] %vm822, %v805
        %3391 = vst.msk [vmem:[%s3389 + $0x11] sm:$0xff] %vm822, %v806
        %3392 = vst.msk [vmem:[%s3389 + $0x21] sm:$0xff] %vm822, %v807
        %3393 = vst.msk [vmem:[%s3389 + $0x31] sm:$0xff] %vm822, %v808
        %3394 = vst.msk [vmem:[%s3389 + $0x41] sm:$0xff] %vm822, %v809
        %3395 = vst.msk [vmem:[%s3389 + $0x51] sm:$0xff] %vm822, %v810
        %3396 = vst.msk [vmem:[%s3389 + $0x61] sm:$0xff] %vm822, %v811
        %3397 = vst.msk [vmem:[%s3389 + $0x71] sm:$0xff] %vm822, %v812
        %v3398 = vld [vmem:[#allocation4] sm:$0xff]
        %v3399 = vld [vmem:[#allocation4 + $0x10] sm:$0xff]
        %v3400 = vld [vmem:[#allocation4 + $0x20] sm:$0xff]
        %v3401 = vld [vmem:[#allocation4 + $0x30] sm:$0xff]
        %v3402 = vld [vmem:[#allocation4 + $0x40] sm:$0xff]
        %v3403 = vld [vmem:[#allocation4 + $0x50] sm:$0xff]
        %v3404 = vld [vmem:[#allocation4 + $0x60] sm:$0xff]
        %v3405 = vld [vmem:[#allocation4 + $0x70] sm:$0xff]
        %v3406 = vld [vmem:[#allocation4 + $0x1] sm:$0xff]
        %v3407 = vld [vmem:[#allocation4 + $0x11] sm:$0xff]
        %v3408 = vld [vmem:[#allocation4 + $0x21] sm:$0xff]
        %v3409 = vld [vmem:[#allocation4 + $0x31] sm:$0xff]
        %v3410 = vld [vmem:[#allocation4 + $0x41] sm:$0xff]
        %v3411 = vld [vmem:[#allocation4 + $0x51] sm:$0xff]
        %v3412 = vld [vmem:[#allocation4 + $0x61] sm:$0xff]
        %v3413 = vld [vmem:[#allocation4 + $0x71] sm:$0xff]
        %v3414 = vmax.f32 %v3398, %v3406
        %v3415 = vmax.f32 %v3399, %v3407
        %v3416 = vmax.f32 %v3400, %v3408
        %v3417 = vmax.f32 %v3401, %v3409
        %v3418 = vmax.f32 %v3402, %v3410
        %v3419 = vmax.f32 %v3403, %v3411
        %v3420 = vmax.f32 %v3404, %v3412
        %v3421 = vmax.f32 %v3405, %v3413
        %v3422 = vld [vmem:[#allocation4 + $0x2] sm:$0xff]
        %v3423 = vld [vmem:[#allocation4 + $0x12] sm:$0xff]
        %v3424 = vld [vmem:[#allocation4 + $0x22] sm:$0xff]
        %v3425 = vld [vmem:[#allocation4 + $0x32] sm:$0xff]
        %v3426 = vld [vmem:[#allocation4 + $0x42] sm:$0xff]
        %v3427 = vld [vmem:[#allocation4 + $0x52] sm:$0xff]
        %v3428 = vld [vmem:[#allocation4 + $0x62] sm:$0xff]
        %v3429 = vld [vmem:[#allocation4 + $0x72] sm:$0xff]
        %v3430 = vmax.f32 %v3414, %v3422
        %v3431 = vmax.f32 %v3415, %v3423
        %v3432 = vmax.f32 %v3416, %v3424
        %v3433 = vmax.f32 %v3417, %v3425
        %v3434 = vmax.f32 %v3418, %v3426
        %v3435 = vmax.f32 %v3419, %v3427
        %v3436 = vmax.f32 %v3420, %v3428
        %v3437 = vmax.f32 %v3421, %v3429
        %v3438 = vld [vmem:[%s3389] sm:$0xff]
        %v3439 = vld [vmem:[%s3389 + $0x10] sm:$0xff]
        %v3440 = vld [vmem:[%s3389 + $0x20] sm:$0xff]
        %v3441 = vld [vmem:[%s3389 + $0x30] sm:$0xff]
        %v3442 = vld [vmem:[%s3389 + $0x40] sm:$0xff]
        %v3443 = vld [vmem:[%s3389 + $0x50] sm:$0xff]
        %v3444 = vld [vmem:[%s3389 + $0x60] sm:$0xff]
        %v3445 = vld [vmem:[%s3389 + $0x70] sm:$0xff]
        %v3446 = vmax.f32 %v3430, %v3438
        %v3447 = vmax.f32 %v3431, %v3439
        %v3448 = vmax.f32 %v3432, %v3440
        %v3449 = vmax.f32 %v3433, %v3441
        %v3450 = vmax.f32 %v3434, %v3442
        %v3451 = vmax.f32 %v3435, %v3443
        %v3452 = vmax.f32 %v3436, %v3444
        %v3453 = vmax.f32 %v3437, %v3445
        %v3454 = vld [vmem:[%s3389 + $0x1] sm:$0xff]
        %v3455 = vld [vmem:[%s3389 + $0x11] sm:$0xff]
        %v3456 = vld [vmem:[%s3389 + $0x21] sm:$0xff]
        %v3457 = vld [vmem:[%s3389 + $0x31] sm:$0xff]
        %v3458 = vld [vmem:[%s3389 + $0x41] sm:$0xff]
        %v3459 = vld [vmem:[%s3389 + $0x51] sm:$0xff]
        %v3460 = vld [vmem:[%s3389 + $0x61] sm:$0xff]
        %v3461 = vld [vmem:[%s3389 + $0x71] sm:$0xff]
        %v3462 = vmax.f32 %v3446, %v3454
        %v3463 = vmax.f32 %v3447, %v3455
        %v3464 = vmax.f32 %v3448, %v3456
        %v3465 = vmax.f32 %v3449, %v3457
        %v3466 = vmax.f32 %v3450, %v3458
        %v3467 = vmax.f32 %v3451, %v3459
        %v3468 = vmax.f32 %v3452, %v3460
        %v3469 = vmax.f32 %v3453, %v3461
        %v3470 = vld [vmem:[%s3389 + $0x2] sm:$0xff]
        %v3471 = vld [vmem:[%s3389 + $0x12] sm:$0xff]
        %v3472 = vld [vmem:[%s3389 + $0x22] sm:$0xff]
        %v3473 = vld [vmem:[%s3389 + $0x32] sm:$0xff]
        %v3474 = vld [vmem:[%s3389 + $0x42] sm:$0xff]
        %v3475 = vld [vmem:[%s3389 + $0x52] sm:$0xff]
        %v3476 = vld [vmem:[%s3389 + $0x62] sm:$0xff]
        %v3477 = vld [vmem:[%s3389 + $0x72] sm:$0xff]
        %v3478 = vmax.f32 %v3462, %v3470
        %v3479 = vmax.f32 %v3463, %v3471
        %v3480 = vmax.f32 %v3464, %v3472
        %v3481 = vmax.f32 %v3465, %v3473
        %v3482 = vmax.f32 %v3466, %v3474
        %v3483 = vmax.f32 %v3467, %v3475
        %v3484 = vmax.f32 %v3468, %v3476
        %v3485 = vmax.f32 %v3469, %v3477
        %s3486 = scalar_lea.vmem [#allocation4], 32
        %v3487 = vld [vmem:[%s3486] sm:$0xff]
        %v3488 = vld [vmem:[%s3486 + $0x10] sm:$0xff]
        %v3489 = vld [vmem:[%s3486 + $0x20] sm:$0xff]
        %v3490 = vld [vmem:[%s3486 + $0x30] sm:$0xff]
        %v3491 = vld [vmem:[%s3486 + $0x40] sm:$0xff]
        %v3492 = vld [vmem:[%s3486 + $0x50] sm:$0xff]
        %v3493 = vld [vmem:[%s3486 + $0x60] sm:$0xff]
        %v3494 = vld [vmem:[%s3486 + $0x70] sm:$0xff]
        %v3495 = vmax.f32 %v3478, %v3487
        %v3496 = vmax.f32 %v3479, %v3488
        %v3497 = vmax.f32 %v3480, %v3489
        %v3498 = vmax.f32 %v3481, %v3490
        %v3499 = vmax.f32 %v3482, %v3491
        %v3500 = vmax.f32 %v3483, %v3492
        %v3501 = vmax.f32 %v3484, %v3493
        %v3502 = vmax.f32 %v3485, %v3494
        %v3503 = vld [vmem:[%s3486 + $0x1] sm:$0xff]
        %v3504 = vld [vmem:[%s3486 + $0x11] sm:$0xff]
        %v3505 = vld [vmem:[%s3486 + $0x21] sm:$0xff]
        %v3506 = vld [vmem:[%s3486 + $0x31] sm:$0xff]
        %v3507 = vld [vmem:[%s3486 + $0x41] sm:$0xff]
        %v3508 = vld [vmem:[%s3486 + $0x51] sm:$0xff]
        %v3509 = vld [vmem:[%s3486 + $0x61] sm:$0xff]
        %v3510 = vld [vmem:[%s3486 + $0x71] sm:$0xff]
        %v3511 = vmax.f32 %v3495, %v3503
        %v3512 = vmax.f32 %v3496, %v3504
        %v3513 = vmax.f32 %v3497, %v3505
        %v3514 = vmax.f32 %v3498, %v3506
        %v3515 = vmax.f32 %v3499, %v3507
        %v3516 = vmax.f32 %v3500, %v3508
        %v3517 = vmax.f32 %v3501, %v3509
        %v3518 = vmax.f32 %v3502, %v3510
        %v3519 = vld [vmem:[%s3486 + $0x2] sm:$0xff]
        %v3520 = vld [vmem:[%s3486 + $0x12] sm:$0xff]
        %v3521 = vld [vmem:[%s3486 + $0x22] sm:$0xff]
        %v3522 = vld [vmem:[%s3486 + $0x32] sm:$0xff]
        %v3523 = vld [vmem:[%s3486 + $0x42] sm:$0xff]
        %v3524 = vld [vmem:[%s3486 + $0x52] sm:$0xff]
        %v3525 = vld [vmem:[%s3486 + $0x62] sm:$0xff]
        %v3526 = vld [vmem:[%s3486 + $0x72] sm:$0xff]
        %v3527 = vmax.f32 %v3511, %v3519
        %v3528 = vmax.f32 %v3512, %v3520
        %v3529 = vmax.f32 %v3513, %v3521
        %v3530 = vmax.f32 %v3514, %v3522
        %v3531 = vmax.f32 %v3515, %v3523
        %v3532 = vmax.f32 %v3516, %v3524
        %v3533 = vmax.f32 %v3517, %v3525
        %v3534 = vmax.f32 %v3518, %v3526
        %v3535 = vld [vmem:[%s15] sm:$0xff]
        %v3536 = vld [vmem:[%s15 + $0x8] sm:$0xff]
        %v3537 = vld [vmem:[%s16] sm:$0x1]
        %v3539 = vlaneseq
        %v3540 = vshrl.u32 %v3539, 7
        %v3541 = vsub.s32 0, %v3540
        %v3542 = vrot.slane %v3537, %v3541
        %v3545 = vsel %vm822, %v3527, 0
        %v3548 = vsel %vm822, %v3528, 0
        %v3551 = vsel %vm822, %v3529, 0
        %v3554 = vsel %vm822, %v3530, 0
        %v3557 = vsel %vm822, %v3531, 0
        %v3560 = vsel %vm822, %v3532, 0
        %v3563 = vsel %vm822, %v3533, 0
        %v3566 = vsel %vm822, %v3534, 0
        %3568 = vmatprep.subr.mxu0 0.0
        %3569 = vmatpush1.msra.mxu0 %v3535
        %3570 = vmatprep.subr.mxu0 0.0
        %3571 = vmatpush1.msra.mxu0 %v3536
        %3572 = vmatprep.subr.mxu0 0.0
        %3573 = vmatpush1.msra.mxu0 0.0
        %3574 = vmatprep.subr.mxu0 0.0
        %3575 = vmatpush1.msra.mxu0 0.0
        %3576 = vmatprep.subr.mxu0 0.0
        %3577 = vmatpush1.msra.mxu0 0.0
        %3578 = vmatprep.subr.mxu0 0.0
        %3579 = vmatpush1.msra.mxu0 0.0
        %3580 = vmatprep.subr.mxu0 0.0
        %3581 = vmatpush1.msra.mxu0 0.0
        %3582 = vmatprep.subr.mxu0 0.0
        %3583 = vmatpush1.msra.mxu0 0.0
        %3584 = vmatprep.subr.mxu0 0.0
        %3585 = vmatpush1.msra.mxu0 0.0
        %3586 = vmatprep.subr.mxu0 0.0
        %3587 = vmatpush1.msra.mxu0 0.0
        %3588 = vmatprep.subr.mxu0 0.0
        %3589 = vmatpush1.msra.mxu0 0.0
        %3590 = vmatprep.subr.mxu0 0.0
        %3591 = vmatpush1.msra.mxu0 0.0
        %3592 = vmatprep.subr.mxu0 0.0
        %3593 = vmatpush1.msra.mxu0 0.0
        %3594 = vmatprep.subr.mxu0 0.0
        %3595 = vmatpush1.msra.mxu0 0.0
        %3596 = vmatprep.subr.mxu0 0.0
        %3597 = vmatpush1.msra.mxu0 0.0
        %3598 = vmatprep.subr.mxu0 0.0
        %3599 = vmatpush1.msra.mxu0 0.0
        %3600 = vmatprep.subr.mxu0 0.0
        %3601 = vmatpush1.msra.mxu0 0.0
        %3602 = vmatprep.subr.mxu0 0.0
        %3603 = vmatpush1.msra.mxu0 0.0
        %3604 = vmatprep.subr.mxu0 0.0
        %3605 = vmatpush1.msra.mxu0 0.0
        %3606 = vmatprep.subr.mxu0 0.0
        %3607 = vmatpush1.msra.mxu0 0.0
        %3608 = vmatprep.subr.mxu0 0.0
        %3609 = vmatpush1.msra.mxu0 0.0
        %3610 = vmatprep.subr.mxu0 0.0
        %3611 = vmatpush1.msra.mxu0 0.0
        %3612 = vmatprep.subr.mxu0 0.0
        %3613 = vmatpush1.msra.mxu0 0.0
        %3614 = vmatprep.subr.mxu0 0.0
        %3615 = vmatpush1.msra.mxu0 0.0
        %3616 = vmatprep.subr.mxu0 0.0
        %3617 = vmatpush1.msra.mxu0 0.0
        %3618 = vmatprep.subr.mxu0 0.0
        %3619 = vmatpush1.msra.mxu0 0.0
        %3620 = vmatprep.subr.mxu0 0.0
        %3621 = vmatpush1.msra.mxu0 0.0
        %3622 = vmatprep.subr.mxu0 0.0
        %3623 = vmatpush1.msra.mxu0 0.0
        %3624 = vmatprep.subr.mxu0 0.0
        %3625 = vmatpush1.msra.mxu0 0.0
        %3626 = vmatprep.subr.mxu0 0.0
        %3627 = vmatpush1.msra.mxu0 0.0
        %3628 = vmatprep.subr.mxu0 0.0
        %3629 = vmatpush1.msra.mxu0 0.0
        %3630 = vmatprep.subr.mxu0 0.0
        %3631 = vmatpush1.msra.mxu0 0.0
        %3632 = vmatprep.mubr.f32.mxu0 0.0
        %3633 = vmatmul.mubr.f32.gmra.mrb[0].mxu0 %v3545
        %v3634 = vpop.f32.mrb[0].mxu0
        %v3635 = vadd.f32 %v3542, %v3634
        %v3636 = vpop.f32.mrb[0].mxu0
        %3637 = vmatprep.mubr.f32.mxu0 0.0
        %3638 = vmatmul.mubr.f32.gmra.mrb[0].mxu0 %v3548
        %v3639 = vpop.f32.mrb[0].mxu0
        %v3640 = vadd.f32 %v3542, %v3639
        %v3641 = vpop.f32.mrb[0].mxu0
        %3642 = vmatprep.mubr.f32.mxu0 0.0
        %3643 = vmatmul.mubr.f32.gmra.mrb[0].mxu0 %v3551
        %v3644 = vpop.f32.mrb[0].mxu0
        %v3645 = vadd.f32 %v3542, %v3644
        %v3646 = vpop.f32.mrb[0].mxu0
        %3647 = vmatprep.mubr.f32.mxu0 0.0
        %3648 = vmatmul.mubr.f32.gmra.mrb[0].mxu0 %v3554
        %v3649 = vpop.f32.mrb[0].mxu0
        %v3650 = vadd.f32 %v3542, %v3649
        %v3651 = vpop.f32.mrb[0].mxu0
        %3652 = vmatprep.mubr.f32.mxu0 0.0
        %3653 = vmatmul.mubr.f32.gmra.mrb[0].mxu0 %v3557
        %v3654 = vpop.f32.mrb[0].mxu0
        %v3655 = vadd.f32 %v3542, %v3654
        %v3656 = vpop.f32.mrb[0].mxu0
        %3657 = vmatprep.mubr.f32.mxu0 0.0
        %3658 = vmatmul.mubr.f32.gmra.mrb[0].mxu0 %v3560
        %v3659 = vpop.f32.mrb[0].mxu0
        %v3660 = vadd.f32 %v3542, %v3659
        %v3661 = vpop.f32.mrb[0].mxu0
        %3662 = vmatprep.mubr.f32.mxu0 0.0
        %3663 = vmatmul.mubr.f32.gmra.mrb[0].mxu0 %v3563
        %v3664 = vpop.f32.mrb[0].mxu0
        %v3665 = vadd.f32 %v3542, %v3664
        %v3666 = vpop.f32.mrb[0].mxu0
        %3667 = vmatprep.mubr.f32.mxu0 0.0
        %3668 = vmatmul.mubr.f32.gmra.mrb[0].mxu0 %v3566
        %v3669 = vpop.f32.mrb[0].mxu0
        %v3670 = vadd.f32 %v3542, %v3669
        %v3671 = vpop.f32.mrb[0].mxu0
        %3672 = vdwg.mxu0
        %v3673 = vmax.f32 %v3635, 0.0
        %v3674 = vmax.f32 %v3640, 0.0
        %v3675 = vmax.f32 %v3645, 0.0
        %v3676 = vmax.f32 %v3650, 0.0
        %v3677 = vmax.f32 %v3655, 0.0
        %v3678 = vmax.f32 %v3660, 0.0
        %v3679 = vmax.f32 %v3665, 0.0
        %v3680 = vmax.f32 %v3670, 0.0
        %v3681 = vld [vmem:[%s17] sm:$0xff]
        %v3682 = vld [vmem:[%s17 + $0x8] sm:$0xff]
        %v3683 = vld [vmem:[%s18] sm:$0x1]
        %v3685 = vlaneseq
        %v3686 = vshrl.u32 %v3685, 7
        %v3687 = vsub.s32 0, %v3686
        %v3688 = vrot.slane %v3683, %v3687
        %3690 = vmatprep.subr.mxu0 0.0
        %3691 = vmatpush1.msra.mxu0 %v3681
        %3692 = vmatprep.subr.mxu0 0.0
        %3693 = vmatpush1.msra.mxu0 %v3682
        %3694 = vmatprep.subr.mxu0 0.0
        %3695 = vmatpush1.msra.mxu0 0.0
        %3696 = vmatprep.subr.mxu0 0.0
        %3697 = vmatpush1.msra.mxu0 0.0
        %3698 = vmatprep.subr.mxu0 0.0
        %3699 = vmatpush1.msra.mxu0 0.0
        %3700 = vmatprep.subr.mxu0 0.0
        %3701 = vmatpush1.msra.mxu0 0.0
        %3702 = vmatprep.subr.mxu0 0.0
        %3703 = vmatpush1.msra.mxu0 0.0
        %3704 = vmatprep.subr.mxu0 0.0
        %3705 = vmatpush1.msra.mxu0 0.0
        %3706 = vmatprep.subr.mxu0 0.0
        %3707 = vmatpush1.msra.mxu0 0.0
        %3708 = vmatprep.subr.mxu0 0.0
        %3709 = vmatpush1.msra.mxu0 0.0
        %3710 = vmatprep.subr.mxu0 0.0
        %3711 = vmatpush1.msra.mxu0 0.0
        %3712 = vmatprep.subr.mxu0 0.0
        %3713 = vmatpush1.msra.mxu0 0.0
        %3714 = vmatprep.subr.mxu0 0.0
        %3715 = vmatpush1.msra.mxu0 0.0
        %3716 = vmatprep.subr.mxu0 0.0
        %3717 = vmatpush1.msra.mxu0 0.0
        %3718 = vmatprep.subr.mxu0 0.0
        %3719 = vmatpush1.msra.mxu0 0.0
        %3720 = vmatprep.subr.mxu0 0.0
        %3721 = vmatpush1.msra.mxu0 0.0
        %3722 = vmatprep.subr.mxu0 0.0
        %3723 = vmatpush1.msra.mxu0 0.0
        %3724 = vmatprep.subr.mxu0 0.0
        %3725 = vmatpush1.msra.mxu0 0.0
        %3726 = vmatprep.subr.mxu0 0.0
        %3727 = vmatpush1.msra.mxu0 0.0
        %3728 = vmatprep.subr.mxu0 0.0
        %3729 = vmatpush1.msra.mxu0 0.0
        %3730 = vmatprep.subr.mxu0 0.0
        %3731 = vmatpush1.msra.mxu0 0.0
        %3732 = vmatprep.subr.mxu0 0.0
        %3733 = vmatpush1.msra.mxu0 0.0
        %3734 = vmatprep.subr.mxu0 0.0
        %3735 = vmatpush1.msra.mxu0 0.0
        %3736 = vmatprep.subr.mxu0 0.0
        %3737 = vmatpush1.msra.mxu0 0.0
        %3738 = vmatprep.subr.mxu0 0.0
        %3739 = vmatpush1.msra.mxu0 0.0
        %3740 = vmatprep.subr.mxu0 0.0
        %3741 = vmatpush1.msra.mxu0 0.0
        %3742 = vmatprep.subr.mxu0 0.0
        %3743 = vmatpush1.msra.mxu0 0.0
        %3744 = vmatprep.subr.mxu0 0.0
        %3745 = vmatpush1.msra.mxu0 0.0
        %3746 = vmatprep.subr.mxu0 0.0
        %3747 = vmatpush1.msra.mxu0 0.0
        %3748 = vmatprep.subr.mxu0 0.0
        %3749 = vmatpush1.msra.mxu0 0.0
        %3750 = vmatprep.subr.mxu0 0.0
        %3751 = vmatpush1.msra.mxu0 0.0
        %3752 = vmatprep.subr.mxu0 0.0
        %3753 = vmatpush1.msra.mxu0 0.0
        %3754 = vmatprep.mubr.f32.mxu0 0.0
        %3755 = vmatmul.mubr.f32.gmra.mrb[0].mxu0 %v824
        %v3756 = vpop.f32.mrb[0].mxu0
        %v3757 = vadd.f32 %v3688, %v3756
        %v3758 = vpop.f32.mrb[0].mxu0
        %3759 = vmatprep.mubr.f32.mxu0 0.0
        %3760 = vmatmul.mubr.f32.gmra.mrb[0].mxu0 %v827
        %v3761 = vpop.f32.mrb[0].mxu0
        %v3762 = vadd.f32 %v3688, %v3761
        %v3763 = vpop.f32.mrb[0].mxu0
        %3764 = vmatprep.mubr.f32.mxu0 0.0
        %3765 = vmatmul.mubr.f32.gmra.mrb[0].mxu0 %v830
        %v3766 = vpop.f32.mrb[0].mxu0
        %v3767 = vadd.f32 %v3688, %v3766
        %v3768 = vpop.f32.mrb[0].mxu0
        %3769 = vmatprep.mubr.f32.mxu0 0.0
        %3770 = vmatmul.mubr.f32.gmra.mrb[0].mxu0 %v833
        %v3771 = vpop.f32.mrb[0].mxu0
        %v3772 = vadd.f32 %v3688, %v3771
        %v3773 = vpop.f32.mrb[0].mxu0
        %3774 = vmatprep.mubr.f32.mxu0 0.0
        %3775 = vmatmul.mubr.f32.gmra.mrb[0].mxu0 %v836
        %v3776 = vpop.f32.mrb[0].mxu0
        %v3777 = vadd.f32 %v3688, %v3776
        %v3778 = vpop.f32.mrb[0].mxu0
        %3779 = vmatprep.mubr.f32.mxu0 0.0
        %3780 = vmatmul.mubr.f32.gmra.mrb[0].mxu0 %v839
        %v3781 = vpop.f32.mrb[0].mxu0
        %v3782 = vadd.f32 %v3688, %v3781
        %v3783 = vpop.f32.mrb[0].mxu0
        %3784 = vmatprep.mubr.f32.mxu0 0.0
        %3785 = vmatmul.mubr.f32.gmra.mrb[0].mxu0 %v842
        %v3786 = vpop.f32.mrb[0].mxu0
        %v3787 = vadd.f32 %v3688, %v3786
        %v3788 = vpop.f32.mrb[0].mxu0
        %3789 = vmatprep.mubr.f32.mxu0 0.0
        %3790 = vmatmul.mubr.f32.gmra.mrb[0].mxu0 %v845
        %v3791 = vpop.f32.mrb[0].mxu0
        %v3792 = vadd.f32 %v3688, %v3791
        %v3793 = vpop.f32.mrb[0].mxu0
        %3794 = vdwg.mxu0
        %v3795 = vmax.f32 %v3757, 0.0
        %v3796 = vmax.f32 %v3762, 0.0
        %v3797 = vmax.f32 %v3767, 0.0
        %v3798 = vmax.f32 %v3772, 0.0
        %v3799 = vmax.f32 %v3777, 0.0
        %v3800 = vmax.f32 %v3782, 0.0
        %v3801 = vmax.f32 %v3787, 0.0
        %v3802 = vmax.f32 %v3792, 0.0
        %3811 = vrot.lane.b32.xlu0 %v3360, 96
        %v3812 = vpop.permute.xlu0 %3811
        %3813 = vrot.lane.b32.xlu0 %v3361, 96
        %v3814 = vpop.permute.xlu0 %3813
        %3815 = vrot.lane.b32.xlu0 %v3362, 96
        %v3816 = vpop.permute.xlu0 %3815
        %3817 = vrot.lane.b32.xlu0 %v3363, 96
        %v3818 = vpop.permute.xlu0 %3817
        %3819 = vrot.lane.b32.xlu0 %v3364, 96
        %v3820 = vpop.permute.xlu0 %3819
        %3821 = vrot.lane.b32.xlu0 %v3365, 96
        %v3822 = vpop.permute.xlu0 %3821
        %3823 = vrot.lane.b32.xlu0 %v3366, 96
        %v3824 = vpop.permute.xlu0 %3823
        %3825 = vrot.lane.b32.xlu0 %v3367, 96
        %v3826 = vpop.permute.xlu0 %3825
        %3843 = vrot.lane.b32.xlu0 %v3673, 64
        %v3844 = vpop.permute.xlu0 %3843
        %3845 = vrot.lane.b32.xlu0 %v3674, 64
        %v3846 = vpop.permute.xlu0 %3845
        %3847 = vrot.lane.b32.xlu0 %v3675, 64
        %v3848 = vpop.permute.xlu0 %3847
        %3849 = vrot.lane.b32.xlu0 %v3676, 64
        %v3850 = vpop.permute.xlu0 %3849
        %3851 = vrot.lane.b32.xlu0 %v3677, 64
        %v3852 = vpop.permute.xlu0 %3851
        %3853 = vrot.lane.b32.xlu0 %v3678, 64
        %v3854 = vpop.permute.xlu0 %3853
        %3855 = vrot.lane.b32.xlu0 %v3679, 64
        %v3856 = vpop.permute.xlu0 %3855
        %3857 = vrot.lane.b32.xlu0 %v3680, 64
        %v3858 = vpop.permute.xlu0 %3857
        %3875 = vrot.lane.b32.xlu0 %v3795, 32
        %v3876 = vpop.permute.xlu0 %3875
        %3877 = vrot.lane.b32.xlu0 %v3796, 32
        %v3878 = vpop.permute.xlu0 %3877
        %3879 = vrot.lane.b32.xlu0 %v3797, 32
        %v3880 = vpop.permute.xlu0 %3879
        %3881 = vrot.lane.b32.xlu0 %v3798, 32
        %v3882 = vpop.permute.xlu0 %3881
        %3883 = vrot.lane.b32.xlu0 %v3799, 32
        %v3884 = vpop.permute.xlu0 %3883
        %3885 = vrot.lane.b32.xlu0 %v3800, 32
        %v3886 = vpop.permute.xlu0 %3885
        %3887 = vrot.lane.b32.xlu0 %v3801, 32
        %v3888 = vpop.permute.xlu0 %3887
        %3889 = vrot.lane.b32.xlu0 %v3802, 32
        %v3890 = vpop.permute.xlu0 %3889
        %vm3899 = vcmask 785408
        %v3900 = vsel %vm3899, %v2783, %v3812
        %v3901 = vsel %vm3899, %v2784, %v3814
        %v3902 = vsel %vm3899, %v2785, %v3816
        %v3903 = vsel %vm3899, %v2786, %v3818
        %v3904 = vsel %vm3899, %v2787, %v3820
        %v3905 = vsel %vm3899, %v2788, %v3822
        %v3906 = vsel %vm3899, %v2789, %v3824
        %v3907 = vsel %vm3899, %v2790, %v3826
        %vm3908 = vcmask 523264
        %v3909 = vsel %vm3908, %v3812, %v3844
        %v3910 = vsel %vm3908, %v3814, %v3846
        %v3911 = vsel %vm3908, %v3816, %v3848
        %v3912 = vsel %vm3908, %v3818, %v3850
        %v3913 = vsel %vm3908, %v3820, %v3852
        %v3914 = vsel %vm3908, %v3822, %v3854
        %v3915 = vsel %vm3908, %v3824, %v3856
        %v3916 = vsel %vm3908, %v3826, %v3858
        %v3917 = vsel %vm1241, %v3844, %v3876
        %v3918 = vsel %vm1241, %v3846, %v3878
        %v3919 = vsel %vm1241, %v3848, %v3880
        %v3920 = vsel %vm1241, %v3850, %v3882
        %v3921 = vsel %vm1241, %v3852, %v3884
        %v3922 = vsel %vm1241, %v3854, %v3886
        %v3923 = vsel %vm1241, %v3856, %v3888
        %v3924 = vsel %vm1241, %v3858, %v3890
        %3925 = vst [vmem:[%s772] sm:$0xff] %v3900
        %3926 = vst [vmem:[%s772 + $0x8] sm:$0xff] %v3909
        %3927 = vst [vmem:[%s772 + $0x10] sm:$0xff] %v3917
        %3928 = vst [vmem:[%s772 + $0x18] sm:$0xff] %v3901
        %3929 = vst [vmem:[%s772 + $0x20] sm:$0xff] %v3910
        %3930 = vst [vmem:[%s772 + $0x28] sm:$0xff] %v3918
        %3931 = vst [vmem:[%s772 + $0x30] sm:$0xff] %v3902
        %3932 = vst [vmem:[%s772 + $0x38] sm:$0xff] %v3911
        %3933 = vst [vmem:[%s772 + $0x40] sm:$0xff] %v3919
        %3934 = vst [vmem:[%s772 + $0x48] sm:$0xff] %v3903
        %3935 = vst [vmem:[%s772 + $0x50] sm:$0xff] %v3912
        %3936 = vst [vmem:[%s772 + $0x58] sm:$0xff] %v3920
        %3937 = vst [vmem:[%s772 + $0x60] sm:$0xff] %v3904
        %3938 = vst [vmem:[%s772 + $0x68] sm:$0xff] %v3913
        %3939 = vst [vmem:[%s772 + $0x70] sm:$0xff] %v3921
        %3940 = vst [vmem:[%s772 + $0x78] sm:$0xff] %v3905
        %3941 = vst [vmem:[%s772 + $0x80] sm:$0xff] %v3914
        %3942 = vst [vmem:[%s772 + $0x88] sm:$0xff] %v3922
        %3943 = vst [vmem:[%s772 + $0x90] sm:$0xff] %v3906
        %3944 = vst [vmem:[%s772 + $0x98] sm:$0xff] %v3915
        %3945 = vst [vmem:[%s772 + $0xa0] sm:$0xff] %v3923
        %3946 = vst [vmem:[%s772 + $0xa8] sm:$0xff] %v3907
        %3947 = vst [vmem:[%s772 + $0xb0] sm:$0xff] %v3916
        %3948 = vst [vmem:[%s772 + $0xb8] sm:$0xff] %v3924
        %s3949 = sand.u32 %s454, 1
        %s3950 = scalar_lea.sflag [#allocation7], %s3949
        %s3951 = sand.u32 %s454, 1
        %s3952 = smul.addr %s3951, 192
        %s3953 = scalar_lea.vmem [#allocation25], %s3952
        // Predicated region
        $region145: #{inception_b_forward.1} parent=95 // pred_check
          %p3954 = pneg %p464
        $region146: #{inception_b_forward.1} parent=95 // pred_check_branch
          %3956 = sbr.rel (%p3954) target = $region148
        $region147: #{inception_b_forward.1} parent=95 // pred_region
          %s3958 = ssub.s32 3072, 3072
          %3959 = vsyncadd %s3950, %s3958
          %s3960 = smul.addr %s42, 24
          %s3961 = smul.addr %s3960, 128
          %s3962 = scalar_lea.hbm %s19, %s3961
          %s3963 = sshll.u32 %s3953, 4
          %s3964 = int_to_ptr.vmem [resolvable:$true] %s3963
          %3969 = dma.vmem_to_hbm [thread:$0]  %s3964, 3072, %s3962, %s3950, 384, 384, 24
        $region148: #{inception_b_forward.1} parent=95 // pred_fallthru
          _
      $region96: #{inception_b_forward.1} parent=5 // pred_fallthru
        _
      %p3970 = scmp.le.s32.totalorder 2, %s37
      // Predicated region
      $region149: #{inception_b_forward.1} parent=5 // pred_check
        %p3971 = pneg %p3970
      $region150: #{inception_b_forward.1} parent=5 // pred_check_branch
        %3973 = sbr.rel (%p3971) target = $region152
      $region151: #{inception_b_forward.1} parent=5 // pred_region
        %s3974 = ssub.s32 %s37, 2
        // Predicated region
        $region153: #{inception_b_forward.1} parent=151 // pred_check
          %p3975 = pneg %p470
        $region154: #{inception_b_forward.1} parent=151 // pred_check_branch
          %3977 = sbr.rel (%p3975) target = $region156
        $region155: #{inception_b_forward.1} parent=151 // pred_region
          %s3978 = sand.u32 %s455, 1
          %s3979 = scalar_lea.sflag [#allocation7], %s3978
          %s3980 = sand.u32 %s455, 1
          %s3981 = smul.addr %s3980, 192
          %s3982 = scalar_lea.vmem [#allocation25], %s3981
          %3983 = dma.done %s3979, 3072
        $region156: #{inception_b_forward.1} parent=151 // pred_fallthru
          _
      $region152: #{inception_b_forward.1} parent=5 // pred_fallthru
        _
    $region6: #{inception_b_forward.1} parent=1 // loop_footer
      %s41 = sadd.s32 1, %s37
    $region7: #{inception_b_forward.1} parent=1 // loop_footer_branch
      %36 = sbr.rel target = $region3
    $region8: #{inception_b_forward.1} parent=1 // loop_exit
      _
    %3984 = vsyncpa [#allocation6], 1
    %s3985 = scalar_lea.sflag [#allocation6], 1
    %3986 = vsyncpa %s3985, 1
    %3987 = vsyncpa [#allocation9], 1
    %3988 = vsyncpa [#allocation12], 1
    %3989 = vsyncpa [#allocation15], 1
    %3990 = vsyncpa [#allocation18], 1
    %3991 = vsyncpa [#allocation21], 1
    %3992 = vsyncpa [#allocation24], 1
    %3993 = vsyncpa [#allocation7], 1
    %s3994 = scalar_lea.sflag [#allocation7], 1
    %3995 = vsyncpa %s3994, 1

</llo_original>
